<compile_context>
chip_gen: v6e
topology: v6e:2x2x1
jax: 0.10.0
libtpu: 0.0.40
codegen_flags: <defaults>
</compile_context>

<pallas_src>
import functools
import math

import jax
import jax.numpy as jnp
from jax import lax
from jax.experimental import pallas as pl
from jax.experimental.pallas import tpu as pltpu


_TAPS = ((-1, -1), (-1, 0), (-1, 1),
         (0, -1), (0, 0), (0, 1),
         (1, -1), (1, 0), (1, 1))


def _make_border_masks(H, W):
    """(HW, 8) f32: column m is 1.0 where the m-th non-center tap stays in-bounds."""
    t = jnp.arange(H * W)
    i = t // W
    j = t % W
    cols = []
    for dy, dx in _TAPS:
        if (dy, dx) == (0, 0):
            continue
        ok = jnp.ones((H * W,), bool)
        if dy < 0:
            ok = jnp.logical_and(ok, i >= -dy)
        if dy > 0:
            ok = jnp.logical_and(ok, i < H - dy)
        if dx < 0:
            ok = jnp.logical_and(ok, j >= -dx)
        if dx > 0:
            ok = jnp.logical_and(ok, j < W - dx)
        cols.append(ok)
    return jnp.stack(cols, axis=1).astype(jnp.float32)


def _conv3x3_bn_relu(x_tm, w_ref, bias, masks, patch_ref, *, W):
    """'SAME' 3x3 conv (no bias) + folded-BN bias + ReLU, token-major.

    x_tm:      (HW, Cin) f32 activation.
    w_ref:     (9*Cin, Cout) bf16 weight ref, rows ordered (tap, Cin), BN scale folded.
    bias:      (1, Cout) or (HW, Cout) f32 additive term (folded BN bias [+ coord term]).
    masks:     (HW, 8) f32 border masks for the 8 non-center taps.
    patch_ref: (HW, 9*Cin) f32 VMEM scratch -- im2col built in place (no concat copy).
    """
    HW, cin = x_tm.shape
    mi = 0
    for t, (dy, dx) in enumerate(_TAPS):
        k = dy * W + dx
        if k == 0:
            tap = x_tm
        else:
            # y[t] = x[t + k]: circular roll on the sublane axis (XLU slot); the
            # border mask zeroes every position whose source is outside the image
            # (including the wrap positions and row-crossing dx shifts).
            tap = pltpu.roll(x_tm, (HW - k) % HW, axis=0) * masks[:, mi:mi + 1]
            mi += 1
        patch_ref[:, pl.ds(t * cin, cin)] = tap
    out = jnp.dot(patch_ref[...].astype(jnp.bfloat16), w_ref[...],
                  preferred_element_type=jnp.float32)          # (HW, Cout) f32 acc
    return jnp.maximum(out + bias, 0.0)


def _qgm_kernel(x_ref, l_ref, valid_ref, c1b_ref, masks_ref,
                w1_ref, w2_ref, w3_ref, bn_b_ref,
                wp2_ref, wpq_ref, wl_ref, pe_q_ref, pe_l_ref,
                wq_ref, wk_ref, wv_ref, wo_ref, bias_ref,
                out_ref, patch_ref, *, W, num_heads):
    """One batch element: full QueryGenerationModule forward, all in VMEM."""
    bf16 = jnp.bfloat16
    masks = masks_ref[...]                                     # (HW, 8), loaded once
    x_tm = x_ref[0]                                            # (HW, Cv) token-major

    # ---- project_1: three (conv3x3 + folded BN + ReLU) layers ------------------
    # Layer 1's additive term already contains the coordinate-channel contribution.
    a = _conv3x3_bn_relu(x_tm, w1_ref, c1b_ref[...], masks, patch_ref, W=W)
    a = _conv3x3_bn_relu(a, w2_ref, bn_b_ref[pl.ds(0, 1), :], masks, patch_ref, W=W)
    a = _conv3x3_bn_relu(a, w3_ref, bn_b_ref[pl.ds(1, 1), :], masks, patch_ref, W=W)

    # ---- project_2 (1x1 conv) ---------------------------------------------------
    p2 = jnp.dot(a.astype(bf16), wp2_ref[...],
                 preferred_element_type=jnp.float32)           # (HW, Q)

    # ---- project_query: Conv1d over the H*W channel axis + ReLU -----------------
    vis_x = jnp.maximum(
        lax.dot_general(p2.astype(bf16), wpq_ref[...], (((0,), (0,)), ((), ())),
                        preferred_element_type=jnp.float32), 0.0)   # (Q, dim)

    # ---- project_lang + ReLU, then positional encodings -------------------------
    kv_tok = jnp.maximum(
        jnp.dot(l_ref[0].astype(bf16), wl_ref[...],
                preferred_element_type=jnp.float32), 0.0)           # (L, dim)
    q_in = (vis_x + pe_q_ref[...]).astype(bf16)
    kv_in = (kv_tok + pe_l_ref[...]).astype(bf16)

    # ---- multi-head cross attention (q from vision queries, k/v from language) --
    q = jnp.dot(q_in, wq_ref[...], preferred_element_type=jnp.float32) + bias_ref[pl.ds(0, 1), :]
    k = jnp.dot(kv_in, wk_ref[...], preferred_element_type=jnp.float32) + bias_ref[pl.ds(1, 1), :]
    v = jnp.dot(kv_in, wv_ref[...], preferred_element_type=jnp.float32) + bias_ref[pl.ds(2, 1), :]

    dim = q.shape[-1]
    hd = dim // num_heads
    scaling = 1.0 / math.sqrt(hd)
    valid = valid_ref[0]                                            # (1, L), 1 = keep
    neg_bias = (valid - 1.0) * 1e30                                 # 0 keep / -1e30 drop

    # Per-head loop (hd is tiny); each head's context goes straight through its
    # slice of W_out and is accumulated -> no 8-way lane-shuffle concatenate.
    acc = jnp.zeros((q.shape[0], dim), jnp.float32)
    for h in range(num_heads):
        lo = h * hd
        qh = (q[:, lo:lo + hd] * scaling).astype(bf16)              # (Q, hd)
        kh = k[:, lo:lo + hd].astype(bf16)                          # (L, hd)
        vh = v[:, lo:lo + hd].astype(bf16)                          # (L, hd)
        s = lax.dot_general(qh, kh, (((1,), (1,)), ((), ())),
                            preferred_element_type=jnp.float32)     # (Q, L)
        s = s + neg_bias
        s = s - jnp.max(s, axis=-1, keepdims=True)
        p = jnp.exp(s)
        p = p * pl.reciprocal(jnp.sum(p, axis=-1, keepdims=True), approx=True)
        ctx = jnp.dot(p.astype(bf16), vh,
                      preferred_element_type=jnp.float32)           # (Q, hd)
        acc = acc + jnp.dot(ctx.astype(bf16), wo_ref[pl.ds(lo, hd), :],
                            preferred_element_type=jnp.float32)     # (Q, dim)

    out = acc + bias_ref[pl.ds(3, 1), :] + vis_x                    # residual = raw vis_x
    out_ref[0] = out.astype(out_ref.dtype)


def _sinusoidal_pe(length, dim):
    pos = jnp.arange(length, dtype=jnp.float32)[:, None]
    div = jnp.exp(jnp.arange(0, dim, 2, dtype=jnp.float32) * (-math.log(10000.0) / dim))
    pe = jnp.zeros((length, dim), jnp.float32)
    pe = pe.at[:, 0::2].set(jnp.sin(pos * div))
    pe = pe.at[:, 1::2].set(jnp.cos(pos * div))
    return pe


def _conv3x3_to_matrix(w):
    """PyTorch (Cout, Cin, 3, 3) -> (9*Cin, Cout), rows ordered (tap, Cin)."""
    cout, cin = w.shape[0], w.shape[1]
    return jnp.transpose(w.reshape(cout, cin, 9), (2, 1, 0)).reshape(9 * cin, cout)


def _fold_bn(gamma, beta, mean, var, eps=1e-5):
    scale = gamma / jnp.sqrt(var + eps)
    return scale, beta - mean * scale


@functools.partial(jax.jit, static_argnames=("num_heads",))
def query_generation_forward(x, l, l_mask, params, *, num_heads=8):
    """Pallas forward of QueryGenerationModule. Returns (num_queries, B, dim)."""
    B, Cv, H, W = x.shape
    HW = H * W
    lang_dim, L = l.shape[1], l.shape[2]
    Q = params["proj2_w"].shape[0]
    dim = params["projq_w"].shape[0]
    assert dim % num_heads == 0
    f32, bf16 = jnp.float32, jnp.bfloat16

    # --- fold BatchNorm (inference mode) into conv weights / biases ---------------
    s1, b1 = _fold_bn(*params["bn1"])
    s2, b2 = _fold_bn(*params["bn2"])
    s3, b3 = _fold_bn(*params["bn3"])
    w1 = (_conv3x3_to_matrix(params["conv1_w"][:, :Cv]) * s1[None, :]).astype(bf16)
    w2 = (_conv3x3_to_matrix(params["conv2_w"]) * s2[None, :]).astype(bf16)
    w3 = (_conv3x3_to_matrix(params["conv3_w"]) * s3[None, :]).astype(bf16)
    bn_b23 = jnp.stack([b2, b3])                                 # (2, Cv) f32

    # --- conv1 contribution of the 6 constant coordinate channels (batch-free) ----
    yr = 2.0 * jnp.arange(H, dtype=f32) / (H - 1.0) - 1.0
    xr = 2.0 * jnp.arange(W, dtype=f32) / (W - 1.0) - 1.0
    cx = jnp.broadcast_to(xr[None, :], (H, W))
    cy = jnp.broadcast_to(yr[:, None], (H, W))
    coords = jnp.stack([cx, cx, cx, cy, cy, cy])[None]           # (1, 6, H, W)
    coord_conv = lax.conv_general_dilated(
        coords, params["conv1_w"][:, Cv:], (1, 1), "SAME",
        dimension_numbers=("NCHW", "OIHW", "NCHW"),
        precision=lax.Precision.HIGHEST)[0]                      # (Cv, H, W)
    c1_bias = (jnp.transpose(coord_conv.reshape(Cv, HW)) * s1[None, :]
               + b1[None, :])                                    # (HW, Cv) f32

    masks = _make_border_masks(H, W)                             # (HW, 8) f32

    # --- remaining weights, MXU-friendly (in, out) bf16 matrices -------------------
    wp2 = jnp.transpose(params["proj2_w"][:, :, 0, 0]).astype(bf16)   # (Cv, Q)
    wpq = jnp.transpose(params["projq_w"][:, :, 0]).astype(bf16)      # (HW, dim)
    wl = jnp.transpose(params["projl_w"][:, :, 0]).astype(bf16)       # (lang, dim)
    pe = _sinusoidal_pe(max(Q, L), dim)
    pe_q, pe_l = pe[:Q], pe[:L]
    ipw, ipb = params["in_proj_w"], params["in_proj_b"]
    wq_t = jnp.transpose(ipw[:dim]).astype(bf16)
    wk_t = jnp.transpose(ipw[dim:2 * dim]).astype(bf16)
    wv_t = jnp.transpose(ipw[2 * dim:]).astype(bf16)
    wo_t = jnp.transpose(params["out_proj_w"]).astype(bf16)
    biases = jnp.stack([ipb[:dim], ipb[dim:2 * dim], ipb[2 * dim:],
                        params["out_proj_b"]])                   # (4, dim) f32

    # --- token-major input views (tiny one-off transposes; keeps all in-kernel
    # --- matmuls lane-dense plain (M, K) x (K, N) products) ------------------------
    x_tm = jnp.transpose(x.reshape(B, Cv, HW), (0, 2, 1))        # (B, HW, Cv)
    l_tm = jnp.transpose(l, (0, 2, 1))                           # (B, L, lang)
    valid = l_mask.reshape(B, 1, L).astype(f32)

    kernel = functools.partial(_qgm_kernel, W=W, num_heads=num_heads)
    full2 = lambda a: pl.BlockSpec(a.shape, lambda b: (0, 0))

    out_bqd = pl.pallas_call(
        kernel,
        out_shape=jax.ShapeDtypeStruct((B, Q, dim), f32),
        grid_spec=pltpu.PrefetchScalarGridSpec(
            num_scalar_prefetch=0,
            grid=(B,),
            in_specs=[
                pl.BlockSpec((1, HW, Cv), lambda b: (b, 0, 0)),        # visual feats
                pl.BlockSpec((1, L, lang_dim), lambda b: (b, 0, 0)),   # language feats
                pl.BlockSpec((1, 1, L), lambda b: (b, 0, 0)),          # validity mask
                full2(c1_bias), full2(masks),
                full2(w1), full2(w2), full2(w3), full2(bn_b23),
                full2(wp2), full2(wpq), full2(wl),
                full2(pe_q), full2(pe_l),
                full2(wq_t), full2(wk_t), full2(wv_t), full2(wo_t), full2(biases),
            ],
            out_specs=pl.BlockSpec((1, Q, dim), lambda b: (b, 0, 0)),
            # Single persistent im2col slab shared by all three conv layers.
            scratch_shapes=[pltpu.VMEM((HW, 9 * Cv), f32)],
        ),
        compiler_params=pltpu.CompilerParams(
            dimension_semantics=("parallel",),
            # Explicit VMEM budget: well under v7x's 64 MiB physical VMEM while
            # leaving room above the 16/32 MiB scoped defaults at larger H*W.
            vmem_limit_bytes=48 * 1024 * 1024,
        ),
    )(x_tm, l_tm, valid, c1_bias, masks, w1, w2, w3, bn_b23,
      wp2, wpq, wl, pe_q, pe_l, wq_t, wk_t, wv_t, wo_t, biases)

    # Single tiny output permute back to the PyTorch (num_queries, B, dim) layout.
    return jnp.transpose(out_bqd, (1, 0, 2))


def _reference_forward(x, l, l_mask, params, *, num_heads=8):
    """Pure-JAX mirror of the PyTorch module (f32, HIGHEST precision) for checking."""
    hp = lax.Precision.HIGHEST
    B, Cv, H, W = x.shape
    Q = params["proj2_w"].shape[0]
    dim = params["projq_w"].shape[0]
    L = l.shape[2]

    yr = 2.0 * jnp.arange(H, dtype=jnp.float32) / (H - 1.0) - 1.0
    xr = 2.0 * jnp.arange(W, dtype=jnp.float32) / (W - 1.0) - 1.0
    cx = jnp.broadcast_to(jnp.broadcast_to(xr[None, :], (H, W))[None, None], (B, 1, H, W))
    cy = jnp.broadcast_to(jnp.broadcast_to(yr[:, None], (H, W))[None, None], (B, 1, H, W))
    z = jnp.concatenate([x, cx, cx, cx, cy, cy, cy], axis=1)

    def conv_bn_relu(inp, w, bn):
        gamma, beta, mean, var = bn
        out = lax.conv_general_dilated(
            inp, w, (1, 1), "SAME",
            dimension_numbers=("NCHW", "OIHW", "NCHW"), precision=hp)
        out = (out - mean[None, :, None, None]) * jax.lax.rsqrt(var + 1e-5)[None, :, None, None]
        out = out * gamma[None, :, None, None] + beta[None, :, None, None]
        return jax.nn.relu(out)

    a = conv_bn_relu(z, params["conv1_w"], params["bn1"])
    a = conv_bn_relu(a, params["conv2_w"], params["bn2"])
    a = conv_bn_relu(a, params["conv3_w"], params["bn3"])

    p2 = jnp.einsum("qc,bchw->bqhw", params["proj2_w"][:, :, 0, 0], a, precision=hp)
    p2 = p2.reshape(B, Q, H * W).transpose(0, 2, 1)                    # (B, HW, Q)
    vis = jax.nn.relu(jnp.einsum("dp,bpq->bdq", params["projq_w"][:, :, 0], p2,
                                 precision=hp))                         # (B, dim, Q)

    pe = _sinusoidal_pe(max(Q, L), dim)
    q_in = vis.transpose(2, 0, 1) + pe[:Q][:, None, :]                  # (Q, B, dim)
    lp = jax.nn.relu(jnp.einsum("dc,bct->bdt", params["projl_w"][:, :, 0], l,
                                precision=hp))
    kv_in = lp.transpose(2, 0, 1) + pe[:L][:, None, :]                  # (L, B, dim)

    E, nh = dim, num_heads
    hd = E // nh
    ipw, ipb = params["in_proj_w"], params["in_proj_b"]
    qp = jnp.einsum("qbe,fe->qbf", q_in, ipw[:E], precision=hp) + ipb[:E]
    kp = jnp.einsum("lbe,fe->lbf", kv_in, ipw[E:2 * E], precision=hp) + ipb[E:2 * E]
    vp = jnp.einsum("lbe,fe->lbf", kv_in, ipw[2 * E:], precision=hp) + ipb[2 * E:]
    qp = qp.reshape(Q, B, nh, hd)
    kp = kp.reshape(L, B, nh, hd)
    vp = vp.reshape(L, B, nh, hd)
    scores = jnp.einsum("qbhd,lbhd->bhql", qp, kp, precision=hp) / math.sqrt(hd)
    kpm = (1.0 - l_mask[:, 0, :]) > 0.5                                 # True = ignore
    scores = jnp.where(kpm[:, None, None, :], -jnp.inf, scores)
    attn = jax.nn.softmax(scores, axis=-1)
    ctx = jnp.einsum("bhql,lbhd->qbhd", attn, vp, precision=hp).reshape(Q, B, E)
    out = jnp.einsum("qbe,fe->qbf", ctx, params["out_proj_w"], precision=hp)
    out = out + params["out_proj_b"]
    return out + vis.transpose(2, 0, 1)


if __name__ == "__main__":
    visual_dim, dim, H, W = 32, 64, 8, 8
    lang_dim, num_queries, num_heads = 64, 16, 8
    B, L = 2, 16

    keys = iter(jax.random.split(jax.random.PRNGKey(0), 32))

    def rnd(shape, scale=1.0):
        return scale * jax.random.normal(next(keys), shape, jnp.float32)

    def bn_params(c):
        return (1.0 + 0.1 * jax.random.normal(next(keys), (c,), jnp.float32),   # gamma
                0.1 * jax.random.normal(next(keys), (c,), jnp.float32),          # beta
                0.1 * jax.random.normal(next(keys), (c,), jnp.float32),          # running mean
                jax.random.uniform(next(keys), (c,), jnp.float32, 0.5, 1.5))     # running var

    x = rnd((B, visual_dim, H, W))
    l = rnd((B, lang_dim, L))
    l_mask = jnp.ones((B, 1, L), jnp.float32).at[1, 0, 12:].set(0.0)   # pad batch 1 tail

    params = {
        "conv1_w": rnd((visual_dim, visual_dim + 6, 3, 3), (9 * (visual_dim + 6)) ** -0.5),
        "bn1": bn_params(visual_dim),
        "conv2_w": rnd((visual_dim, visual_dim, 3, 3), (9 * visual_dim) ** -0.5),
        "bn2": bn_params(visual_dim),
        "conv3_w": rnd((visual_dim, visual_dim, 3, 3), (9 * visual_dim) ** -0.5),
        "bn3": bn_params(visual_dim),
        "proj2_w": rnd((num_queries, visual_dim, 1, 1), visual_dim ** -0.5),
        "projq_w": rnd((dim, H * W, 1), (H * W) ** -0.5),
        "projl_w": rnd((dim, lang_dim, 1), lang_dim ** -0.5),
        "in_proj_w": rnd((3 * dim, dim), dim ** -0.5),
        "in_proj_b": rnd((3 * dim,), 0.05),
        "out_proj_w": rnd((dim, dim), dim ** -0.5),
        "out_proj_b": rnd((dim,), 0.05),
    }

    out = query_generation_forward(x, l, l_mask, params, num_heads=num_heads)
    out = jax.block_until_ready(out)

    ref = _reference_forward(x, l, l_mask, params, num_heads=num_heads)
    assert out.shape == (num_queries, B, dim), out.shape
    # bf16 MXU operands + approx reciprocal in the softmax -> compare against the
    # HIGHEST-precision f32 reference with a correspondingly relaxed tolerance.
    max_abs = float(jnp.max(jnp.abs(out - ref)))
    rel = float(jnp.linalg.norm(out - ref) / jnp.linalg.norm(ref))
    assert rel < 3e-2 and max_abs < 3e-1, (
        f"mismatch vs reference: rel_fro={rel:.4g}, max_abs={max_abs:.4g}")

    print("KERNEL_OK")
</pallas_src>

<mosaic_0001>
module attributes {stable_mosaic.version = 11 : i64} {
  func.func @_qgm_kernel(%arg0: i32, %arg1: memref<1x64x32xf32, #tpu.memory_space<vmem>>, %arg2: memref<1x16x64xf32, #tpu.memory_space<vmem>>, %arg3: memref<1x1x16xf32, #tpu.memory_space<vmem>>, %arg4: memref<64x32xf32, #tpu.memory_space<vmem>>, %arg5: memref<64x8xf32, #tpu.memory_space<vmem>>, %arg6: memref<288x32xbf16, #tpu.memory_space<vmem>>, %arg7: memref<288x32xbf16, #tpu.memory_space<vmem>>, %arg8: memref<288x32xbf16, #tpu.memory_space<vmem>>, %arg9: memref<2x32xf32, #tpu.memory_space<vmem>>, %arg10: memref<32x16xbf16, #tpu.memory_space<vmem>>, %arg11: memref<64x64xbf16, #tpu.memory_space<vmem>>, %arg12: memref<64x64xbf16, #tpu.memory_space<vmem>>, %arg13: memref<16x64xf32, #tpu.memory_space<vmem>>, %arg14: memref<16x64xf32, #tpu.memory_space<vmem>>, %arg15: memref<64x64xbf16, #tpu.memory_space<vmem>>, %arg16: memref<64x64xbf16, #tpu.memory_space<vmem>>, %arg17: memref<64x64xbf16, #tpu.memory_space<vmem>>, %arg18: memref<64x64xbf16, #tpu.memory_space<vmem>>, %arg19: memref<4x64xf32, #tpu.memory_space<vmem>>, %arg20: memref<1x16x64xf32, #tpu.memory_space<vmem>>, %arg21: memref<64x288xf32, #tpu.memory_space<vmem>>) attributes {dimension_semantics = [#tpu.dimension_semantics<parallel>], iteration_bounds = array<i64: 2>, scalar_prefetch = 0 : i64, scratch_operands = 1 : i64, tpu.core_type = #tpu.core_type<tc>, window_params = [{transform_indices = @transform_0, window_bounds = array<i64: 1, 64, 32>}, {transform_indices = @transform_1, window_bounds = array<i64: 1, 16, 64>}, {transform_indices = @transform_2, window_bounds = array<i64: 1, 1, 16>}, {pipeline_mode = #tpu.pipeline_mode<synchronous>, transform_indices = @transform_3, window_bounds = array<i64: 64, 32>}, {pipeline_mode = #tpu.pipeline_mode<synchronous>, transform_indices = @transform_4, window_bounds = array<i64: 64, 8>}, {pipeline_mode = #tpu.pipeline_mode<synchronous>, transform_indices = @transform_5, window_bounds = array<i64: 288, 32>}, {pipeline_mode = #tpu.pipeline_mode<synchronous>, transform_indices = @transform_6, window_bounds = array<i64: 288, 32>}, {pipeline_mode = #tpu.pipeline_mode<synchronous>, transform_indices = @transform_7, window_bounds = array<i64: 288, 32>}, {pipeline_mode = #tpu.pipeline_mode<synchronous>, transform_indices = @transform_8, window_bounds = array<i64: 2, 32>}, {pipeline_mode = #tpu.pipeline_mode<synchronous>, transform_indices = @transform_9, window_bounds = array<i64: 32, 16>}, {pipeline_mode = #tpu.pipeline_mode<synchronous>, transform_indices = @transform_10, window_bounds = array<i64: 64, 64>}, {pipeline_mode = #tpu.pipeline_mode<synchronous>, transform_indices = @transform_11, window_bounds = array<i64: 64, 64>}, {pipeline_mode = #tpu.pipeline_mode<synchronous>, transform_indices = @transform_12, window_bounds = array<i64: 16, 64>}, {pipeline_mode = #tpu.pipeline_mode<synchronous>, transform_indices = @transform_13, window_bounds = array<i64: 16, 64>}, {pipeline_mode = #tpu.pipeline_mode<synchronous>, transform_indices = @transform_14, window_bounds = array<i64: 64, 64>}, {pipeline_mode = #tpu.pipeline_mode<synchronous>, transform_indices = @transform_15, window_bounds = array<i64: 64, 64>}, {pipeline_mode = #tpu.pipeline_mode<synchronous>, transform_indices = @transform_16, window_bounds = array<i64: 64, 64>}, {pipeline_mode = #tpu.pipeline_mode<synchronous>, transform_indices = @transform_17, window_bounds = array<i64: 64, 64>}, {pipeline_mode = #tpu.pipeline_mode<synchronous>, transform_indices = @transform_18, window_bounds = array<i64: 4, 64>}, {transform_indices = @transform_19, window_bounds = array<i64: 1, 16, 64>}]} {
    %c0 = arith.constant 0 : index
    %c0_0 = arith.constant 0 : index
    %0 = vector.load %arg5[%c0, %c0_0] : memref<64x8xf32, #tpu.memory_space<vmem>>, vector<64x8xf32>
    %c0_1 = arith.constant 0 : index
    %c0_2 = arith.constant 0 : index
    %c0_3 = arith.constant 0 : index
    %1 = vector.load %arg1[%c0_1, %c0_2, %c0_3] : memref<1x64x32xf32, #tpu.memory_space<vmem>>, vector<1x64x32xf32>
    %2 = vector.shape_cast %1 : vector<1x64x32xf32> to vector<64x32xf32>
    %c0_4 = arith.constant 0 : index
    %c0_5 = arith.constant 0 : index
    %3 = vector.load %arg4[%c0_4, %c0_5] : memref<64x32xf32, #tpu.memory_space<vmem>>, vector<64x32xf32>
    %c9_i32 = arith.constant 9 : i32
    %4 = tpu.dynamic_rotate %2 by %c9_i32 dim 0 : vector<64x32xf32>, i32 -> vector<64x32xf32>
    %5 = vector.extract_strided_slice %0 {offsets = [0, 0], sizes = [64, 1], strides = [1, 1]} : vector<64x8xf32> to vector<64x1xf32>
    %6 = vector.broadcast %5 : vector<64x1xf32> to vector<64x32xf32>
    %7 = arith.mulf %4, %6 : vector<64x32xf32>
    %c0_6 = arith.constant 0 : index
    %c0_7 = arith.constant 0 : index
    %8 = vector.load %arg21[%c0_6, %c0_7] : memref<64x288xf32, #tpu.memory_space<vmem>>, vector<64x32xf32>
    tpu.vector_store %arg21[%c0_6, %c0_7], %7 {strides = array<i32>} : memref<64x288xf32, #tpu.memory_space<vmem>>, vector<64x32xf32>,
    %c8_i32 = arith.constant 8 : i32
    %9 = tpu.dynamic_rotate %2 by %c8_i32 dim 0 : vector<64x32xf32>, i32 -> vector<64x32xf32>
    %10 = vector.extract_strided_slice %0 {offsets = [0, 1], sizes = [64, 1], strides = [1, 1]} : vector<64x8xf32> to vector<64x1xf32>
    %11 = vector.broadcast %10 : vector<64x1xf32> to vector<64x32xf32>
    %12 = arith.mulf %9, %11 : vector<64x32xf32>
    %c0_8 = arith.constant 0 : index
    %c32 = arith.constant 32 : index
    %13 = vector.load %arg21[%c0_8, %c32] : memref<64x288xf32, #tpu.memory_space<vmem>>, vector<64x32xf32>
    tpu.vector_store %arg21[%c0_8, %c32], %12 {strides = array<i32>} : memref<64x288xf32, #tpu.memory_space<vmem>>, vector<64x32xf32>,
    %c7_i32 = arith.constant 7 : i32
    %14 = tpu.dynamic_rotate %2 by %c7_i32 dim 0 : vector<64x32xf32>, i32 -> vector<64x32xf32>
    %15 = vector.extract_strided_slice %0 {offsets = [0, 2], sizes = [64, 1], strides = [1, 1]} : vector<64x8xf32> to vector<64x1xf32>
    %16 = vector.broadcast %15 : vector<64x1xf32> to vector<64x32xf32>
    %17 = arith.mulf %14, %16 : vector<64x32xf32>
    %c0_9 = arith.constant 0 : index
    %c64 = arith.constant 64 : index
    %18 = vector.load %arg21[%c0_9, %c64] : memref<64x288xf32, #tpu.memory_space<vmem>>, vector<64x32xf32>
    tpu.vector_store %arg21[%c0_9, %c64], %17 {strides = array<i32>} : memref<64x288xf32, #tpu.memory_space<vmem>>, vector<64x32xf32>,
    %c1_i32 = arith.constant 1 : i32
    %19 = tpu.dynamic_rotate %2 by %c1_i32 dim 0 : vector<64x32xf32>, i32 -> vector<64x32xf32>
    %20 = vector.extract_strided_slice %0 {offsets = [0, 3], sizes = [64, 1], strides = [1, 1]} : vector<64x8xf32> to vector<64x1xf32>
    %21 = vector.broadcast %20 : vector<64x1xf32> to vector<64x32xf32>
    %22 = arith.mulf %19, %21 : vector<64x32xf32>
    %c0_10 = arith.constant 0 : index
    %c96 = arith.constant 96 : index
    %23 = vector.load %arg21[%c0_10, %c96] : memref<64x288xf32, #tpu.memory_space<vmem>>, vector<64x32xf32>
    tpu.vector_store %arg21[%c0_10, %c96], %22 {strides = array<i32>} : memref<64x288xf32, #tpu.memory_space<vmem>>, vector<64x32xf32>,
    %c0_11 = arith.constant 0 : index
    %c128 = arith.constant 128 : index
    %24 = vector.load %arg21[%c0_11, %c128] : memref<64x288xf32, #tpu.memory_space<vmem>>, vector<64x32xf32>
    tpu.vector_store %arg21[%c0_11, %c128], %2 {strides = array<i32>} : memref<64x288xf32, #tpu.memory_space<vmem>>, vector<64x32xf32>,
    %c63_i32 = arith.constant 63 : i32
    %25 = tpu.dynamic_rotate %2 by %c63_i32 dim 0 : vector<64x32xf32>, i32 -> vector<64x32xf32>
    %26 = vector.extract_strided_slice %0 {offsets = [0, 4], sizes = [64, 1], strides = [1, 1]} : vector<64x8xf32> to vector<64x1xf32>
    %27 = vector.broadcast %26 : vector<64x1xf32> to vector<64x32xf32>
    %28 = arith.mulf %25, %27 : vector<64x32xf32>
    %c0_12 = arith.constant 0 : index
    %c160 = arith.constant 160 : index
    %29 = vector.load %arg21[%c0_12, %c160] : memref<64x288xf32, #tpu.memory_space<vmem>>, vector<64x32xf32>
    tpu.vector_store %arg21[%c0_12, %c160], %28 {strides = array<i32>} : memref<64x288xf32, #tpu.memory_space<vmem>>, vector<64x32xf32>,
    %c57_i32 = arith.constant 57 : i32
    %30 = tpu.dynamic_rotate %2 by %c57_i32 dim 0 : vector<64x32xf32>, i32 -> vector<64x32xf32>
    %31 = vector.extract_strided_slice %0 {offsets = [0, 5], sizes = [64, 1], strides = [1, 1]} : vector<64x8xf32> to vector<64x1xf32>
    %32 = vector.broadcast %31 : vector<64x1xf32> to vector<64x32xf32>
    %33 = arith.mulf %30, %32 : vector<64x32xf32>
    %c0_13 = arith.constant 0 : index
    %c192 = arith.constant 192 : index
    %34 = vector.load %arg21[%c0_13, %c192] : memref<64x288xf32, #tpu.memory_space<vmem>>, vector<64x32xf32>
    tpu.vector_store %arg21[%c0_13, %c192], %33 {strides = array<i32>} : memref<64x288xf32, #tpu.memory_space<vmem>>, vector<64x32xf32>,
    %c56_i32 = arith.constant 56 : i32
    %35 = tpu.dynamic_rotate %2 by %c56_i32 dim 0 : vector<64x32xf32>, i32 -> vector<64x32xf32>
    %36 = vector.extract_strided_slice %0 {offsets = [0, 6], sizes = [64, 1], strides = [1, 1]} : vector<64x8xf32> to vector<64x1xf32>
    %37 = vector.broadcast %36 : vector<64x1xf32> to vector<64x32xf32>
    %38 = arith.mulf %35, %37 : vector<64x32xf32>
    %c0_14 = arith.constant 0 : index
    %c224 = arith.constant 224 : index
    %39 = vector.load %arg21[%c0_14, %c224] : memref<64x288xf32, #tpu.memory_space<vmem>>, vector<64x32xf32>
    tpu.vector_store %arg21[%c0_14, %c224], %38 {strides = array<i32>} : memref<64x288xf32, #tpu.memory_space<vmem>>, vector<64x32xf32>,
    %c55_i32 = arith.constant 55 : i32
    %40 = tpu.dynamic_rotate %2 by %c55_i32 dim 0 : vector<64x32xf32>, i32 -> vector<64x32xf32>
    %41 = vector.extract_strided_slice %0 {offsets = [0, 7], sizes = [64, 1], strides = [1, 1]} : vector<64x8xf32> to vector<64x1xf32>
    %42 = vector.broadcast %41 : vector<64x1xf32> to vector<64x32xf32>
    %43 = arith.mulf %40, %42 : vector<64x32xf32>
    %c0_15 = arith.constant 0 : index
    %c256 = arith.constant 256 : index
    %44 = vector.load %arg21[%c0_15, %c256] : memref<64x288xf32, #tpu.memory_space<vmem>>, vector<64x32xf32>
    tpu.vector_store %arg21[%c0_15, %c256], %43 {strides = array<i32>} : memref<64x288xf32, #tpu.memory_space<vmem>>, vector<64x32xf32>,
    %c0_16 = arith.constant 0 : index
    %c0_17 = arith.constant 0 : index
    %45 = vector.load %arg21[%c0_16, %c0_17] : memref<64x288xf32, #tpu.memory_space<vmem>>, vector<64x288xf32>
    %46 = arith.truncf %45 : vector<64x288xf32> to vector<64x288xbf16>
    %c0_18 = arith.constant 0 : index
    %c0_19 = arith.constant 0 : index
    %47 = vector.load %arg6[%c0_18, %c0_19] : memref<288x32xbf16, #tpu.memory_space<vmem>>, vector<288x32xbf16>
    %cst = arith.constant dense<0.000000e+00> : vector<64x32xf32>
    %48 = tpu.matmul %46, %47, %cst {dimension_numbers = #tpu.dot_dimension_numbers<[1], [0], [0], [1], [0, 0, 1, 1], [], []>} : vector<64x288xbf16>, vector<288x32xbf16>, vector<64x32xf32> -> vector<64x32xf32>
    %49 = arith.addf %48, %3 : vector<64x32xf32>
    %cst_20 = arith.constant 0.000000e+00 : f32
    %50 = vector.broadcast %cst_20 : f32 to vector<64x32xf32>
    %51 = arith.maximumf %49, %50 : vector<64x32xf32>
    %c0_21 = arith.constant 0 : index
    %c0_22 = arith.constant 0 : index
    %52 = vector.load %arg9[%c0_21, %c0_22] : memref<2x32xf32, #tpu.memory_space<vmem>>, vector<1x32xf32>
    %c9_i32_23 = arith.constant 9 : i32
    %53 = tpu.dynamic_rotate %51 by %c9_i32_23 dim 0 : vector<64x32xf32>, i32 -> vector<64x32xf32>
    %54 = vector.extract_strided_slice %0 {offsets = [0, 0], sizes = [64, 1], strides = [1, 1]} : vector<64x8xf32> to vector<64x1xf32>
    %55 = vector.broadcast %54 : vector<64x1xf32> to vector<64x32xf32>
    %56 = arith.mulf %53, %55 : vector<64x32xf32>
    %c0_24 = arith.constant 0 : index
    %c0_25 = arith.constant 0 : index
    %57 = vector.load %arg21[%c0_24, %c0_25] : memref<64x288xf32, #tpu.memory_space<vmem>>, vector<64x32xf32>
    tpu.vector_store %arg21[%c0_24, %c0_25], %56 {strides = array<i32>} : memref<64x288xf32, #tpu.memory_space<vmem>>, vector<64x32xf32>,
    %c8_i32_26 = arith.constant 8 : i32
    %58 = tpu.dynamic_rotate %51 by %c8_i32_26 dim 0 : vector<64x32xf32>, i32 -> vector<64x32xf32>
    %59 = vector.extract_strided_slice %0 {offsets = [0, 1], sizes = [64, 1], strides = [1, 1]} : vector<64x8xf32> to vector<64x1xf32>
    %60 = vector.broadcast %59 : vector<64x1xf32> to vector<64x32xf32>
    %61 = arith.mulf %58, %60 : vector<64x32xf32>
    %c0_27 = arith.constant 0 : index
    %c32_28 = arith.constant 32 : index
    %62 = vector.load %arg21[%c0_27, %c32_28] : memref<64x288xf32, #tpu.memory_space<vmem>>, vector<64x32xf32>
    tpu.vector_store %arg21[%c0_27, %c32_28], %61 {strides = array<i32>} : memref<64x288xf32, #tpu.memory_space<vmem>>, vector<64x32xf32>,
    %c7_i32_29 = arith.constant 7 : i32
    %63 = tpu.dynamic_rotate %51 by %c7_i32_29 dim 0 : vector<64x32xf32>, i32 -> vector<64x32xf32>
    %64 = vector.extract_strided_slice %0 {offsets = [0, 2], sizes = [64, 1], strides = [1, 1]} : vector<64x8xf32> to vector<64x1xf32>
    %65 = vector.broadcast %64 : vector<64x1xf32> to vector<64x32xf32>
    %66 = arith.mulf %63, %65 : vector<64x32xf32>
    %c0_30 = arith.constant 0 : index
    %c64_31 = arith.constant 64 : index
    %67 = vector.load %arg21[%c0_30, %c64_31] : memref<64x288xf32, #tpu.memory_space<vmem>>, vector<64x32xf32>
    tpu.vector_store %arg21[%c0_30, %c64_31], %66 {strides = array<i32>} : memref<64x288xf32, #tpu.memory_space<vmem>>, vector<64x32xf32>,
    %c1_i32_32 = arith.constant 1 : i32
    %68 = tpu.dynamic_rotate %51 by %c1_i32_32 dim 0 : vector<64x32xf32>, i32 -> vector<64x32xf32>
    %69 = vector.extract_strided_slice %0 {offsets = [0, 3], sizes = [64, 1], strides = [1, 1]} : vector<64x8xf32> to vector<64x1xf32>
    %70 = vector.broadcast %69 : vector<64x1xf32> to vector<64x32xf32>
    %71 = arith.mulf %68, %70 : vector<64x32xf32>
    %c0_33 = arith.constant 0 : index
    %c96_34 = arith.constant 96 : index
    %72 = vector.load %arg21[%c0_33, %c96_34] : memref<64x288xf32, #tpu.memory_space<vmem>>, vector<64x32xf32>
    tpu.vector_store %arg21[%c0_33, %c96_34], %71 {strides = array<i32>} : memref<64x288xf32, #tpu.memory_space<vmem>>, vector<64x32xf32>,
    %c0_35 = arith.constant 0 : index
    %c128_36 = arith.constant 128 : index
    %73 = vector.load %arg21[%c0_35, %c128_36] : memref<64x288xf32, #tpu.memory_space<vmem>>, vector<64x32xf32>
    tpu.vector_store %arg21[%c0_35, %c128_36], %51 {strides = array<i32>} : memref<64x288xf32, #tpu.memory_space<vmem>>, vector<64x32xf32>,
    %c63_i32_37 = arith.constant 63 : i32
    %74 = tpu.dynamic_rotate %51 by %c63_i32_37 dim 0 : vector<64x32xf32>, i32 -> vector<64x32xf32>
    %75 = vector.extract_strided_slice %0 {offsets = [0, 4], sizes = [64, 1], strides = [1, 1]} : vector<64x8xf32> to vector<64x1xf32>
    %76 = vector.broadcast %75 : vector<64x1xf32> to vector<64x32xf32>
    %77 = arith.mulf %74, %76 : vector<64x32xf32>
    %c0_38 = arith.constant 0 : index
    %c160_39 = arith.constant 160 : index
    %78 = vector.load %arg21[%c0_38, %c160_39] : memref<64x288xf32, #tpu.memory_space<vmem>>, vector<64x32xf32>
    tpu.vector_store %arg21[%c0_38, %c160_39], %77 {strides = array<i32>} : memref<64x288xf32, #tpu.memory_space<vmem>>, vector<64x32xf32>,
    %c57_i32_40 = arith.constant 57 : i32
    %79 = tpu.dynamic_rotate %51 by %c57_i32_40 dim 0 : vector<64x32xf32>, i32 -> vector<64x32xf32>
    %80 = vector.extract_strided_slice %0 {offsets = [0, 5], sizes = [64, 1], strides = [1, 1]} : vector<64x8xf32> to vector<64x1xf32>
    %81 = vector.broadcast %80 : vector<64x1xf32> to vector<64x32xf32>
    %82 = arith.mulf %79, %81 : vector<64x32xf32>
    %c0_41 = arith.constant 0 : index
    %c192_42 = arith.constant 192 : index
    %83 = vector.load %arg21[%c0_41, %c192_42] : memref<64x288xf32, #tpu.memory_space<vmem>>, vector<64x32xf32>
    tpu.vector_store %arg21[%c0_41, %c192_42], %82 {strides = array<i32>} : memref<64x288xf32, #tpu.memory_space<vmem>>, vector<64x32xf32>,
    %c56_i32_43 = arith.constant 56 : i32
    %84 = tpu.dynamic_rotate %51 by %c56_i32_43 dim 0 : vector<64x32xf32>, i32 -> vector<64x32xf32>
    %85 = vector.extract_strided_slice %0 {offsets = [0, 6], sizes = [64, 1], strides = [1, 1]} : vector<64x8xf32> to vector<64x1xf32>
    %86 = vector.broadcast %85 : vector<64x1xf32> to vector<64x32xf32>
    %87 = arith.mulf %84, %86 : vector<64x32xf32>
    %c0_44 = arith.constant 0 : index
    %c224_45 = arith.constant 224 : index
    %88 = vector.load %arg21[%c0_44, %c224_45] : memref<64x288xf32, #tpu.memory_space<vmem>>, vector<64x32xf32>
    tpu.vector_store %arg21[%c0_44, %c224_45], %87 {strides = array<i32>} : memref<64x288xf32, #tpu.memory_space<vmem>>, vector<64x32xf32>,
    %c55_i32_46 = arith.constant 55 : i32
    %89 = tpu.dynamic_rotate %51 by %c55_i32_46 dim 0 : vector<64x32xf32>, i32 -> vector<64x32xf32>
    %90 = vector.extract_strided_slice %0 {offsets = [0, 7], sizes = [64, 1], strides = [1, 1]} : vector<64x8xf32> to vector<64x1xf32>
    %91 = vector.broadcast %90 : vector<64x1xf32> to vector<64x32xf32>
    %92 = arith.mulf %89, %91 : vector<64x32xf32>
    %c0_47 = arith.constant 0 : index
    %c256_48 = arith.constant 256 : index
    %93 = vector.load %arg21[%c0_47, %c256_48] : memref<64x288xf32, #tpu.memory_space<vmem>>, vector<64x32xf32>
    tpu.vector_store %arg21[%c0_47, %c256_48], %92 {strides = array<i32>} : memref<64x288xf32, #tpu.memory_space<vmem>>, vector<64x32xf32>,
    %c0_49 = arith.constant 0 : index
    %c0_50 = arith.constant 0 : index
    %94 = vector.load %arg21[%c0_49, %c0_50] : memref<64x288xf32, #tpu.memory_space<vmem>>, vector<64x288xf32>
    %95 = arith.truncf %94 : vector<64x288xf32> to vector<64x288xbf16>
    %c0_51 = arith.constant 0 : index
    %c0_52 = arith.constant 0 : index
    %96 = vector.load %arg7[%c0_51, %c0_52] : memref<288x32xbf16, #tpu.memory_space<vmem>>, vector<288x32xbf16>
    %cst_53 = arith.constant dense<0.000000e+00> : vector<64x32xf32>
    %97 = tpu.matmul %95, %96, %cst_53 {dimension_numbers = #tpu.dot_dimension_numbers<[1], [0], [0], [1], [0, 0, 1, 1], [], []>} : vector<64x288xbf16>, vector<288x32xbf16>, vector<64x32xf32> -> vector<64x32xf32>
    %98 = vector.broadcast %52 : vector<1x32xf32> to vector<64x32xf32>
    %99 = arith.addf %97, %98 : vector<64x32xf32>
    %cst_54 = arith.constant 0.000000e+00 : f32
    %100 = vector.broadcast %cst_54 : f32 to vector<64x32xf32>
    %101 = arith.maximumf %99, %100 : vector<64x32xf32>
    %c1 = arith.constant 1 : index
    %c0_55 = arith.constant 0 : index
    %102 = vector.load %arg9[%c1, %c0_55] : memref<2x32xf32, #tpu.memory_space<vmem>>, vector<1x32xf32>
    %c9_i32_56 = arith.constant 9 : i32
    %103 = tpu.dynamic_rotate %101 by %c9_i32_56 dim 0 : vector<64x32xf32>, i32 -> vector<64x32xf32>
    %104 = vector.extract_strided_slice %0 {offsets = [0, 0], sizes = [64, 1], strides = [1, 1]} : vector<64x8xf32> to vector<64x1xf32>
    %105 = vector.broadcast %104 : vector<64x1xf32> to vector<64x32xf32>
    %106 = arith.mulf %103, %105 : vector<64x32xf32>
    %c0_57 = arith.constant 0 : index
    %c0_58 = arith.constant 0 : index
    %107 = vector.load %arg21[%c0_57, %c0_58] : memref<64x288xf32, #tpu.memory_space<vmem>>, vector<64x32xf32>
    tpu.vector_store %arg21[%c0_57, %c0_58], %106 {strides = array<i32>} : memref<64x288xf32, #tpu.memory_space<vmem>>, vector<64x32xf32>,
    %c8_i32_59 = arith.constant 8 : i32
    %108 = tpu.dynamic_rotate %101 by %c8_i32_59 dim 0 : vector<64x32xf32>, i32 -> vector<64x32xf32>
    %109 = vector.extract_strided_slice %0 {offsets = [0, 1], sizes = [64, 1], strides = [1, 1]} : vector<64x8xf32> to vector<64x1xf32>
    %110 = vector.broadcast %109 : vector<64x1xf32> to vector<64x32xf32>
    %111 = arith.mulf %108, %110 : vector<64x32xf32>
    %c0_60 = arith.constant 0 : index
    %c32_61 = arith.constant 32 : index
    %112 = vector.load %arg21[%c0_60, %c32_61] : memref<64x288xf32, #tpu.memory_space<vmem>>, vector<64x32xf32>
    tpu.vector_store %arg21[%c0_60, %c32_61], %111 {strides = array<i32>} : memref<64x288xf32, #tpu.memory_space<vmem>>, vector<64x32xf32>,
    %c7_i32_62 = arith.constant 7 : i32
    %113 = tpu.dynamic_rotate %101 by %c7_i32_62 dim 0 : vector<64x32xf32>, i32 -> vector<64x32xf32>
    %114 = vector.extract_strided_slice %0 {offsets = [0, 2], sizes = [64, 1], strides = [1, 1]} : vector<64x8xf32> to vector<64x1xf32>
    %115 = vector.broadcast %114 : vector<64x1xf32> to vector<64x32xf32>
    %116 = arith.mulf %113, %115 : vector<64x32xf32>
    %c0_63 = arith.constant 0 : index
    %c64_64 = arith.constant 64 : index
    %117 = vector.load %arg21[%c0_63, %c64_64] : memref<64x288xf32, #tpu.memory_space<vmem>>, vector<64x32xf32>
    tpu.vector_store %arg21[%c0_63, %c64_64], %116 {strides = array<i32>} : memref<64x288xf32, #tpu.memory_space<vmem>>, vector<64x32xf32>,
    %c1_i32_65 = arith.constant 1 : i32
    %118 = tpu.dynamic_rotate %101 by %c1_i32_65 dim 0 : vector<64x32xf32>, i32 -> vector<64x32xf32>
    %119 = vector.extract_strided_slice %0 {offsets = [0, 3], sizes = [64, 1], strides = [1, 1]} : vector<64x8xf32> to vector<64x1xf32>
    %120 = vector.broadcast %119 : vector<64x1xf32> to vector<64x32xf32>
    %121 = arith.mulf %118, %120 : vector<64x32xf32>
    %c0_66 = arith.constant 0 : index
    %c96_67 = arith.constant 96 : index
    %122 = vector.load %arg21[%c0_66, %c96_67] : memref<64x288xf32, #tpu.memory_space<vmem>>, vector<64x32xf32>
    tpu.vector_store %arg21[%c0_66, %c96_67], %121 {strides = array<i32>} : memref<64x288xf32, #tpu.memory_space<vmem>>, vector<64x32xf32>,
    %c0_68 = arith.constant 0 : index
    %c128_69 = arith.constant 128 : index
    %123 = vector.load %arg21[%c0_68, %c128_69] : memref<64x288xf32, #tpu.memory_space<vmem>>, vector<64x32xf32>
    tpu.vector_store %arg21[%c0_68, %c128_69], %101 {strides = array<i32>} : memref<64x288xf32, #tpu.memory_space<vmem>>, vector<64x32xf32>,
    %c63_i32_70 = arith.constant 63 : i32
    %124 = tpu.dynamic_rotate %101 by %c63_i32_70 dim 0 : vector<64x32xf32>, i32 -> vector<64x32xf32>
    %125 = vector.extract_strided_slice %0 {offsets = [0, 4], sizes = [64, 1], strides = [1, 1]} : vector<64x8xf32> to vector<64x1xf32>
    %126 = vector.broadcast %125 : vector<64x1xf32> to vector<64x32xf32>
    %127 = arith.mulf %124, %126 : vector<64x32xf32>
    %c0_71 = arith.constant 0 : index
    %c160_72 = arith.constant 160 : index
    %128 = vector.load %arg21[%c0_71, %c160_72] : memref<64x288xf32, #tpu.memory_space<vmem>>, vector<64x32xf32>
    tpu.vector_store %arg21[%c0_71, %c160_72], %127 {strides = array<i32>} : memref<64x288xf32, #tpu.memory_space<vmem>>, vector<64x32xf32>,
    %c57_i32_73 = arith.constant 57 : i32
    %129 = tpu.dynamic_rotate %101 by %c57_i32_73 dim 0 : vector<64x32xf32>, i32 -> vector<64x32xf32>
    %130 = vector.extract_strided_slice %0 {offsets = [0, 5], sizes = [64, 1], strides = [1, 1]} : vector<64x8xf32> to vector<64x1xf32>
    %131 = vector.broadcast %130 : vector<64x1xf32> to vector<64x32xf32>
    %132 = arith.mulf %129, %131 : vector<64x32xf32>
    %c0_74 = arith.constant 0 : index
    %c192_75 = arith.constant 192 : index
    %133 = vector.load %arg21[%c0_74, %c192_75] : memref<64x288xf32, #tpu.memory_space<vmem>>, vector<64x32xf32>
    tpu.vector_store %arg21[%c0_74, %c192_75], %132 {strides = array<i32>} : memref<64x288xf32, #tpu.memory_space<vmem>>, vector<64x32xf32>,
    %c56_i32_76 = arith.constant 56 : i32
    %134 = tpu.dynamic_rotate %101 by %c56_i32_76 dim 0 : vector<64x32xf32>, i32 -> vector<64x32xf32>
    %135 = vector.extract_strided_slice %0 {offsets = [0, 6], sizes = [64, 1], strides = [1, 1]} : vector<64x8xf32> to vector<64x1xf32>
    %136 = vector.broadcast %135 : vector<64x1xf32> to vector<64x32xf32>
    %137 = arith.mulf %134, %136 : vector<64x32xf32>
    %c0_77 = arith.constant 0 : index
    %c224_78 = arith.constant 224 : index
    %138 = vector.load %arg21[%c0_77, %c224_78] : memref<64x288xf32, #tpu.memory_space<vmem>>, vector<64x32xf32>
    tpu.vector_store %arg21[%c0_77, %c224_78], %137 {strides = array<i32>} : memref<64x288xf32, #tpu.memory_space<vmem>>, vector<64x32xf32>,
    %c55_i32_79 = arith.constant 55 : i32
    %139 = tpu.dynamic_rotate %101 by %c55_i32_79 dim 0 : vector<64x32xf32>, i32 -> vector<64x32xf32>
    %140 = vector.extract_strided_slice %0 {offsets = [0, 7], sizes = [64, 1], strides = [1, 1]} : vector<64x8xf32> to vector<64x1xf32>
    %141 = vector.broadcast %140 : vector<64x1xf32> to vector<64x32xf32>
    %142 = arith.mulf %139, %141 : vector<64x32xf32>
    %c0_80 = arith.constant 0 : index
    %c256_81 = arith.constant 256 : index
    %143 = vector.load %arg21[%c0_80, %c256_81] : memref<64x288xf32, #tpu.memory_space<vmem>>, vector<64x32xf32>
    tpu.vector_store %arg21[%c0_80, %c256_81], %142 {strides = array<i32>} : memref<64x288xf32, #tpu.memory_space<vmem>>, vector<64x32xf32>,
    %c0_82 = arith.constant 0 : index
    %c0_83 = arith.constant 0 : index
    %144 = vector.load %arg21[%c0_82, %c0_83] : memref<64x288xf32, #tpu.memory_space<vmem>>, vector<64x288xf32>
    %145 = arith.truncf %144 : vector<64x288xf32> to vector<64x288xbf16>
    %c0_84 = arith.constant 0 : index
    %c0_85 = arith.constant 0 : index
    %146 = vector.load %arg8[%c0_84, %c0_85] : memref<288x32xbf16, #tpu.memory_space<vmem>>, vector<288x32xbf16>
    %cst_86 = arith.constant dense<0.000000e+00> : vector<64x32xf32>
    %147 = tpu.matmul %145, %146, %cst_86 {dimension_numbers = #tpu.dot_dimension_numbers<[1], [0], [0], [1], [0, 0, 1, 1], [], []>} : vector<64x288xbf16>, vector<288x32xbf16>, vector<64x32xf32> -> vector<64x32xf32>
    %148 = vector.broadcast %102 : vector<1x32xf32> to vector<64x32xf32>
    %149 = arith.addf %147, %148 : vector<64x32xf32>
    %cst_87 = arith.constant 0.000000e+00 : f32
    %150 = vector.broadcast %cst_87 : f32 to vector<64x32xf32>
    %151 = arith.maximumf %149, %150 : vector<64x32xf32>
    %152 = arith.truncf %151 : vector<64x32xf32> to vector<64x32xbf16>
    %c0_88 = arith.constant 0 : index
    %c0_89 = arith.constant 0 : index
    %153 = vector.load %arg10[%c0_88, %c0_89] : memref<32x16xbf16, #tpu.memory_space<vmem>>, vector<32x16xbf16>
    %cst_90 = arith.constant dense<0.000000e+00> : vector<64x16xf32>
    %154 = tpu.matmul %152, %153, %cst_90 {dimension_numbers = #tpu.dot_dimension_numbers<[1], [0], [0], [1], [0, 0, 1, 1], [], []>} : vector<64x32xbf16>, vector<32x16xbf16>, vector<64x16xf32> -> vector<64x16xf32>
    %155 = arith.truncf %154 : vector<64x16xf32> to vector<64x16xbf16>
    %c0_91 = arith.constant 0 : index
    %c0_92 = arith.constant 0 : index
    %156 = vector.load %arg11[%c0_91, %c0_92] : memref<64x64xbf16, #tpu.memory_space<vmem>>, vector<64x64xbf16>
    %cst_93 = arith.constant dense<0.000000e+00> : vector<16x64xf32>
    %157 = tpu.matmul %155, %156, %cst_93 {dimension_numbers = #tpu.dot_dimension_numbers<[0], [0], [1], [1], [0, 1, 1, 1], [], []>} : vector<64x16xbf16>, vector<64x64xbf16>, vector<16x64xf32> -> vector<16x64xf32>
    %cst_94 = arith.constant 0.000000e+00 : f32
    %158 = vector.broadcast %cst_94 : f32 to vector<16x64xf32>
    %159 = arith.maximumf %157, %158 : vector<16x64xf32>
    %c0_95 = arith.constant 0 : index
    %c0_96 = arith.constant 0 : index
    %c0_97 = arith.constant 0 : index
    %160 = vector.load %arg2[%c0_95, %c0_96, %c0_97] : memref<1x16x64xf32, #tpu.memory_space<vmem>>, vector<1x16x64xf32>
    %161 = vector.shape_cast %160 : vector<1x16x64xf32> to vector<16x64xf32>
    %162 = arith.truncf %161 : vector<16x64xf32> to vector<16x64xbf16>
    %c0_98 = arith.constant 0 : index
    %c0_99 = arith.constant 0 : index
    %163 = vector.load %arg12[%c0_98, %c0_99] : memref<64x64xbf16, #tpu.memory_space<vmem>>, vector<64x64xbf16>
    %cst_100 = arith.constant dense<0.000000e+00> : vector<16x64xf32>
    %164 = tpu.matmul %162, %163, %cst_100 {dimension_numbers = #tpu.dot_dimension_numbers<[1], [0], [0], [1], [0, 0, 1, 1], [], []>} : vector<16x64xbf16>, vector<64x64xbf16>, vector<16x64xf32> -> vector<16x64xf32>
    %cst_101 = arith.constant 0.000000e+00 : f32
    %165 = vector.broadcast %cst_101 : f32 to vector<16x64xf32>
    %166 = arith.maximumf %164, %165 : vector<16x64xf32>
    %c0_102 = arith.constant 0 : index
    %c0_103 = arith.constant 0 : index
    %167 = vector.load %arg13[%c0_102, %c0_103] : memref<16x64xf32, #tpu.memory_space<vmem>>, vector<16x64xf32>
    %168 = arith.addf %159, %167 : vector<16x64xf32>
    %169 = arith.truncf %168 : vector<16x64xf32> to vector<16x64xbf16>
    %c0_104 = arith.constant 0 : index
    %c0_105 = arith.constant 0 : index
    %170 = vector.load %arg14[%c0_104, %c0_105] : memref<16x64xf32, #tpu.memory_space<vmem>>, vector<16x64xf32>
    %171 = arith.addf %166, %170 : vector<16x64xf32>
    %172 = arith.truncf %171 : vector<16x64xf32> to vector<16x64xbf16>
    %c0_106 = arith.constant 0 : index
    %c0_107 = arith.constant 0 : index
    %173 = vector.load %arg15[%c0_106, %c0_107] : memref<64x64xbf16, #tpu.memory_space<vmem>>, vector<64x64xbf16>
    %cst_108 = arith.constant dense<0.000000e+00> : vector<16x64xf32>
    %174 = tpu.matmul %169, %173, %cst_108 {dimension_numbers = #tpu.dot_dimension_numbers<[1], [0], [0], [1], [0, 0, 1, 1], [], []>} : vector<16x64xbf16>, vector<64x64xbf16>, vector<16x64xf32> -> vector<16x64xf32>
    %c0_109 = arith.constant 0 : index
    %c0_110 = arith.constant 0 : index
    %175 = vector.load %arg19[%c0_109, %c0_110] : memref<4x64xf32, #tpu.memory_space<vmem>>, vector<1x64xf32>
    %176 = vector.broadcast %175 : vector<1x64xf32> to vector<16x64xf32>
    %177 = arith.addf %174, %176 : vector<16x64xf32>
    %c0_111 = arith.constant 0 : index
    %c0_112 = arith.constant 0 : index
    %178 = vector.load %arg16[%c0_111, %c0_112] : memref<64x64xbf16, #tpu.memory_space<vmem>>, vector<64x64xbf16>
    %cst_113 = arith.constant dense<0.000000e+00> : vector<16x64xf32>
    %179 = tpu.matmul %172, %178, %cst_113 {dimension_numbers = #tpu.dot_dimension_numbers<[1], [0], [0], [1], [0, 0, 1, 1], [], []>} : vector<16x64xbf16>, vector<64x64xbf16>, vector<16x64xf32> -> vector<16x64xf32>
    %c1_114 = arith.constant 1 : index
    %c0_115 = arith.constant 0 : index
    %180 = vector.load %arg19[%c1_114, %c0_115] : memref<4x64xf32, #tpu.memory_space<vmem>>, vector<1x64xf32>
    %181 = vector.broadcast %180 : vector<1x64xf32> to vector<16x64xf32>
    %182 = arith.addf %179, %181 : vector<16x64xf32>
    %c0_116 = arith.constant 0 : index
    %c0_117 = arith.constant 0 : index
    %183 = vector.load %arg17[%c0_116, %c0_117] : memref<64x64xbf16, #tpu.memory_space<vmem>>, vector<64x64xbf16>
    %cst_118 = arith.constant dense<0.000000e+00> : vector<16x64xf32>
    %184 = tpu.matmul %172, %183, %cst_118 {dimension_numbers = #tpu.dot_dimension_numbers<[1], [0], [0], [1], [0, 0, 1, 1], [], []>} : vector<16x64xbf16>, vector<64x64xbf16>, vector<16x64xf32> -> vector<16x64xf32>
    %c2 = arith.constant 2 : index
    %c0_119 = arith.constant 0 : index
    %185 = vector.load %arg19[%c2, %c0_119] : memref<4x64xf32, #tpu.memory_space<vmem>>, vector<1x64xf32>
    %186 = vector.broadcast %185 : vector<1x64xf32> to vector<16x64xf32>
    %187 = arith.addf %184, %186 : vector<16x64xf32>
    %c0_120 = arith.constant 0 : index
    %c0_121 = arith.constant 0 : index
    %c0_122 = arith.constant 0 : index
    %188 = vector.load %arg3[%c0_120, %c0_121, %c0_122] : memref<1x1x16xf32, #tpu.memory_space<vmem>>, vector<1x1x16xf32>
    %189 = vector.shape_cast %188 : vector<1x1x16xf32> to vector<1x16xf32>
    %cst_123 = arith.constant 1.000000e+00 : f32
    %190 = vector.broadcast %cst_123 : f32 to vector<1x16xf32>
    %191 = arith.subf %189, %190 : vector<1x16xf32>
    %cst_124 = arith.constant 1.000000e+30 : f32
    %192 = vector.broadcast %cst_124 : f32 to vector<1x16xf32>
    %193 = arith.mulf %191, %192 : vector<1x16xf32>
    %cst_125 = arith.constant 0.000000e+00 : f32
    %194 = vector.broadcast %cst_125 : f32 to vector<16x64xf32>
    %195 = vector.extract_strided_slice %177 {offsets = [0, 0], sizes = [16, 8], strides = [1, 1]} : vector<16x64xf32> to vector<16x8xf32>
    %cst_126 = arith.constant 0.353553385 : f32
    %196 = vector.broadcast %cst_126 : f32 to vector<16x8xf32>
    %197 = arith.mulf %195, %196 : vector<16x8xf32>
    %198 = arith.truncf %197 : vector<16x8xf32> to vector<16x8xbf16>
    %199 = vector.extract_strided_slice %182 {offsets = [0, 0], sizes = [16, 8], strides = [1, 1]} : vector<16x64xf32> to vector<16x8xf32>
    %200 = arith.truncf %199 : vector<16x8xf32> to vector<16x8xbf16>
    %201 = vector.extract_strided_slice %187 {offsets = [0, 0], sizes = [16, 8], strides = [1, 1]} : vector<16x64xf32> to vector<16x8xf32>
    %202 = arith.truncf %201 : vector<16x8xf32> to vector<16x8xbf16>
    %cst_127 = arith.constant dense<0.000000e+00> : vector<16x16xf32>
    %203 = tpu.matmul %198, %200, %cst_127 {dimension_numbers = #tpu.dot_dimension_numbers<[1], [1], [0], [0], [0, 0, 1, 0], [], []>} : vector<16x8xbf16>, vector<16x8xbf16>, vector<16x16xf32> -> vector<16x16xf32>
    %204 = vector.broadcast %193 : vector<1x16xf32> to vector<16x16xf32>
    %205 = arith.addf %203, %204 : vector<16x16xf32>
    %cst_128 = arith.constant dense<0xFF800000> : vector<16xf32>
    %206 = vector.multi_reduction <maximumf>, %205, %cst_128 [1] : vector<16x16xf32> to vector<16xf32>
    %207 = vector.shape_cast %206 : vector<16xf32> to vector<16x1xf32>
    %208 = vector.broadcast %207 : vector<16x1xf32> to vector<16x16xf32>
    %209 = arith.subf %205, %208 : vector<16x16xf32>
    %210 = math.exp %209 : vector<16x16xf32>
    %cst_129 = arith.constant dense<0.000000e+00> : vector<16xf32>
    %211 = vector.multi_reduction <add>, %210, %cst_129 [1] : vector<16x16xf32> to vector<16xf32>
    %212 = vector.shape_cast %211 : vector<16xf32> to vector<16x1xf32>
    %213 = tpu.reciprocal %212 {approx = true} : vector<16x1xf32> -> vector<16x1xf32>
    %214 = vector.broadcast %213 : vector<16x1xf32> to vector<16x16xf32>
    %215 = arith.mulf %210, %214 : vector<16x16xf32>
    %216 = arith.truncf %215 : vector<16x16xf32> to vector<16x16xbf16>
    %cst_130 = arith.constant dense<0.000000e+00> : vector<16x8xf32>
    %217 = tpu.matmul %216, %202, %cst_130 {dimension_numbers = #tpu.dot_dimension_numbers<[1], [0], [0], [1], [0, 0, 1, 1], [], []>} : vector<16x16xbf16>, vector<16x8xbf16>, vector<16x8xf32> -> vector<16x8xf32>
    %218 = arith.truncf %217 : vector<16x8xf32> to vector<16x8xbf16>
    %c0_131 = arith.constant 0 : index
    %c0_132 = arith.constant 0 : index
    %219 = vector.load %arg18[%c0_131, %c0_132] : memref<64x64xbf16, #tpu.memory_space<vmem>>, vector<8x64xbf16>
    %cst_133 = arith.constant dense<0.000000e+00> : vector<16x64xf32>
    %220 = tpu.matmul %218, %219, %cst_133 {dimension_numbers = #tpu.dot_dimension_numbers<[1], [0], [0], [1], [0, 0, 1, 1], [], []>} : vector<16x8xbf16>, vector<8x64xbf16>, vector<16x64xf32> -> vector<16x64xf32>
    %221 = arith.addf %194, %220 : vector<16x64xf32>
    %222 = vector.extract_strided_slice %177 {offsets = [0, 8], sizes = [16, 8], strides = [1, 1]} : vector<16x64xf32> to vector<16x8xf32>
    %cst_134 = arith.constant 0.353553385 : f32
    %223 = vector.broadcast %cst_134 : f32 to vector<16x8xf32>
    %224 = arith.mulf %222, %223 : vector<16x8xf32>
    %225 = arith.truncf %224 : vector<16x8xf32> to vector<16x8xbf16>
    %226 = vector.extract_strided_slice %182 {offsets = [0, 8], sizes = [16, 8], strides = [1, 1]} : vector<16x64xf32> to vector<16x8xf32>
    %227 = arith.truncf %226 : vector<16x8xf32> to vector<16x8xbf16>
    %228 = vector.extract_strided_slice %187 {offsets = [0, 8], sizes = [16, 8], strides = [1, 1]} : vector<16x64xf32> to vector<16x8xf32>
    %229 = arith.truncf %228 : vector<16x8xf32> to vector<16x8xbf16>
    %cst_135 = arith.constant dense<0.000000e+00> : vector<16x16xf32>
    %230 = tpu.matmul %225, %227, %cst_135 {dimension_numbers = #tpu.dot_dimension_numbers<[1], [1], [0], [0], [0, 0, 1, 0], [], []>} : vector<16x8xbf16>, vector<16x8xbf16>, vector<16x16xf32> -> vector<16x16xf32>
    %231 = vector.broadcast %193 : vector<1x16xf32> to vector<16x16xf32>
    %232 = arith.addf %230, %231 : vector<16x16xf32>
    %cst_136 = arith.constant dense<0xFF800000> : vector<16xf32>
    %233 = vector.multi_reduction <maximumf>, %232, %cst_136 [1] : vector<16x16xf32> to vector<16xf32>
    %234 = vector.shape_cast %233 : vector<16xf32> to vector<16x1xf32>
    %235 = vector.broadcast %234 : vector<16x1xf32> to vector<16x16xf32>
    %236 = arith.subf %232, %235 : vector<16x16xf32>
    %237 = math.exp %236 : vector<16x16xf32>
    %cst_137 = arith.constant dense<0.000000e+00> : vector<16xf32>
    %238 = vector.multi_reduction <add>, %237, %cst_137 [1] : vector<16x16xf32> to vector<16xf32>
    %239 = vector.shape_cast %238 : vector<16xf32> to vector<16x1xf32>
    %240 = tpu.reciprocal %239 {approx = true} : vector<16x1xf32> -> vector<16x1xf32>
    %241 = vector.broadcast %240 : vector<16x1xf32> to vector<16x16xf32>
    %242 = arith.mulf %237, %241 : vector<16x16xf32>
    %243 = arith.truncf %242 : vector<16x16xf32> to vector<16x16xbf16>
    %cst_138 = arith.constant dense<0.000000e+00> : vector<16x8xf32>
    %244 = tpu.matmul %243, %229, %cst_138 {dimension_numbers = #tpu.dot_dimension_numbers<[1], [0], [0], [1], [0, 0, 1, 1], [], []>} : vector<16x16xbf16>, vector<16x8xbf16>, vector<16x8xf32> -> vector<16x8xf32>
    %245 = arith.truncf %244 : vector<16x8xf32> to vector<16x8xbf16>
    %c8 = arith.constant 8 : index
    %c0_139 = arith.constant 0 : index
    %246 = vector.load %arg18[%c8, %c0_139] : memref<64x64xbf16, #tpu.memory_space<vmem>>, vector<8x64xbf16>
    %cst_140 = arith.constant dense<0.000000e+00> : vector<16x64xf32>
    %247 = tpu.matmul %245, %246, %cst_140 {dimension_numbers = #tpu.dot_dimension_numbers<[1], [0], [0], [1], [0, 0, 1, 1], [], []>} : vector<16x8xbf16>, vector<8x64xbf16>, vector<16x64xf32> -> vector<16x64xf32>
    %248 = arith.addf %221, %247 : vector<16x64xf32>
    %249 = vector.extract_strided_slice %177 {offsets = [0, 16], sizes = [16, 8], strides = [1, 1]} : vector<16x64xf32> to vector<16x8xf32>
    %cst_141 = arith.constant 0.353553385 : f32
    %250 = vector.broadcast %cst_141 : f32 to vector<16x8xf32>
    %251 = arith.mulf %249, %250 : vector<16x8xf32>
    %252 = arith.truncf %251 : vector<16x8xf32> to vector<16x8xbf16>
    %253 = vector.extract_strided_slice %182 {offsets = [0, 16], sizes = [16, 8], strides = [1, 1]} : vector<16x64xf32> to vector<16x8xf32>
    %254 = arith.truncf %253 : vector<16x8xf32> to vector<16x8xbf16>
    %255 = vector.extract_strided_slice %187 {offsets = [0, 16], sizes = [16, 8], strides = [1, 1]} : vector<16x64xf32> to vector<16x8xf32>
    %256 = arith.truncf %255 : vector<16x8xf32> to vector<16x8xbf16>
    %cst_142 = arith.constant dense<0.000000e+00> : vector<16x16xf32>
    %257 = tpu.matmul %252, %254, %cst_142 {dimension_numbers = #tpu.dot_dimension_numbers<[1], [1], [0], [0], [0, 0, 1, 0], [], []>} : vector<16x8xbf16>, vector<16x8xbf16>, vector<16x16xf32> -> vector<16x16xf32>
    %258 = vector.broadcast %193 : vector<1x16xf32> to vector<16x16xf32>
    %259 = arith.addf %257, %258 : vector<16x16xf32>
    %cst_143 = arith.constant dense<0xFF800000> : vector<16xf32>
    %260 = vector.multi_reduction <maximumf>, %259, %cst_143 [1] : vector<16x16xf32> to vector<16xf32>
    %261 = vector.shape_cast %260 : vector<16xf32> to vector<16x1xf32>
    %262 = vector.broadcast %261 : vector<16x1xf32> to vector<16x16xf32>
    %263 = arith.subf %259, %262 : vector<16x16xf32>
    %264 = math.exp %263 : vector<16x16xf32>
    %cst_144 = arith.constant dense<0.000000e+00> : vector<16xf32>
    %265 = vector.multi_reduction <add>, %264, %cst_144 [1] : vector<16x16xf32> to vector<16xf32>
    %266 = vector.shape_cast %265 : vector<16xf32> to vector<16x1xf32>
    %267 = tpu.reciprocal %266 {approx = true} : vector<16x1xf32> -> vector<16x1xf32>
    %268 = vector.broadcast %267 : vector<16x1xf32> to vector<16x16xf32>
    %269 = arith.mulf %264, %268 : vector<16x16xf32>
    %270 = arith.truncf %269 : vector<16x16xf32> to vector<16x16xbf16>
    %cst_145 = arith.constant dense<0.000000e+00> : vector<16x8xf32>
    %271 = tpu.matmul %270, %256, %cst_145 {dimension_numbers = #tpu.dot_dimension_numbers<[1], [0], [0], [1], [0, 0, 1, 1], [], []>} : vector<16x16xbf16>, vector<16x8xbf16>, vector<16x8xf32> -> vector<16x8xf32>
    %272 = arith.truncf %271 : vector<16x8xf32> to vector<16x8xbf16>
    %c16 = arith.constant 16 : index
    %c0_146 = arith.constant 0 : index
    %273 = vector.load %arg18[%c16, %c0_146] : memref<64x64xbf16, #tpu.memory_space<vmem>>, vector<8x64xbf16>
    %cst_147 = arith.constant dense<0.000000e+00> : vector<16x64xf32>
    %274 = tpu.matmul %272, %273, %cst_147 {dimension_numbers = #tpu.dot_dimension_numbers<[1], [0], [0], [1], [0, 0, 1, 1], [], []>} : vector<16x8xbf16>, vector<8x64xbf16>, vector<16x64xf32> -> vector<16x64xf32>
    %275 = arith.addf %248, %274 : vector<16x64xf32>
    %276 = vector.extract_strided_slice %177 {offsets = [0, 24], sizes = [16, 8], strides = [1, 1]} : vector<16x64xf32> to vector<16x8xf32>
    %cst_148 = arith.constant 0.353553385 : f32
    %277 = vector.broadcast %cst_148 : f32 to vector<16x8xf32>
    %278 = arith.mulf %276, %277 : vector<16x8xf32>
    %279 = arith.truncf %278 : vector<16x8xf32> to vector<16x8xbf16>
    %280 = vector.extract_strided_slice %182 {offsets = [0, 24], sizes = [16, 8], strides = [1, 1]} : vector<16x64xf32> to vector<16x8xf32>
    %281 = arith.truncf %280 : vector<16x8xf32> to vector<16x8xbf16>
    %282 = vector.extract_strided_slice %187 {offsets = [0, 24], sizes = [16, 8], strides = [1, 1]} : vector<16x64xf32> to vector<16x8xf32>
    %283 = arith.truncf %282 : vector<16x8xf32> to vector<16x8xbf16>
    %cst_149 = arith.constant dense<0.000000e+00> : vector<16x16xf32>
    %284 = tpu.matmul %279, %281, %cst_149 {dimension_numbers = #tpu.dot_dimension_numbers<[1], [1], [0], [0], [0, 0, 1, 0], [], []>} : vector<16x8xbf16>, vector<16x8xbf16>, vector<16x16xf32> -> vector<16x16xf32>
    %285 = vector.broadcast %193 : vector<1x16xf32> to vector<16x16xf32>
    %286 = arith.addf %284, %285 : vector<16x16xf32>
    %cst_150 = arith.constant dense<0xFF800000> : vector<16xf32>
    %287 = vector.multi_reduction <maximumf>, %286, %cst_150 [1] : vector<16x16xf32> to vector<16xf32>
    %288 = vector.shape_cast %287 : vector<16xf32> to vector<16x1xf32>
    %289 = vector.broadcast %288 : vector<16x1xf32> to vector<16x16xf32>
    %290 = arith.subf %286, %289 : vector<16x16xf32>
    %291 = math.exp %290 : vector<16x16xf32>
    %cst_151 = arith.constant dense<0.000000e+00> : vector<16xf32>
    %292 = vector.multi_reduction <add>, %291, %cst_151 [1] : vector<16x16xf32> to vector<16xf32>
    %293 = vector.shape_cast %292 : vector<16xf32> to vector<16x1xf32>
    %294 = tpu.reciprocal %293 {approx = true} : vector<16x1xf32> -> vector<16x1xf32>
    %295 = vector.broadcast %294 : vector<16x1xf32> to vector<16x16xf32>
    %296 = arith.mulf %291, %295 : vector<16x16xf32>
    %297 = arith.truncf %296 : vector<16x16xf32> to vector<16x16xbf16>
    %cst_152 = arith.constant dense<0.000000e+00> : vector<16x8xf32>
    %298 = tpu.matmul %297, %283, %cst_152 {dimension_numbers = #tpu.dot_dimension_numbers<[1], [0], [0], [1], [0, 0, 1, 1], [], []>} : vector<16x16xbf16>, vector<16x8xbf16>, vector<16x8xf32> -> vector<16x8xf32>
    %299 = arith.truncf %298 : vector<16x8xf32> to vector<16x8xbf16>
    %c24 = arith.constant 24 : index
    %c0_153 = arith.constant 0 : index
    %300 = vector.load %arg18[%c24, %c0_153] : memref<64x64xbf16, #tpu.memory_space<vmem>>, vector<8x64xbf16>
    %cst_154 = arith.constant dense<0.000000e+00> : vector<16x64xf32>
    %301 = tpu.matmul %299, %300, %cst_154 {dimension_numbers = #tpu.dot_dimension_numbers<[1], [0], [0], [1], [0, 0, 1, 1], [], []>} : vector<16x8xbf16>, vector<8x64xbf16>, vector<16x64xf32> -> vector<16x64xf32>
    %302 = arith.addf %275, %301 : vector<16x64xf32>
    %303 = vector.extract_strided_slice %177 {offsets = [0, 32], sizes = [16, 8], strides = [1, 1]} : vector<16x64xf32> to vector<16x8xf32>
    %cst_155 = arith.constant 0.353553385 : f32
    %304 = vector.broadcast %cst_155 : f32 to vector<16x8xf32>
    %305 = arith.mulf %303, %304 : vector<16x8xf32>
    %306 = arith.truncf %305 : vector<16x8xf32> to vector<16x8xbf16>
    %307 = vector.extract_strided_slice %182 {offsets = [0, 32], sizes = [16, 8], strides = [1, 1]} : vector<16x64xf32> to vector<16x8xf32>
    %308 = arith.truncf %307 : vector<16x8xf32> to vector<16x8xbf16>
    %309 = vector.extract_strided_slice %187 {offsets = [0, 32], sizes = [16, 8], strides = [1, 1]} : vector<16x64xf32> to vector<16x8xf32>
    %310 = arith.truncf %309 : vector<16x8xf32> to vector<16x8xbf16>
    %cst_156 = arith.constant dense<0.000000e+00> : vector<16x16xf32>
    %311 = tpu.matmul %306, %308, %cst_156 {dimension_numbers = #tpu.dot_dimension_numbers<[1], [1], [0], [0], [0, 0, 1, 0], [], []>} : vector<16x8xbf16>, vector<16x8xbf16>, vector<16x16xf32> -> vector<16x16xf32>
    %312 = vector.broadcast %193 : vector<1x16xf32> to vector<16x16xf32>
    %313 = arith.addf %311, %312 : vector<16x16xf32>
    %cst_157 = arith.constant dense<0xFF800000> : vector<16xf32>
    %314 = vector.multi_reduction <maximumf>, %313, %cst_157 [1] : vector<16x16xf32> to vector<16xf32>
    %315 = vector.shape_cast %314 : vector<16xf32> to vector<16x1xf32>
    %316 = vector.broadcast %315 : vector<16x1xf32> to vector<16x16xf32>
    %317 = arith.subf %313, %316 : vector<16x16xf32>
    %318 = math.exp %317 : vector<16x16xf32>
    %cst_158 = arith.constant dense<0.000000e+00> : vector<16xf32>
    %319 = vector.multi_reduction <add>, %318, %cst_158 [1] : vector<16x16xf32> to vector<16xf32>
    %320 = vector.shape_cast %319 : vector<16xf32> to vector<16x1xf32>
    %321 = tpu.reciprocal %320 {approx = true} : vector<16x1xf32> -> vector<16x1xf32>
    %322 = vector.broadcast %321 : vector<16x1xf32> to vector<16x16xf32>
    %323 = arith.mulf %318, %322 : vector<16x16xf32>
    %324 = arith.truncf %323 : vector<16x16xf32> to vector<16x16xbf16>
    %cst_159 = arith.constant dense<0.000000e+00> : vector<16x8xf32>
    %325 = tpu.matmul %324, %310, %cst_159 {dimension_numbers = #tpu.dot_dimension_numbers<[1], [0], [0], [1], [0, 0, 1, 1], [], []>} : vector<16x16xbf16>, vector<16x8xbf16>, vector<16x8xf32> -> vector<16x8xf32>
    %326 = arith.truncf %325 : vector<16x8xf32> to vector<16x8xbf16>
    %c32_160 = arith.constant 32 : index
    %c0_161 = arith.constant 0 : index
    %327 = vector.load %arg18[%c32_160, %c0_161] : memref<64x64xbf16, #tpu.memory_space<vmem>>, vector<8x64xbf16>
    %cst_162 = arith.constant dense<0.000000e+00> : vector<16x64xf32>
    %328 = tpu.matmul %326, %327, %cst_162 {dimension_numbers = #tpu.dot_dimension_numbers<[1], [0], [0], [1], [0, 0, 1, 1], [], []>} : vector<16x8xbf16>, vector<8x64xbf16>, vector<16x64xf32> -> vector<16x64xf32>
    %329 = arith.addf %302, %328 : vector<16x64xf32>
    %330 = vector.extract_strided_slice %177 {offsets = [0, 40], sizes = [16, 8], strides = [1, 1]} : vector<16x64xf32> to vector<16x8xf32>
    %cst_163 = arith.constant 0.353553385 : f32
    %331 = vector.broadcast %cst_163 : f32 to vector<16x8xf32>
    %332 = arith.mulf %330, %331 : vector<16x8xf32>
    %333 = arith.truncf %332 : vector<16x8xf32> to vector<16x8xbf16>
    %334 = vector.extract_strided_slice %182 {offsets = [0, 40], sizes = [16, 8], strides = [1, 1]} : vector<16x64xf32> to vector<16x8xf32>
    %335 = arith.truncf %334 : vector<16x8xf32> to vector<16x8xbf16>
    %336 = vector.extract_strided_slice %187 {offsets = [0, 40], sizes = [16, 8], strides = [1, 1]} : vector<16x64xf32> to vector<16x8xf32>
    %337 = arith.truncf %336 : vector<16x8xf32> to vector<16x8xbf16>
    %cst_164 = arith.constant dense<0.000000e+00> : vector<16x16xf32>
    %338 = tpu.matmul %333, %335, %cst_164 {dimension_numbers = #tpu.dot_dimension_numbers<[1], [1], [0], [0], [0, 0, 1, 0], [], []>} : vector<16x8xbf16>, vector<16x8xbf16>, vector<16x16xf32> -> vector<16x16xf32>
    %339 = vector.broadcast %193 : vector<1x16xf32> to vector<16x16xf32>
    %340 = arith.addf %338, %339 : vector<16x16xf32>
    %cst_165 = arith.constant dense<0xFF800000> : vector<16xf32>
    %341 = vector.multi_reduction <maximumf>, %340, %cst_165 [1] : vector<16x16xf32> to vector<16xf32>
    %342 = vector.shape_cast %341 : vector<16xf32> to vector<16x1xf32>
    %343 = vector.broadcast %342 : vector<16x1xf32> to vector<16x16xf32>
    %344 = arith.subf %340, %343 : vector<16x16xf32>
    %345 = math.exp %344 : vector<16x16xf32>
    %cst_166 = arith.constant dense<0.000000e+00> : vector<16xf32>
    %346 = vector.multi_reduction <add>, %345, %cst_166 [1] : vector<16x16xf32> to vector<16xf32>
    %347 = vector.shape_cast %346 : vector<16xf32> to vector<16x1xf32>
    %348 = tpu.reciprocal %347 {approx = true} : vector<16x1xf32> -> vector<16x1xf32>
    %349 = vector.broadcast %348 : vector<16x1xf32> to vector<16x16xf32>
    %350 = arith.mulf %345, %349 : vector<16x16xf32>
    %351 = arith.truncf %350 : vector<16x16xf32> to vector<16x16xbf16>
    %cst_167 = arith.constant dense<0.000000e+00> : vector<16x8xf32>
    %352 = tpu.matmul %351, %337, %cst_167 {dimension_numbers = #tpu.dot_dimension_numbers<[1], [0], [0], [1], [0, 0, 1, 1], [], []>} : vector<16x16xbf16>, vector<16x8xbf16>, vector<16x8xf32> -> vector<16x8xf32>
    %353 = arith.truncf %352 : vector<16x8xf32> to vector<16x8xbf16>
    %c40 = arith.constant 40 : index
    %c0_168 = arith.constant 0 : index
    %354 = vector.load %arg18[%c40, %c0_168] : memref<64x64xbf16, #tpu.memory_space<vmem>>, vector<8x64xbf16>
    %cst_169 = arith.constant dense<0.000000e+00> : vector<16x64xf32>
    %355 = tpu.matmul %353, %354, %cst_169 {dimension_numbers = #tpu.dot_dimension_numbers<[1], [0], [0], [1], [0, 0, 1, 1], [], []>} : vector<16x8xbf16>, vector<8x64xbf16>, vector<16x64xf32> -> vector<16x64xf32>
    %356 = arith.addf %329, %355 : vector<16x64xf32>
    %357 = vector.extract_strided_slice %177 {offsets = [0, 48], sizes = [16, 8], strides = [1, 1]} : vector<16x64xf32> to vector<16x8xf32>
    %cst_170 = arith.constant 0.353553385 : f32
    %358 = vector.broadcast %cst_170 : f32 to vector<16x8xf32>
    %359 = arith.mulf %357, %358 : vector<16x8xf32>
    %360 = arith.truncf %359 : vector<16x8xf32> to vector<16x8xbf16>
    %361 = vector.extract_strided_slice %182 {offsets = [0, 48], sizes = [16, 8], strides = [1, 1]} : vector<16x64xf32> to vector<16x8xf32>
    %362 = arith.truncf %361 : vector<16x8xf32> to vector<16x8xbf16>
    %363 = vector.extract_strided_slice %187 {offsets = [0, 48], sizes = [16, 8], strides = [1, 1]} : vector<16x64xf32> to vector<16x8xf32>
    %364 = arith.truncf %363 : vector<16x8xf32> to vector<16x8xbf16>
    %cst_171 = arith.constant dense<0.000000e+00> : vector<16x16xf32>
    %365 = tpu.matmul %360, %362, %cst_171 {dimension_numbers = #tpu.dot_dimension_numbers<[1], [1], [0], [0], [0, 0, 1, 0], [], []>} : vector<16x8xbf16>, vector<16x8xbf16>, vector<16x16xf32> -> vector<16x16xf32>
    %366 = vector.broadcast %193 : vector<1x16xf32> to vector<16x16xf32>
    %367 = arith.addf %365, %366 : vector<16x16xf32>
    %cst_172 = arith.constant dense<0xFF800000> : vector<16xf32>
    %368 = vector.multi_reduction <maximumf>, %367, %cst_172 [1] : vector<16x16xf32> to vector<16xf32>
    %369 = vector.shape_cast %368 : vector<16xf32> to vector<16x1xf32>
    %370 = vector.broadcast %369 : vector<16x1xf32> to vector<16x16xf32>
    %371 = arith.subf %367, %370 : vector<16x16xf32>
    %372 = math.exp %371 : vector<16x16xf32>
    %cst_173 = arith.constant dense<0.000000e+00> : vector<16xf32>
    %373 = vector.multi_reduction <add>, %372, %cst_173 [1] : vector<16x16xf32> to vector<16xf32>
    %374 = vector.shape_cast %373 : vector<16xf32> to vector<16x1xf32>
    %375 = tpu.reciprocal %374 {approx = true} : vector<16x1xf32> -> vector<16x1xf32>
    %376 = vector.broadcast %375 : vector<16x1xf32> to vector<16x16xf32>
    %377 = arith.mulf %372, %376 : vector<16x16xf32>
    %378 = arith.truncf %377 : vector<16x16xf32> to vector<16x16xbf16>
    %cst_174 = arith.constant dense<0.000000e+00> : vector<16x8xf32>
    %379 = tpu.matmul %378, %364, %cst_174 {dimension_numbers = #tpu.dot_dimension_numbers<[1], [0], [0], [1], [0, 0, 1, 1], [], []>} : vector<16x16xbf16>, vector<16x8xbf16>, vector<16x8xf32> -> vector<16x8xf32>
    %380 = arith.truncf %379 : vector<16x8xf32> to vector<16x8xbf16>
    %c48 = arith.constant 48 : index
    %c0_175 = arith.constant 0 : index
    %381 = vector.load %arg18[%c48, %c0_175] : memref<64x64xbf16, #tpu.memory_space<vmem>>, vector<8x64xbf16>
    %cst_176 = arith.constant dense<0.000000e+00> : vector<16x64xf32>
    %382 = tpu.matmul %380, %381, %cst_176 {dimension_numbers = #tpu.dot_dimension_numbers<[1], [0], [0], [1], [0, 0, 1, 1], [], []>} : vector<16x8xbf16>, vector<8x64xbf16>, vector<16x64xf32> -> vector<16x64xf32>
    %383 = arith.addf %356, %382 : vector<16x64xf32>
    %384 = vector.extract_strided_slice %177 {offsets = [0, 56], sizes = [16, 8], strides = [1, 1]} : vector<16x64xf32> to vector<16x8xf32>
    %cst_177 = arith.constant 0.353553385 : f32
    %385 = vector.broadcast %cst_177 : f32 to vector<16x8xf32>
    %386 = arith.mulf %384, %385 : vector<16x8xf32>
    %387 = arith.truncf %386 : vector<16x8xf32> to vector<16x8xbf16>
    %388 = vector.extract_strided_slice %182 {offsets = [0, 56], sizes = [16, 8], strides = [1, 1]} : vector<16x64xf32> to vector<16x8xf32>
    %389 = arith.truncf %388 : vector<16x8xf32> to vector<16x8xbf16>
    %390 = vector.extract_strided_slice %187 {offsets = [0, 56], sizes = [16, 8], strides = [1, 1]} : vector<16x64xf32> to vector<16x8xf32>
    %391 = arith.truncf %390 : vector<16x8xf32> to vector<16x8xbf16>
    %cst_178 = arith.constant dense<0.000000e+00> : vector<16x16xf32>
    %392 = tpu.matmul %387, %389, %cst_178 {dimension_numbers = #tpu.dot_dimension_numbers<[1], [1], [0], [0], [0, 0, 1, 0], [], []>} : vector<16x8xbf16>, vector<16x8xbf16>, vector<16x16xf32> -> vector<16x16xf32>
    %393 = vector.broadcast %193 : vector<1x16xf32> to vector<16x16xf32>
    %394 = arith.addf %392, %393 : vector<16x16xf32>
    %cst_179 = arith.constant dense<0xFF800000> : vector<16xf32>
    %395 = vector.multi_reduction <maximumf>, %394, %cst_179 [1] : vector<16x16xf32> to vector<16xf32>
    %396 = vector.shape_cast %395 : vector<16xf32> to vector<16x1xf32>
    %397 = vector.broadcast %396 : vector<16x1xf32> to vector<16x16xf32>
    %398 = arith.subf %394, %397 : vector<16x16xf32>
    %399 = math.exp %398 : vector<16x16xf32>
    %cst_180 = arith.constant dense<0.000000e+00> : vector<16xf32>
    %400 = vector.multi_reduction <add>, %399, %cst_180 [1] : vector<16x16xf32> to vector<16xf32>
    %401 = vector.shape_cast %400 : vector<16xf32> to vector<16x1xf32>
    %402 = tpu.reciprocal %401 {approx = true} : vector<16x1xf32> -> vector<16x1xf32>
    %403 = vector.broadcast %402 : vector<16x1xf32> to vector<16x16xf32>
    %404 = arith.mulf %399, %403 : vector<16x16xf32>
    %405 = arith.truncf %404 : vector<16x16xf32> to vector<16x16xbf16>
    %cst_181 = arith.constant dense<0.000000e+00> : vector<16x8xf32>
    %406 = tpu.matmul %405, %391, %cst_181 {dimension_numbers = #tpu.dot_dimension_numbers<[1], [0], [0], [1], [0, 0, 1, 1], [], []>} : vector<16x16xbf16>, vector<16x8xbf16>, vector<16x8xf32> -> vector<16x8xf32>
    %407 = arith.truncf %406 : vector<16x8xf32> to vector<16x8xbf16>
    %c56 = arith.constant 56 : index
    %c0_182 = arith.constant 0 : index
    %408 = vector.load %arg18[%c56, %c0_182] : memref<64x64xbf16, #tpu.memory_space<vmem>>, vector<8x64xbf16>
    %cst_183 = arith.constant dense<0.000000e+00> : vector<16x64xf32>
    %409 = tpu.matmul %407, %408, %cst_183 {dimension_numbers = #tpu.dot_dimension_numbers<[1], [0], [0], [1], [0, 0, 1, 1], [], []>} : vector<16x8xbf16>, vector<8x64xbf16>, vector<16x64xf32> -> vector<16x64xf32>
    %410 = arith.addf %383, %409 : vector<16x64xf32>
    %c3 = arith.constant 3 : index
    %c0_184 = arith.constant 0 : index
    %411 = vector.load %arg19[%c3, %c0_184] : memref<4x64xf32, #tpu.memory_space<vmem>>, vector<1x64xf32>
    %412 = vector.broadcast %411 : vector<1x64xf32> to vector<16x64xf32>
    %413 = arith.addf %410, %412 : vector<16x64xf32>
    %414 = arith.addf %413, %159 : vector<16x64xf32>
    %c0_185 = arith.constant 0 : index
    %c0_186 = arith.constant 0 : index
    %c0_187 = arith.constant 0 : index
    %415 = vector.load %arg20[%c0_185, %c0_186, %c0_187] : memref<1x16x64xf32, #tpu.memory_space<vmem>>, vector<1x16x64xf32>
    %416 = vector.shape_cast %415 : vector<1x16x64xf32> to vector<16x64xf32>
    %417 = vector.shape_cast %414 : vector<16x64xf32> to vector<1x16x64xf32>
    tpu.vector_store %arg20[%c0_185, %c0_186, %c0_187], %417 {strides = array<i32>} : memref<1x16x64xf32, #tpu.memory_space<vmem>>, vector<1x16x64xf32>,
    return
  }
  func.func @transform_0(%arg0: i32) -> (i32, i32, i32) {
    %c0_i32 = arith.constant 0 : i32
    %c0_i32_0 = arith.constant 0 : i32
    %c0_i32_1 = arith.constant 0 : i32
    return %arg0, %c0_i32, %c0_i32_0 : i32, i32, i32
  }
  func.func @transform_1(%arg0: i32) -> (i32, i32, i32) {
    %c0_i32 = arith.constant 0 : i32
    %c0_i32_0 = arith.constant 0 : i32
    %c0_i32_1 = arith.constant 0 : i32
    return %arg0, %c0_i32, %c0_i32_0 : i32, i32, i32
  }
  func.func @transform_2(%arg0: i32) -> (i32, i32, i32) {
    %c0_i32 = arith.constant 0 : i32
    %c0_i32_0 = arith.constant 0 : i32
    %c0_i32_1 = arith.constant 0 : i32
    return %arg0, %c0_i32, %c0_i32_0 : i32, i32, i32
  }
  func.func @transform_3(%arg0: i32) -> (i32, i32) {
    %c0_i32 = arith.constant 0 : i32
    %c0_i32_0 = arith.constant 0 : i32
    %c0_i32_1 = arith.constant 0 : i32
    return %c0_i32, %c0_i32_0 : i32, i32
  }
  func.func @transform_4(%arg0: i32) -> (i32, i32) {
    %c0_i32 = arith.constant 0 : i32
    %c0_i32_0 = arith.constant 0 : i32
    %c0_i32_1 = arith.constant 0 : i32
    return %c0_i32, %c0_i32_0 : i32, i32
  }
  func.func @transform_5(%arg0: i32) -> (i32, i32) {
    %c0_i32 = arith.constant 0 : i32
    %c0_i32_0 = arith.constant 0 : i32
    %c0_i32_1 = arith.constant 0 : i32
    return %c0_i32, %c0_i32_0 : i32, i32
  }
  func.func @transform_6(%arg0: i32) -> (i32, i32) {
    %c0_i32 = arith.constant 0 : i32
    %c0_i32_0 = arith.constant 0 : i32
    %c0_i32_1 = arith.constant 0 : i32
    return %c0_i32, %c0_i32_0 : i32, i32
  }
  func.func @transform_7(%arg0: i32) -> (i32, i32) {
    %c0_i32 = arith.constant 0 : i32
    %c0_i32_0 = arith.constant 0 : i32
    %c0_i32_1 = arith.constant 0 : i32
    return %c0_i32, %c0_i32_0 : i32, i32
  }
  func.func @transform_8(%arg0: i32) -> (i32, i32) {
    %c0_i32 = arith.constant 0 : i32
    %c0_i32_0 = arith.constant 0 : i32
    %c0_i32_1 = arith.constant 0 : i32
    return %c0_i32, %c0_i32_0 : i32, i32
  }
  func.func @transform_9(%arg0: i32) -> (i32, i32) {
    %c0_i32 = arith.constant 0 : i32
    %c0_i32_0 = arith.constant 0 : i32
    %c0_i32_1 = arith.constant 0 : i32
    return %c0_i32, %c0_i32_0 : i32, i32
  }
  func.func @transform_10(%arg0: i32) -> (i32, i32) {
    %c0_i32 = arith.constant 0 : i32
    %c0_i32_0 = arith.constant 0 : i32
    %c0_i32_1 = arith.constant 0 : i32
    return %c0_i32, %c0_i32_0 : i32, i32
  }
  func.func @transform_11(%arg0: i32) -> (i32, i32) {
    %c0_i32 = arith.constant 0 : i32
    %c0_i32_0 = arith.constant 0 : i32
    %c0_i32_1 = arith.constant 0 : i32
    return %c0_i32, %c0_i32_0 : i32, i32
  }
  func.func @transform_12(%arg0: i32) -> (i32, i32) {
    %c0_i32 = arith.constant 0 : i32
    %c0_i32_0 = arith.constant 0 : i32
    %c0_i32_1 = arith.constant 0 : i32
    return %c0_i32, %c0_i32_0 : i32, i32
  }
  func.func @transform_13(%arg0: i32) -> (i32, i32) {
    %c0_i32 = arith.constant 0 : i32
    %c0_i32_0 = arith.constant 0 : i32
    %c0_i32_1 = arith.constant 0 : i32
    return %c0_i32, %c0_i32_0 : i32, i32
  }
  func.func @transform_14(%arg0: i32) -> (i32, i32) {
    %c0_i32 = arith.constant 0 : i32
    %c0_i32_0 = arith.constant 0 : i32
    %c0_i32_1 = arith.constant 0 : i32
    return %c0_i32, %c0_i32_0 : i32, i32
  }
  func.func @transform_15(%arg0: i32) -> (i32, i32) {
    %c0_i32 = arith.constant 0 : i32
    %c0_i32_0 = arith.constant 0 : i32
    %c0_i32_1 = arith.constant 0 : i32
    return %c0_i32, %c0_i32_0 : i32, i32
  }
  func.func @transform_16(%arg0: i32) -> (i32, i32) {
    %c0_i32 = arith.constant 0 : i32
    %c0_i32_0 = arith.constant 0 : i32
    %c0_i32_1 = arith.constant 0 : i32
    return %c0_i32, %c0_i32_0 : i32, i32
  }
  func.func @transform_17(%arg0: i32) -> (i32, i32) {
    %c0_i32 = arith.constant 0 : i32
    %c0_i32_0 = arith.constant 0 : i32
    %c0_i32_1 = arith.constant 0 : i32
    return %c0_i32, %c0_i32_0 : i32, i32
  }
  func.func @transform_18(%arg0: i32) -> (i32, i32) {
    %c0_i32 = arith.constant 0 : i32
    %c0_i32_0 = arith.constant 0 : i32
    %c0_i32_1 = arith.constant 0 : i32
    return %c0_i32, %c0_i32_0 : i32, i32
  }
  func.func @transform_19(%arg0: i32) -> (i32, i32, i32) {
    %c0_i32 = arith.constant 0 : i32
    %c0_i32_0 = arith.constant 0 : i32
    %c0_i32_1 = arith.constant 0 : i32
    return %arg0, %c0_i32, %c0_i32_0 : i32, i32, i32
  }
}

</mosaic_0001>

<llo_original>
// kernel: query_generation_forward.1
$region0: #{query_generation_forward.1}
  #allocation0 [shape = 'u32[]', space=smem, size = 0x4, offset = 0x4, fixed_abs, tag = 'smem constant byte address 0x4 - core index']
  #allocation1 [shape = 'u32[144,128]{1,0:T(1,128)}', space=vmem, size = 0x12000, scoped, tag = 'internal scratch']
  #allocation2 [shape = 'f32[64,288]{1,0:T(8,128)}', space=vmem, size = 0x18000, scoped, tag = 'scratch operand']
  %s0 = inlined_call_operand.vmem [shape: f32[2,64,32], index: 0, kind: input, shape index: {}]
  %s1 = inlined_call_operand.vmem [shape: f32[2,16,64], index: 1, kind: input, shape index: {}]
  %s2 = inlined_call_operand.vmem [shape: f32[2,1,16], index: 2, kind: input, shape index: {}]
  %s3 = inlined_call_operand.vmem [shape: f32[64,32], index: 3, kind: input, shape index: {}]
  %s4 = inlined_call_operand.vmem [shape: f32[64,8], index: 4, kind: input, shape index: {}]
  %s5 = inlined_call_operand.vmem [shape: bf16[288,32], index: 5, kind: input, shape index: {}]
  %s6 = inlined_call_operand.vmem [shape: bf16[288,32], index: 6, kind: input, shape index: {}]
  %s7 = inlined_call_operand.vmem [shape: bf16[288,32], index: 7, kind: input, shape index: {}]
  %s8 = inlined_call_operand.vmem [shape: f32[2,32], index: 8, kind: input, shape index: {}]
  %s9 = inlined_call_operand.vmem [shape: bf16[32,16], index: 9, kind: input, shape index: {}]
  %s10 = inlined_call_operand.vmem [shape: bf16[64,64], index: 10, kind: input, shape index: {}]
  %s11 = inlined_call_operand.vmem [shape: bf16[64,64], index: 11, kind: input, shape index: {}]
  %s12 = inlined_call_operand.vmem [shape: f32[16,64], index: 12, kind: input, shape index: {}, may-alias: {12,13}]
  %s13 = inlined_call_operand.vmem [shape: f32[16,64], index: 13, kind: input, shape index: {}, may-alias: {12,13}]
  %s14 = inlined_call_operand.vmem [shape: bf16[64,64], index: 14, kind: input, shape index: {}]
  %s15 = inlined_call_operand.vmem [shape: bf16[64,64], index: 15, kind: input, shape index: {}]
  %s16 = inlined_call_operand.vmem [shape: bf16[64,64], index: 16, kind: input, shape index: {}]
  %s17 = inlined_call_operand.vmem [shape: bf16[64,64], index: 17, kind: input, shape index: {}]
  %s18 = inlined_call_operand.vmem [shape: f32[4,64], index: 18, kind: input, shape index: {}]
  %s19 = inlined_call_operand.vmem [shape: f32[2,16,64], index: 19, kind: output, shape index: {}]
  %s20 = sld [smem:[#allocation0]]
  $region109: #{query_generation_forward.1} parent=0
    _
  %s22 = ssub.s32 1, %s20
  %s23 = scalar_select 0, %s22, %s20
  loop: start=0, step=1, limit=4
  $region2: #{query_generation_forward.1} parent=0 // loop_pre_header
    _
  $region3: #{query_generation_forward.1} parent=0 // loop_header
    %s25 = sphi 0, %s29
    %p26 = scmp.ge.s32.totalorder %s25, 4
    %s35 = sphi 0, %s37
    %s38 = sphi 0, %s35
    %s39 = sphi 0, %s38
    %s55 = sphi 0, %s39
    %s61 = sphi 0, %s63
    %s64 = sphi 0, %s61
    %s65 = sphi 0, %s64
    %s81 = sphi 0, %s65
    %s87 = sphi 0, %s89
    %s90 = sphi 0, %s87
    %s91 = sphi 0, %s90
    %s107 = sphi 0, %s91
    %s111 = sphi 0, %s111
    %s113 = sphi 0, %s111
    %s114 = sphi 0, %s113
    %s128 = sphi 0, %s114
    %s132 = sphi 0, %s132
    %s134 = sphi 0, %s132
    %s135 = sphi 0, %s134
    %s149 = sphi 0, %s135
    %s153 = sphi 0, %s153
    %s155 = sphi 0, %s153
    %s156 = sphi 0, %s155
    %s170 = sphi 0, %s156
    %s174 = sphi 0, %s174
    %s176 = sphi 0, %s174
    %s177 = sphi 0, %s176
    %s191 = sphi 0, %s177
    %s195 = sphi 0, %s195
    %s197 = sphi 0, %s195
    %s198 = sphi 0, %s197
    %s212 = sphi 0, %s198
    %s216 = sphi 0, %s216
    %s218 = sphi 0, %s216
    %s219 = sphi 0, %s218
    %s233 = sphi 0, %s219
    %s237 = sphi 0, %s237
    %s239 = sphi 0, %s237
    %s240 = sphi 0, %s239
    %s254 = sphi 0, %s240
    %s258 = sphi 0, %s258
    %s260 = sphi 0, %s258
    %s261 = sphi 0, %s260
    %s275 = sphi 0, %s261
    %s279 = sphi 0, %s279
    %s281 = sphi 0, %s279
    %s282 = sphi 0, %s281
    %s296 = sphi 0, %s282
    %s300 = sphi 0, %s300
    %s302 = sphi 0, %s300
    %s303 = sphi 0, %s302
    %s317 = sphi 0, %s303
    %s321 = sphi 0, %s321
    %s323 = sphi 0, %s321
    %s324 = sphi 0, %s323
    %s338 = sphi 0, %s324
    %s342 = sphi 0, %s342
    %s344 = sphi 0, %s342
    %s345 = sphi 0, %s344
    %s359 = sphi 0, %s345
    %s363 = sphi 0, %s363
    %s365 = sphi 0, %s363
    %s366 = sphi 0, %s365
    %s380 = sphi 0, %s366
    %s384 = sphi 0, %s384
    %s386 = sphi 0, %s384
    %s387 = sphi 0, %s386
    %s401 = sphi 0, %s387
    %s405 = sphi 0, %s405
    %s407 = sphi 0, %s405
    %s408 = sphi 0, %s407
    %s422 = sphi 0, %s408
    %s426 = sphi 0, %s426
    %s428 = sphi 0, %s426
    %s429 = sphi 0, %s428
    %s443 = sphi 0, %s429
    %s449 = sphi 0, %s451
    %s452 = sphi 0, %s449
    %s453 = sphi 0, %s452
    %s469 = sphi 0, %s453
  $region4: #{query_generation_forward.1} parent=0 // loop_header_branch
    %28 = sbr.rel (%p26) target = $region8
  $region5: #{query_generation_forward.1} parent=0 // loop_body
    %s30 = ssub.s32 %s25, 1
    %s31 = ssub.s32 %s25, 2
    %s32 = sadd.s32 %s25, 1
    %s33 = ssub.s32 %s25, %s32
    %p34 = scmp.eq.s32.totalorder %s33, 0
    %s36 = sadd.s32 %s35, 1
    %s37 = scalar_select %p34, %s35, %s36
    %p40 = pneg %p34
    %p41 = scmp.eq.s32.totalorder %s25, 1
    %p42 = por %p40, %p41
    %p43 = scmp.ne.s32.totalorder %s35, %s38
    %p44 = scmp.eq.s32.totalorder %s25, 0
    %p45 = por %p43, %p44
    %p46 = scmp.ne.s32.totalorder %s35, %s38
    %p47 = scmp.eq.s32.totalorder %s30, 1
    %p48 = por %p46, %p47
    %p49 = scmp.ne.s32.totalorder %s38, %s39
    %p50 = scmp.eq.s32.totalorder %s30, 0
    %p51 = por %p49, %p50
    %p52 = scmp.ne.s32.totalorder %s38, %s39
    %p53 = scmp.eq.s32.totalorder %s31, 1
    %p54 = por %p52, %p53
    %p56 = scmp.ne.s32.totalorder %s39, %s55
    %p57 = scmp.eq.s32.totalorder %s31, 0
    %p58 = por %p56, %p57
    %s59 = ssub.s32 %s25, %s32
    %p60 = scmp.eq.s32.totalorder %s59, 0
    %s62 = sadd.s32 %s61, 1
    %s63 = scalar_select %p60, %s61, %s62
    %p66 = pneg %p60
    %p67 = scmp.eq.s32.totalorder %s25, 1
    %p68 = por %p66, %p67
    %p69 = scmp.ne.s32.totalorder %s61, %s64
    %p70 = scmp.eq.s32.totalorder %s25, 0
    %p71 = por %p69, %p70
    %p72 = scmp.ne.s32.totalorder %s61, %s64
    %p73 = scmp.eq.s32.totalorder %s30, 1
    %p74 = por %p72, %p73
    %p75 = scmp.ne.s32.totalorder %s64, %s65
    %p76 = scmp.eq.s32.totalorder %s30, 0
    %p77 = por %p75, %p76
    %p78 = scmp.ne.s32.totalorder %s64, %s65
    %p79 = scmp.eq.s32.totalorder %s31, 1
    %p80 = por %p78, %p79
    %p82 = scmp.ne.s32.totalorder %s65, %s81
    %p83 = scmp.eq.s32.totalorder %s31, 0
    %p84 = por %p82, %p83
    %s85 = ssub.s32 %s25, %s32
    %p86 = scmp.eq.s32.totalorder %s85, 0
    %s88 = sadd.s32 %s87, 1
    %s89 = scalar_select %p86, %s87, %s88
    %p92 = pneg %p86
    %p93 = scmp.eq.s32.totalorder %s25, 1
    %p94 = por %p92, %p93
    %p95 = scmp.ne.s32.totalorder %s87, %s90
    %p96 = scmp.eq.s32.totalorder %s25, 0
    %p97 = por %p95, %p96
    %p98 = scmp.ne.s32.totalorder %s87, %s90
    %p99 = scmp.eq.s32.totalorder %s30, 1
    %p100 = por %p98, %p99
    %p101 = scmp.ne.s32.totalorder %s90, %s91
    %p102 = scmp.eq.s32.totalorder %s30, 0
    %p103 = por %p101, %p102
    %p104 = scmp.ne.s32.totalorder %s90, %s91
    %p105 = scmp.eq.s32.totalorder %s31, 1
    %p106 = por %p104, %p105
    %p108 = scmp.ne.s32.totalorder %s91, %s107
    %p109 = scmp.eq.s32.totalorder %s31, 0
    %p110 = por %p108, %p109
    %s112 = sadd.s32 %s111, 1
    %p115 = scmp.eq.s32.totalorder %s25, 1
    %p116 = scmp.ne.s32.totalorder %s111, %s113
    %p117 = scmp.eq.s32.totalorder %s25, 0
    %p118 = por %p116, %p117
    %p119 = scmp.ne.s32.totalorder %s111, %s113
    %p120 = scmp.eq.s32.totalorder %s30, 1
    %p121 = por %p119, %p120
    %p122 = scmp.ne.s32.totalorder %s113, %s114
    %p123 = scmp.eq.s32.totalorder %s30, 0
    %p124 = por %p122, %p123
    %p125 = scmp.ne.s32.totalorder %s113, %s114
    %p126 = scmp.eq.s32.totalorder %s31, 1
    %p127 = por %p125, %p126
    %p129 = scmp.ne.s32.totalorder %s114, %s128
    %p130 = scmp.eq.s32.totalorder %s31, 0
    %p131 = por %p129, %p130
    %s133 = sadd.s32 %s132, 1
    %p136 = scmp.eq.s32.totalorder %s25, 1
    %p137 = scmp.ne.s32.totalorder %s132, %s134
    %p138 = scmp.eq.s32.totalorder %s25, 0
    %p139 = por %p137, %p138
    %p140 = scmp.ne.s32.totalorder %s132, %s134
    %p141 = scmp.eq.s32.totalorder %s30, 1
    %p142 = por %p140, %p141
    %p143 = scmp.ne.s32.totalorder %s134, %s135
    %p144 = scmp.eq.s32.totalorder %s30, 0
    %p145 = por %p143, %p144
    %p146 = scmp.ne.s32.totalorder %s134, %s135
    %p147 = scmp.eq.s32.totalorder %s31, 1
    %p148 = por %p146, %p147
    %p150 = scmp.ne.s32.totalorder %s135, %s149
    %p151 = scmp.eq.s32.totalorder %s31, 0
    %p152 = por %p150, %p151
    %s154 = sadd.s32 %s153, 1
    %p157 = scmp.eq.s32.totalorder %s25, 1
    %p158 = scmp.ne.s32.totalorder %s153, %s155
    %p159 = scmp.eq.s32.totalorder %s25, 0
    %p160 = por %p158, %p159
    %p161 = scmp.ne.s32.totalorder %s153, %s155
    %p162 = scmp.eq.s32.totalorder %s30, 1
    %p163 = por %p161, %p162
    %p164 = scmp.ne.s32.totalorder %s155, %s156
    %p165 = scmp.eq.s32.totalorder %s30, 0
    %p166 = por %p164, %p165
    %p167 = scmp.ne.s32.totalorder %s155, %s156
    %p168 = scmp.eq.s32.totalorder %s31, 1
    %p169 = por %p167, %p168
    %p171 = scmp.ne.s32.totalorder %s156, %s170
    %p172 = scmp.eq.s32.totalorder %s31, 0
    %p173 = por %p171, %p172
    %s175 = sadd.s32 %s174, 1
    %p178 = scmp.eq.s32.totalorder %s25, 1
    %p179 = scmp.ne.s32.totalorder %s174, %s176
    %p180 = scmp.eq.s32.totalorder %s25, 0
    %p181 = por %p179, %p180
    %p182 = scmp.ne.s32.totalorder %s174, %s176
    %p183 = scmp.eq.s32.totalorder %s30, 1
    %p184 = por %p182, %p183
    %p185 = scmp.ne.s32.totalorder %s176, %s177
    %p186 = scmp.eq.s32.totalorder %s30, 0
    %p187 = por %p185, %p186
    %p188 = scmp.ne.s32.totalorder %s176, %s177
    %p189 = scmp.eq.s32.totalorder %s31, 1
    %p190 = por %p188, %p189
    %p192 = scmp.ne.s32.totalorder %s177, %s191
    %p193 = scmp.eq.s32.totalorder %s31, 0
    %p194 = por %p192, %p193
    %s196 = sadd.s32 %s195, 1
    %p199 = scmp.eq.s32.totalorder %s25, 1
    %p200 = scmp.ne.s32.totalorder %s195, %s197
    %p201 = scmp.eq.s32.totalorder %s25, 0
    %p202 = por %p200, %p201
    %p203 = scmp.ne.s32.totalorder %s195, %s197
    %p204 = scmp.eq.s32.totalorder %s30, 1
    %p205 = por %p203, %p204
    %p206 = scmp.ne.s32.totalorder %s197, %s198
    %p207 = scmp.eq.s32.totalorder %s30, 0
    %p208 = por %p206, %p207
    %p209 = scmp.ne.s32.totalorder %s197, %s198
    %p210 = scmp.eq.s32.totalorder %s31, 1
    %p211 = por %p209, %p210
    %p213 = scmp.ne.s32.totalorder %s198, %s212
    %p214 = scmp.eq.s32.totalorder %s31, 0
    %p215 = por %p213, %p214
    %s217 = sadd.s32 %s216, 1
    %p220 = scmp.eq.s32.totalorder %s25, 1
    %p221 = scmp.ne.s32.totalorder %s216, %s218
    %p222 = scmp.eq.s32.totalorder %s25, 0
    %p223 = por %p221, %p222
    %p224 = scmp.ne.s32.totalorder %s216, %s218
    %p225 = scmp.eq.s32.totalorder %s30, 1
    %p226 = por %p224, %p225
    %p227 = scmp.ne.s32.totalorder %s218, %s219
    %p228 = scmp.eq.s32.totalorder %s30, 0
    %p229 = por %p227, %p228
    %p230 = scmp.ne.s32.totalorder %s218, %s219
    %p231 = scmp.eq.s32.totalorder %s31, 1
    %p232 = por %p230, %p231
    %p234 = scmp.ne.s32.totalorder %s219, %s233
    %p235 = scmp.eq.s32.totalorder %s31, 0
    %p236 = por %p234, %p235
    %s238 = sadd.s32 %s237, 1
    %p241 = scmp.eq.s32.totalorder %s25, 1
    %p242 = scmp.ne.s32.totalorder %s237, %s239
    %p243 = scmp.eq.s32.totalorder %s25, 0
    %p244 = por %p242, %p243
    %p245 = scmp.ne.s32.totalorder %s237, %s239
    %p246 = scmp.eq.s32.totalorder %s30, 1
    %p247 = por %p245, %p246
    %p248 = scmp.ne.s32.totalorder %s239, %s240
    %p249 = scmp.eq.s32.totalorder %s30, 0
    %p250 = por %p248, %p249
    %p251 = scmp.ne.s32.totalorder %s239, %s240
    %p252 = scmp.eq.s32.totalorder %s31, 1
    %p253 = por %p251, %p252
    %p255 = scmp.ne.s32.totalorder %s240, %s254
    %p256 = scmp.eq.s32.totalorder %s31, 0
    %p257 = por %p255, %p256
    %s259 = sadd.s32 %s258, 1
    %p262 = scmp.eq.s32.totalorder %s25, 1
    %p263 = scmp.ne.s32.totalorder %s258, %s260
    %p264 = scmp.eq.s32.totalorder %s25, 0
    %p265 = por %p263, %p264
    %p266 = scmp.ne.s32.totalorder %s258, %s260
    %p267 = scmp.eq.s32.totalorder %s30, 1
    %p268 = por %p266, %p267
    %p269 = scmp.ne.s32.totalorder %s260, %s261
    %p270 = scmp.eq.s32.totalorder %s30, 0
    %p271 = por %p269, %p270
    %p272 = scmp.ne.s32.totalorder %s260, %s261
    %p273 = scmp.eq.s32.totalorder %s31, 1
    %p274 = por %p272, %p273
    %p276 = scmp.ne.s32.totalorder %s261, %s275
    %p277 = scmp.eq.s32.totalorder %s31, 0
    %p278 = por %p276, %p277
    %s280 = sadd.s32 %s279, 1
    %p283 = scmp.eq.s32.totalorder %s25, 1
    %p284 = scmp.ne.s32.totalorder %s279, %s281
    %p285 = scmp.eq.s32.totalorder %s25, 0
    %p286 = por %p284, %p285
    %p287 = scmp.ne.s32.totalorder %s279, %s281
    %p288 = scmp.eq.s32.totalorder %s30, 1
    %p289 = por %p287, %p288
    %p290 = scmp.ne.s32.totalorder %s281, %s282
    %p291 = scmp.eq.s32.totalorder %s30, 0
    %p292 = por %p290, %p291
    %p293 = scmp.ne.s32.totalorder %s281, %s282
    %p294 = scmp.eq.s32.totalorder %s31, 1
    %p295 = por %p293, %p294
    %p297 = scmp.ne.s32.totalorder %s282, %s296
    %p298 = scmp.eq.s32.totalorder %s31, 0
    %p299 = por %p297, %p298
    %s301 = sadd.s32 %s300, 1
    %p304 = scmp.eq.s32.totalorder %s25, 1
    %p305 = scmp.ne.s32.totalorder %s300, %s302
    %p306 = scmp.eq.s32.totalorder %s25, 0
    %p307 = por %p305, %p306
    %p308 = scmp.ne.s32.totalorder %s300, %s302
    %p309 = scmp.eq.s32.totalorder %s30, 1
    %p310 = por %p308, %p309
    %p311 = scmp.ne.s32.totalorder %s302, %s303
    %p312 = scmp.eq.s32.totalorder %s30, 0
    %p313 = por %p311, %p312
    %p314 = scmp.ne.s32.totalorder %s302, %s303
    %p315 = scmp.eq.s32.totalorder %s31, 1
    %p316 = por %p314, %p315
    %p318 = scmp.ne.s32.totalorder %s303, %s317
    %p319 = scmp.eq.s32.totalorder %s31, 0
    %p320 = por %p318, %p319
    %s322 = sadd.s32 %s321, 1
    %p325 = scmp.eq.s32.totalorder %s25, 1
    %p326 = scmp.ne.s32.totalorder %s321, %s323
    %p327 = scmp.eq.s32.totalorder %s25, 0
    %p328 = por %p326, %p327
    %p329 = scmp.ne.s32.totalorder %s321, %s323
    %p330 = scmp.eq.s32.totalorder %s30, 1
    %p331 = por %p329, %p330
    %p332 = scmp.ne.s32.totalorder %s323, %s324
    %p333 = scmp.eq.s32.totalorder %s30, 0
    %p334 = por %p332, %p333
    %p335 = scmp.ne.s32.totalorder %s323, %s324
    %p336 = scmp.eq.s32.totalorder %s31, 1
    %p337 = por %p335, %p336
    %p339 = scmp.ne.s32.totalorder %s324, %s338
    %p340 = scmp.eq.s32.totalorder %s31, 0
    %p341 = por %p339, %p340
    %s343 = sadd.s32 %s342, 1
    %p346 = scmp.eq.s32.totalorder %s25, 1
    %p347 = scmp.ne.s32.totalorder %s342, %s344
    %p348 = scmp.eq.s32.totalorder %s25, 0
    %p349 = por %p347, %p348
    %p350 = scmp.ne.s32.totalorder %s342, %s344
    %p351 = scmp.eq.s32.totalorder %s30, 1
    %p352 = por %p350, %p351
    %p353 = scmp.ne.s32.totalorder %s344, %s345
    %p354 = scmp.eq.s32.totalorder %s30, 0
    %p355 = por %p353, %p354
    %p356 = scmp.ne.s32.totalorder %s344, %s345
    %p357 = scmp.eq.s32.totalorder %s31, 1
    %p358 = por %p356, %p357
    %p360 = scmp.ne.s32.totalorder %s345, %s359
    %p361 = scmp.eq.s32.totalorder %s31, 0
    %p362 = por %p360, %p361
    %s364 = sadd.s32 %s363, 1
    %p367 = scmp.eq.s32.totalorder %s25, 1
    %p368 = scmp.ne.s32.totalorder %s363, %s365
    %p369 = scmp.eq.s32.totalorder %s25, 0
    %p370 = por %p368, %p369
    %p371 = scmp.ne.s32.totalorder %s363, %s365
    %p372 = scmp.eq.s32.totalorder %s30, 1
    %p373 = por %p371, %p372
    %p374 = scmp.ne.s32.totalorder %s365, %s366
    %p375 = scmp.eq.s32.totalorder %s30, 0
    %p376 = por %p374, %p375
    %p377 = scmp.ne.s32.totalorder %s365, %s366
    %p378 = scmp.eq.s32.totalorder %s31, 1
    %p379 = por %p377, %p378
    %p381 = scmp.ne.s32.totalorder %s366, %s380
    %p382 = scmp.eq.s32.totalorder %s31, 0
    %p383 = por %p381, %p382
    %s385 = sadd.s32 %s384, 1
    %p388 = scmp.eq.s32.totalorder %s25, 1
    %p389 = scmp.ne.s32.totalorder %s384, %s386
    %p390 = scmp.eq.s32.totalorder %s25, 0
    %p391 = por %p389, %p390
    %p392 = scmp.ne.s32.totalorder %s384, %s386
    %p393 = scmp.eq.s32.totalorder %s30, 1
    %p394 = por %p392, %p393
    %p395 = scmp.ne.s32.totalorder %s386, %s387
    %p396 = scmp.eq.s32.totalorder %s30, 0
    %p397 = por %p395, %p396
    %p398 = scmp.ne.s32.totalorder %s386, %s387
    %p399 = scmp.eq.s32.totalorder %s31, 1
    %p400 = por %p398, %p399
    %p402 = scmp.ne.s32.totalorder %s387, %s401
    %p403 = scmp.eq.s32.totalorder %s31, 0
    %p404 = por %p402, %p403
    %s406 = sadd.s32 %s405, 1
    %p409 = scmp.eq.s32.totalorder %s25, 1
    %p410 = scmp.ne.s32.totalorder %s405, %s407
    %p411 = scmp.eq.s32.totalorder %s25, 0
    %p412 = por %p410, %p411
    %p413 = scmp.ne.s32.totalorder %s405, %s407
    %p414 = scmp.eq.s32.totalorder %s30, 1
    %p415 = por %p413, %p414
    %p416 = scmp.ne.s32.totalorder %s407, %s408
    %p417 = scmp.eq.s32.totalorder %s30, 0
    %p418 = por %p416, %p417
    %p419 = scmp.ne.s32.totalorder %s407, %s408
    %p420 = scmp.eq.s32.totalorder %s31, 1
    %p421 = por %p419, %p420
    %p423 = scmp.ne.s32.totalorder %s408, %s422
    %p424 = scmp.eq.s32.totalorder %s31, 0
    %p425 = por %p423, %p424
    %s427 = sadd.s32 %s426, 1
    %p430 = scmp.eq.s32.totalorder %s25, 1
    %p431 = scmp.ne.s32.totalorder %s426, %s428
    %p432 = scmp.eq.s32.totalorder %s25, 0
    %p433 = por %p431, %p432
    %p434 = scmp.ne.s32.totalorder %s426, %s428
    %p435 = scmp.eq.s32.totalorder %s30, 1
    %p436 = por %p434, %p435
    %p437 = scmp.ne.s32.totalorder %s428, %s429
    %p438 = scmp.eq.s32.totalorder %s30, 0
    %p439 = por %p437, %p438
    %p440 = scmp.ne.s32.totalorder %s428, %s429
    %p441 = scmp.eq.s32.totalorder %s31, 1
    %p442 = por %p440, %p441
    %p444 = scmp.ne.s32.totalorder %s429, %s443
    %p445 = scmp.eq.s32.totalorder %s31, 0
    %p446 = por %p444, %p445
    %s447 = ssub.s32 %s25, %s32
    %p448 = scmp.eq.s32.totalorder %s447, 0
    %s450 = sadd.s32 %s449, 1
    %s451 = scalar_select %p448, %s449, %s450
    %p454 = pneg %p448
    %p455 = scmp.eq.s32.totalorder %s25, 1
    %p456 = por %p454, %p455
    %p457 = scmp.ne.s32.totalorder %s449, %s452
    %p458 = scmp.eq.s32.totalorder %s25, 0
    %p459 = por %p457, %p458
    %p460 = scmp.ne.s32.totalorder %s449, %s452
    %p461 = scmp.eq.s32.totalorder %s30, 1
    %p462 = por %p460, %p461
    %p463 = scmp.ne.s32.totalorder %s452, %s453
    %p464 = scmp.eq.s32.totalorder %s30, 0
    %p465 = por %p463, %p464
    %p466 = scmp.ne.s32.totalorder %s452, %s453
    %p467 = scmp.eq.s32.totalorder %s31, 1
    %p468 = por %p466, %p467
    %p470 = scmp.ne.s32.totalorder %s453, %s469
    %p471 = scmp.eq.s32.totalorder %s31, 0
    %p472 = por %p470, %p471
    %p473 = scmp.le.s32.totalorder 1, %s25
    %p474 = scmp.lt.s32.totalorder %s25, 3
    %p475 = pnand %p473, %p474
    %p476 = pneg %p475
    // Predicated region
    $region9: #{query_generation_forward.1} parent=5 // pred_check
      _
    $region10: #{query_generation_forward.1} parent=5 // pred_check_branch
      %478 = sbr.rel (%p475) target = $region12
    $region11: #{query_generation_forward.1} parent=5 // pred_region
      %s479 = ssub.s32 %s25, 1
      // Predicated region
      $region13: #{query_generation_forward.1} parent=11 // pred_check
        %p480 = pneg %p124
      $region14: #{query_generation_forward.1} parent=11 // pred_check_branch
        %482 = sbr.rel (%p480) target = $region16
      $region15: #{query_generation_forward.1} parent=11 // pred_region
        _
      $region16: #{query_generation_forward.1} parent=11 // pred_fallthru
        _
      // Predicated region
      $region17: #{query_generation_forward.1} parent=11 // pred_check
        %p483 = pneg %p145
      $region18: #{query_generation_forward.1} parent=11 // pred_check_branch
        %485 = sbr.rel (%p483) target = $region20
      $region19: #{query_generation_forward.1} parent=11 // pred_region
        _
      $region20: #{query_generation_forward.1} parent=11 // pred_fallthru
        _
      // Predicated region
      $region21: #{query_generation_forward.1} parent=11 // pred_check
        %p486 = pneg %p166
      $region22: #{query_generation_forward.1} parent=11 // pred_check_branch
        %488 = sbr.rel (%p486) target = $region24
      $region23: #{query_generation_forward.1} parent=11 // pred_region
        _
      $region24: #{query_generation_forward.1} parent=11 // pred_fallthru
        _
      // Predicated region
      $region25: #{query_generation_forward.1} parent=11 // pred_check
        %p489 = pneg %p187
      $region26: #{query_generation_forward.1} parent=11 // pred_check_branch
        %491 = sbr.rel (%p489) target = $region28
      $region27: #{query_generation_forward.1} parent=11 // pred_region
        _
      $region28: #{query_generation_forward.1} parent=11 // pred_fallthru
        _
      // Predicated region
      $region29: #{query_generation_forward.1} parent=11 // pred_check
        %p492 = pneg %p208
      $region30: #{query_generation_forward.1} parent=11 // pred_check_branch
        %494 = sbr.rel (%p492) target = $region32
      $region31: #{query_generation_forward.1} parent=11 // pred_region
        _
      $region32: #{query_generation_forward.1} parent=11 // pred_fallthru
        _
      // Predicated region
      $region33: #{query_generation_forward.1} parent=11 // pred_check
        %p495 = pneg %p229
      $region34: #{query_generation_forward.1} parent=11 // pred_check_branch
        %497 = sbr.rel (%p495) target = $region36
      $region35: #{query_generation_forward.1} parent=11 // pred_region
        _
      $region36: #{query_generation_forward.1} parent=11 // pred_fallthru
        _
      // Predicated region
      $region37: #{query_generation_forward.1} parent=11 // pred_check
        %p498 = pneg %p250
      $region38: #{query_generation_forward.1} parent=11 // pred_check_branch
        %500 = sbr.rel (%p498) target = $region40
      $region39: #{query_generation_forward.1} parent=11 // pred_region
        _
      $region40: #{query_generation_forward.1} parent=11 // pred_fallthru
        _
      // Predicated region
      $region41: #{query_generation_forward.1} parent=11 // pred_check
        %p501 = pneg %p271
      $region42: #{query_generation_forward.1} parent=11 // pred_check_branch
        %503 = sbr.rel (%p501) target = $region44
      $region43: #{query_generation_forward.1} parent=11 // pred_region
        _
      $region44: #{query_generation_forward.1} parent=11 // pred_fallthru
        _
      // Predicated region
      $region45: #{query_generation_forward.1} parent=11 // pred_check
        %p504 = pneg %p292
      $region46: #{query_generation_forward.1} parent=11 // pred_check_branch
        %506 = sbr.rel (%p504) target = $region48
      $region47: #{query_generation_forward.1} parent=11 // pred_region
        _
      $region48: #{query_generation_forward.1} parent=11 // pred_fallthru
        _
      // Predicated region
      $region49: #{query_generation_forward.1} parent=11 // pred_check
        %p507 = pneg %p313
      $region50: #{query_generation_forward.1} parent=11 // pred_check_branch
        %509 = sbr.rel (%p507) target = $region52
      $region51: #{query_generation_forward.1} parent=11 // pred_region
        _
      $region52: #{query_generation_forward.1} parent=11 // pred_fallthru
        _
      // Predicated region
      $region53: #{query_generation_forward.1} parent=11 // pred_check
        %p510 = pneg %p334
      $region54: #{query_generation_forward.1} parent=11 // pred_check_branch
        %512 = sbr.rel (%p510) target = $region56
      $region55: #{query_generation_forward.1} parent=11 // pred_region
        _
      $region56: #{query_generation_forward.1} parent=11 // pred_fallthru
        _
      // Predicated region
      $region57: #{query_generation_forward.1} parent=11 // pred_check
        %p513 = pneg %p355
      $region58: #{query_generation_forward.1} parent=11 // pred_check_branch
        %515 = sbr.rel (%p513) target = $region60
      $region59: #{query_generation_forward.1} parent=11 // pred_region
        _
      $region60: #{query_generation_forward.1} parent=11 // pred_fallthru
        _
      // Predicated region
      $region61: #{query_generation_forward.1} parent=11 // pred_check
        %p516 = pneg %p376
      $region62: #{query_generation_forward.1} parent=11 // pred_check_branch
        %518 = sbr.rel (%p516) target = $region64
      $region63: #{query_generation_forward.1} parent=11 // pred_region
        _
      $region64: #{query_generation_forward.1} parent=11 // pred_fallthru
        _
      // Predicated region
      $region65: #{query_generation_forward.1} parent=11 // pred_check
        %p519 = pneg %p397
      $region66: #{query_generation_forward.1} parent=11 // pred_check_branch
        %521 = sbr.rel (%p519) target = $region68
      $region67: #{query_generation_forward.1} parent=11 // pred_region
        _
      $region68: #{query_generation_forward.1} parent=11 // pred_fallthru
        _
      // Predicated region
      $region69: #{query_generation_forward.1} parent=11 // pred_check
        %p522 = pneg %p418
      $region70: #{query_generation_forward.1} parent=11 // pred_check_branch
        %524 = sbr.rel (%p522) target = $region72
      $region71: #{query_generation_forward.1} parent=11 // pred_region
        _
      $region72: #{query_generation_forward.1} parent=11 // pred_fallthru
        _
      // Predicated region
      $region73: #{query_generation_forward.1} parent=11 // pred_check
        %p525 = pneg %p439
      $region74: #{query_generation_forward.1} parent=11 // pred_check_branch
        %527 = sbr.rel (%p525) target = $region76
      $region75: #{query_generation_forward.1} parent=11 // pred_region
        _
      $region76: #{query_generation_forward.1} parent=11 // pred_fallthru
        _
    $region12: #{query_generation_forward.1} parent=5 // pred_fallthru
      _
    %p528 = scmp.lt.s32.totalorder %s25, 2
    // Predicated region
    $region77: #{query_generation_forward.1} parent=5 // pred_check
      %p529 = pneg %p528
    $region78: #{query_generation_forward.1} parent=5 // pred_check_branch
      %531 = sbr.rel (%p529) target = $region80
    $region79: #{query_generation_forward.1} parent=5 // pred_region
      // Predicated region
      $region81: #{query_generation_forward.1} parent=79 // pred_check
        %p532 = pneg %p45
      $region82: #{query_generation_forward.1} parent=79 // pred_check_branch
        %534 = sbr.rel (%p532) target = $region84
      $region83: #{query_generation_forward.1} parent=79 // pred_region
        %p535 = scmp.lt.s32.totalorder %s25, 1
        %s536 = scalar_select %p535, %s25, 1
        %s537 = smul.addr %s536, 8
        %s538 = smul.addr %s537, 8
        %s539 = scalar_lea.vmem %s0, %s538
      $region84: #{query_generation_forward.1} parent=79 // pred_fallthru
        _
      // Predicated region
      $region85: #{query_generation_forward.1} parent=79 // pred_check
        %p540 = pneg %p71
      $region86: #{query_generation_forward.1} parent=79 // pred_check_branch
        %542 = sbr.rel (%p540) target = $region88
      $region87: #{query_generation_forward.1} parent=79 // pred_region
        %p543 = scmp.lt.s32.totalorder %s25, 1
        %s544 = scalar_select %p543, %s25, 1
        %s545 = smul.addr %s544, 2
        %s546 = smul.addr %s545, 8
        %s547 = scalar_lea.vmem %s1, %s546
      $region88: #{query_generation_forward.1} parent=79 // pred_fallthru
        _
      // Predicated region
      $region89: #{query_generation_forward.1} parent=79 // pred_check
        %p548 = pneg %p97
      $region90: #{query_generation_forward.1} parent=79 // pred_check_branch
        %550 = sbr.rel (%p548) target = $region92
      $region91: #{query_generation_forward.1} parent=79 // pred_region
        %p551 = scmp.lt.s32.totalorder %s25, 1
        %s552 = scalar_select %p551, %s25, 1
        %s553 = scalar_lea.vmem %s2, %s552
      $region92: #{query_generation_forward.1} parent=79 // pred_fallthru
        _
    $region80: #{query_generation_forward.1} parent=5 // pred_fallthru
      _
    %p554 = scmp.le.s32.totalorder 1, %s25
    %p555 = scmp.lt.s32.totalorder %s25, 3
    %p556 = pnand %p554, %p555
    %p557 = pneg %p556
    // Predicated region
    $region93: #{query_generation_forward.1} parent=5 // pred_check
      _
    $region94: #{query_generation_forward.1} parent=5 // pred_check_branch
      %559 = sbr.rel (%p556) target = $region96
    $region95: #{query_generation_forward.1} parent=5 // pred_region
      %s560 = ssub.s32 %s25, 1
      %p561 = scmp.lt.s32.totalorder %s30, 1
      %s562 = scalar_select %p561, %s30, 1
      %s563 = smul.addr %s562, 8
      %s564 = smul.addr %s563, 8
      %s565 = scalar_lea.vmem %s0, %s564
      %p566 = pneg %p51
      %p567 = pneg %p48
      %p568 = scmp.lt.s32.totalorder %s30, 1
      %s569 = scalar_select %p568, %s30, 1
      %s570 = smul.addr %s569, 2
      %s571 = smul.addr %s570, 8
      %s572 = scalar_lea.vmem %s1, %s571
      %p573 = pneg %p77
      %p574 = pneg %p74
      %p575 = scmp.lt.s32.totalorder %s30, 1
      %s576 = scalar_select %p575, %s30, 1
      %s577 = scalar_lea.vmem %s2, %s576
      %p578 = pneg %p103
      %p579 = pneg %p100
      %p580 = pneg %p124
      %p581 = pneg %p121
      %p582 = pneg %p145
      %p583 = pneg %p142
      %p584 = pneg %p166
      %p585 = pneg %p163
      %p586 = pneg %p187
      %p587 = pneg %p184
      %p588 = pneg %p208
      %p589 = pneg %p205
      %p590 = pneg %p229
      %p591 = pneg %p226
      %p592 = pneg %p250
      %p593 = pneg %p247
      %p594 = pneg %p271
      %p595 = pneg %p268
      %p596 = pneg %p292
      %p597 = pneg %p289
      %p598 = pneg %p313
      %p599 = pneg %p310
      %p600 = pneg %p334
      %p601 = pneg %p331
      %p602 = pneg %p355
      %p603 = pneg %p352
      %p604 = pneg %p376
      %p605 = pneg %p373
      %p606 = pneg %p397
      %p607 = pneg %p394
      %p608 = pneg %p418
      %p609 = pneg %p415
      %p610 = pneg %p439
      %p611 = pneg %p436
      %p612 = pneg %p465
      %p613 = pneg %p462
      %p614 = scmp.lt.s32.totalorder %s30, 1
      %s615 = scalar_select %p614, %s30, 1
      %s616 = smul.addr %s615, 2
      %s617 = smul.addr %s616, 8
      %s618 = scalar_lea.vmem %s19, %s617
      %p619 = scmp.lt.s32.totalorder %s30, 1
      %s620 = scalar_select %p619, %s30, 1
      %s621 = smul.addr %s620, 8
      %s622 = smul.addr %s621, 8
      %s623 = scalar_lea.vmem %s0, %s622
      %p624 = scmp.lt.s32.totalorder %s30, 1
      %s625 = scalar_select %p624, %s30, 1
      %s626 = smul.addr %s625, 2
      %s627 = smul.addr %s626, 8
      %s628 = scalar_lea.vmem %s1, %s627
      %p629 = scmp.lt.s32.totalorder %s30, 1
      %s630 = scalar_select %p629, %s30, 1
      %s631 = scalar_lea.vmem %s2, %s630
      %p632 = scmp.lt.s32.totalorder %s30, 1
      %s633 = scalar_select %p632, %s30, 1
      %s634 = smul.addr %s633, 2
      %s635 = smul.addr %s634, 8
      %s636 = scalar_lea.vmem %s19, %s635
      %v638 = vld [vmem:[%s4] sm:$0xff]
      %v639 = vld [vmem:[%s4 + $0x8] sm:$0xff]
      %v640 = vld [vmem:[%s4 + $0x10] sm:$0xff]
      %v641 = vld [vmem:[%s4 + $0x18] sm:$0xff]
      %v642 = vld [vmem:[%s4 + $0x20] sm:$0xff]
      %v643 = vld [vmem:[%s4 + $0x28] sm:$0xff]
      %v644 = vld [vmem:[%s4 + $0x30] sm:$0xff]
      %v645 = vld [vmem:[%s4 + $0x38] sm:$0xff]
      %v646 = vld [vmem:[%s623] sm:$0xff]
      %v647 = vld [vmem:[%s623 + $0x8] sm:$0xff]
      %v648 = vld [vmem:[%s623 + $0x10] sm:$0xff]
      %v649 = vld [vmem:[%s623 + $0x18] sm:$0xff]
      %v650 = vld [vmem:[%s623 + $0x20] sm:$0xff]
      %v651 = vld [vmem:[%s623 + $0x28] sm:$0xff]
      %v652 = vld [vmem:[%s623 + $0x30] sm:$0xff]
      %v653 = vld [vmem:[%s623 + $0x38] sm:$0xff]
      %v654 = vld [vmem:[%s3] sm:$0xff]
      %v655 = vld [vmem:[%s3 + $0x8] sm:$0xff]
      %v656 = vld [vmem:[%s3 + $0x10] sm:$0xff]
      %v657 = vld [vmem:[%s3 + $0x18] sm:$0xff]
      %v658 = vld [vmem:[%s3 + $0x20] sm:$0xff]
      %v659 = vld [vmem:[%s3 + $0x28] sm:$0xff]
      %v660 = vld [vmem:[%s3 + $0x30] sm:$0xff]
      %v661 = vld [vmem:[%s3 + $0x38] sm:$0xff]
      %v662 = vrot.slane %v646, 7
      %v663 = vrot.slane %v647, 7
      %v664 = vrot.slane %v648, 7
      %v665 = vrot.slane %v649, 7
      %v666 = vrot.slane %v650, 7
      %v667 = vrot.slane %v651, 7
      %v668 = vrot.slane %v652, 7
      %v669 = vrot.slane %v653, 7
      %v670 = vlaneseq
      %v671 = vshrl.u32 %v670, 7
      %vm672 = vcmp.lt.s32.totalorder %v671, 1
      %v673 = vsel %vm672, %v668, %v669
      %v674 = vsel %vm672, %v667, %v668
      %v675 = vsel %vm672, %v666, %v667
      %v676 = vsel %vm672, %v665, %v666
      %v677 = vsel %vm672, %v664, %v665
      %v678 = vsel %vm672, %v663, %v664
      %v679 = vsel %vm672, %v662, %v663
      %v680 = vsel %vm672, %v669, %v662
      %682 = vset.pattern.permute.xlu0 0
      %683 = vperm.xlu0 %682, %v638
      %v684 = vpop.permute.xlu0 %683
      %687 = vset.pattern.permute.xlu0 0
      %688 = vperm.xlu0 %687, %v639
      %v689 = vpop.permute.xlu0 %688
      %692 = vset.pattern.permute.xlu0 0
      %693 = vperm.xlu0 %692, %v640
      %v694 = vpop.permute.xlu0 %693
      %697 = vset.pattern.permute.xlu0 0
      %698 = vperm.xlu0 %697, %v641
      %v699 = vpop.permute.xlu0 %698
      %702 = vset.pattern.permute.xlu0 0
      %703 = vperm.xlu0 %702, %v642
      %v704 = vpop.permute.xlu0 %703
      %707 = vset.pattern.permute.xlu0 0
      %708 = vperm.xlu0 %707, %v643
      %v709 = vpop.permute.xlu0 %708
      %712 = vset.pattern.permute.xlu0 0
      %713 = vperm.xlu0 %712, %v644
      %v714 = vpop.permute.xlu0 %713
      %717 = vset.pattern.permute.xlu0 0
      %718 = vperm.xlu0 %717, %v645
      %v719 = vpop.permute.xlu0 %718
      %v721 = vmul.f32 %v673, %v684
      %v722 = vmul.f32 %v680, %v689
      %v723 = vmul.f32 %v679, %v694
      %v724 = vmul.f32 %v678, %v699
      %v725 = vmul.f32 %v677, %v704
      %v726 = vmul.f32 %v676, %v709
      %v727 = vmul.f32 %v675, %v714
      %v728 = vmul.f32 %v674, %v719
      %vm729 = vcmask 261120
      %730 = vst.msk [vmem:[#allocation2] sm:$0xff] %vm729, %v721
      %731 = vst.msk [vmem:[#allocation2 + $0x18] sm:$0xff] %vm729, %v722
      %732 = vst.msk [vmem:[#allocation2 + $0x30] sm:$0xff] %vm729, %v723
      %733 = vst.msk [vmem:[#allocation2 + $0x48] sm:$0xff] %vm729, %v724
      %734 = vst.msk [vmem:[#allocation2 + $0x60] sm:$0xff] %vm729, %v725
      %735 = vst.msk [vmem:[#allocation2 + $0x78] sm:$0xff] %vm729, %v726
      %736 = vst.msk [vmem:[#allocation2 + $0x90] sm:$0xff] %vm729, %v727
      %737 = vst.msk [vmem:[#allocation2 + $0xa8] sm:$0xff] %vm729, %v728
      %738 = vset.pattern.permute.xlu0 1
      %739 = vperm.xlu0 %738, %v638
      %v740 = vpop.permute.xlu0 %739
      %742 = vset.pattern.permute.xlu0 1
      %743 = vperm.xlu0 %742, %v639
      %v744 = vpop.permute.xlu0 %743
      %746 = vset.pattern.permute.xlu0 1
      %747 = vperm.xlu0 %746, %v640
      %v748 = vpop.permute.xlu0 %747
      %750 = vset.pattern.permute.xlu0 1
      %751 = vperm.xlu0 %750, %v641
      %v752 = vpop.permute.xlu0 %751
      %754 = vset.pattern.permute.xlu0 1
      %755 = vperm.xlu0 %754, %v642
      %v756 = vpop.permute.xlu0 %755
      %758 = vset.pattern.permute.xlu0 1
      %759 = vperm.xlu0 %758, %v643
      %v760 = vpop.permute.xlu0 %759
      %762 = vset.pattern.permute.xlu0 1
      %763 = vperm.xlu0 %762, %v644
      %v764 = vpop.permute.xlu0 %763
      %766 = vset.pattern.permute.xlu0 1
      %767 = vperm.xlu0 %766, %v645
      %v768 = vpop.permute.xlu0 %767
      %v770 = vmul.f32 %v653, %v740
      %v771 = vmul.f32 %v646, %v744
      %v772 = vmul.f32 %v647, %v748
      %v773 = vmul.f32 %v648, %v752
      %v774 = vmul.f32 %v649, %v756
      %v775 = vmul.f32 %v650, %v760
      %v776 = vmul.f32 %v651, %v764
      %v777 = vmul.f32 %v652, %v768
      %786 = vrot.lane.b32.xlu0 %v770, 32
      %v787 = vpop.permute.xlu0 %786
      %788 = vrot.lane.b32.xlu0 %v771, 32
      %v789 = vpop.permute.xlu0 %788
      %790 = vrot.lane.b32.xlu0 %v772, 32
      %v791 = vpop.permute.xlu0 %790
      %792 = vrot.lane.b32.xlu0 %v773, 32
      %v793 = vpop.permute.xlu0 %792
      %794 = vrot.lane.b32.xlu0 %v774, 32
      %v795 = vpop.permute.xlu0 %794
      %796 = vrot.lane.b32.xlu0 %v775, 32
      %v797 = vpop.permute.xlu0 %796
      %798 = vrot.lane.b32.xlu0 %v776, 32
      %v799 = vpop.permute.xlu0 %798
      %800 = vrot.lane.b32.xlu0 %v777, 32
      %v801 = vpop.permute.xlu0 %800
      %vm810 = vcmask 523520
      %811 = vst.msk [vmem:[#allocation2] sm:$0xff] %vm810, %v787
      %812 = vst.msk [vmem:[#allocation2 + $0x18] sm:$0xff] %vm810, %v789
      %813 = vst.msk [vmem:[#allocation2 + $0x30] sm:$0xff] %vm810, %v791
      %814 = vst.msk [vmem:[#allocation2 + $0x48] sm:$0xff] %vm810, %v793
      %815 = vst.msk [vmem:[#allocation2 + $0x60] sm:$0xff] %vm810, %v795
      %816 = vst.msk [vmem:[#allocation2 + $0x78] sm:$0xff] %vm810, %v797
      %817 = vst.msk [vmem:[#allocation2 + $0x90] sm:$0xff] %vm810, %v799
      %818 = vst.msk [vmem:[#allocation2 + $0xa8] sm:$0xff] %vm810, %v801
      %v819 = vrot.slane %v646, 1
      %v820 = vrot.slane %v647, 1
      %v821 = vrot.slane %v648, 1
      %v822 = vrot.slane %v649, 1
      %v823 = vrot.slane %v650, 1
      %v824 = vrot.slane %v651, 1
      %v825 = vrot.slane %v652, 1
      %v826 = vrot.slane %v653, 1
      %vm827 = vcmp.lt.s32.totalorder %v671, 7
      %v828 = vsel %vm827, %v825, %v826
      %v829 = vsel %vm827, %v824, %v825
      %v830 = vsel %vm827, %v823, %v824
      %v831 = vsel %vm827, %v822, %v823
      %v832 = vsel %vm827, %v821, %v822
      %v833 = vsel %vm827, %v820, %v821
      %v834 = vsel %vm827, %v819, %v820
      %v835 = vsel %vm827, %v826, %v819
      %836 = vset.pattern.permute.xlu0 2
      %837 = vperm.xlu0 %836, %v638
      %v838 = vpop.permute.xlu0 %837
      %840 = vset.pattern.permute.xlu0 2
      %841 = vperm.xlu0 %840, %v639
      %v842 = vpop.permute.xlu0 %841
      %844 = vset.pattern.permute.xlu0 2
      %845 = vperm.xlu0 %844, %v640
      %v846 = vpop.permute.xlu0 %845
      %848 = vset.pattern.permute.xlu0 2
      %849 = vperm.xlu0 %848, %v641
      %v850 = vpop.permute.xlu0 %849
      %852 = vset.pattern.permute.xlu0 2
      %853 = vperm.xlu0 %852, %v642
      %v854 = vpop.permute.xlu0 %853
      %856 = vset.pattern.permute.xlu0 2
      %857 = vperm.xlu0 %856, %v643
      %v858 = vpop.permute.xlu0 %857
      %860 = vset.pattern.permute.xlu0 2
      %861 = vperm.xlu0 %860, %v644
      %v862 = vpop.permute.xlu0 %861
      %864 = vset.pattern.permute.xlu0 2
      %865 = vperm.xlu0 %864, %v645
      %v866 = vpop.permute.xlu0 %865
      %v868 = vmul.f32 %v835, %v838
      %v869 = vmul.f32 %v834, %v842
      %v870 = vmul.f32 %v833, %v846
      %v871 = vmul.f32 %v832, %v850
      %v872 = vmul.f32 %v831, %v854
      %v873 = vmul.f32 %v830, %v858
      %v874 = vmul.f32 %v829, %v862
      %v875 = vmul.f32 %v828, %v866
      %884 = vrot.lane.b32.xlu0 %v868, 64
      %v885 = vpop.permute.xlu0 %884
      %886 = vrot.lane.b32.xlu0 %v869, 64
      %v887 = vpop.permute.xlu0 %886
      %888 = vrot.lane.b32.xlu0 %v870, 64
      %v889 = vpop.permute.xlu0 %888
      %890 = vrot.lane.b32.xlu0 %v871, 64
      %v891 = vpop.permute.xlu0 %890
      %892 = vrot.lane.b32.xlu0 %v872, 64
      %v893 = vpop.permute.xlu0 %892
      %894 = vrot.lane.b32.xlu0 %v873, 64
      %v895 = vpop.permute.xlu0 %894
      %896 = vrot.lane.b32.xlu0 %v874, 64
      %v897 = vpop.permute.xlu0 %896
      %898 = vrot.lane.b32.xlu0 %v875, 64
      %v899 = vpop.permute.xlu0 %898
      %vm908 = vcmask 785920
      %909 = vst.msk [vmem:[#allocation2] sm:$0xff] %vm908, %v885
      %910 = vst.msk [vmem:[#allocation2 + $0x18] sm:$0xff] %vm908, %v887
      %911 = vst.msk [vmem:[#allocation2 + $0x30] sm:$0xff] %vm908, %v889
      %912 = vst.msk [vmem:[#allocation2 + $0x48] sm:$0xff] %vm908, %v891
      %913 = vst.msk [vmem:[#allocation2 + $0x60] sm:$0xff] %vm908, %v893
      %914 = vst.msk [vmem:[#allocation2 + $0x78] sm:$0xff] %vm908, %v895
      %915 = vst.msk [vmem:[#allocation2 + $0x90] sm:$0xff] %vm908, %v897
      %916 = vst.msk [vmem:[#allocation2 + $0xa8] sm:$0xff] %vm908, %v899
      %917 = vset.pattern.permute.xlu0 3
      %918 = vperm.xlu0 %917, %v638
      %v919 = vpop.permute.xlu0 %918
      %921 = vset.pattern.permute.xlu0 3
      %922 = vperm.xlu0 %921, %v639
      %v923 = vpop.permute.xlu0 %922
      %925 = vset.pattern.permute.xlu0 3
      %926 = vperm.xlu0 %925, %v640
      %v927 = vpop.permute.xlu0 %926
      %929 = vset.pattern.permute.xlu0 3
      %930 = vperm.xlu0 %929, %v641
      %v931 = vpop.permute.xlu0 %930
      %933 = vset.pattern.permute.xlu0 3
      %934 = vperm.xlu0 %933, %v642
      %v935 = vpop.permute.xlu0 %934
      %937 = vset.pattern.permute.xlu0 3
      %938 = vperm.xlu0 %937, %v643
      %v939 = vpop.permute.xlu0 %938
      %941 = vset.pattern.permute.xlu0 3
      %942 = vperm.xlu0 %941, %v644
      %v943 = vpop.permute.xlu0 %942
      %945 = vset.pattern.permute.xlu0 3
      %946 = vperm.xlu0 %945, %v645
      %v947 = vpop.permute.xlu0 %946
      %v949 = vmul.f32 %v680, %v919
      %v950 = vmul.f32 %v679, %v923
      %v951 = vmul.f32 %v678, %v927
      %v952 = vmul.f32 %v677, %v931
      %v953 = vmul.f32 %v676, %v935
      %v954 = vmul.f32 %v675, %v939
      %v955 = vmul.f32 %v674, %v943
      %v956 = vmul.f32 %v673, %v947
      %965 = vrot.lane.b32.xlu0 %v949, 96
      %v966 = vpop.permute.xlu0 %965
      %967 = vrot.lane.b32.xlu0 %v950, 96
      %v968 = vpop.permute.xlu0 %967
      %969 = vrot.lane.b32.xlu0 %v951, 96
      %v970 = vpop.permute.xlu0 %969
      %971 = vrot.lane.b32.xlu0 %v952, 96
      %v972 = vpop.permute.xlu0 %971
      %973 = vrot.lane.b32.xlu0 %v953, 96
      %v974 = vpop.permute.xlu0 %973
      %975 = vrot.lane.b32.xlu0 %v954, 96
      %v976 = vpop.permute.xlu0 %975
      %977 = vrot.lane.b32.xlu0 %v955, 96
      %v978 = vpop.permute.xlu0 %977
      %979 = vrot.lane.b32.xlu0 %v956, 96
      %v980 = vpop.permute.xlu0 %979
      %vm989 = vcmask 1048320
      %990 = vst.msk [vmem:[#allocation2] sm:$0xff] %vm989, %v966
      %991 = vst.msk [vmem:[#allocation2 + $0x18] sm:$0xff] %vm989, %v968
      %992 = vst.msk [vmem:[#allocation2 + $0x30] sm:$0xff] %vm989, %v970
      %993 = vst.msk [vmem:[#allocation2 + $0x48] sm:$0xff] %vm989, %v972
      %994 = vst.msk [vmem:[#allocation2 + $0x60] sm:$0xff] %vm989, %v974
      %995 = vst.msk [vmem:[#allocation2 + $0x78] sm:$0xff] %vm989, %v976
      %996 = vst.msk [vmem:[#allocation2 + $0x90] sm:$0xff] %vm989, %v978
      %997 = vst.msk [vmem:[#allocation2 + $0xa8] sm:$0xff] %vm989, %v980
      %998 = vst.msk [vmem:[#allocation2 + $0x8] sm:$0xff] %vm729, %v646
      %999 = vst.msk [vmem:[#allocation2 + $0x20] sm:$0xff] %vm729, %v647
      %1000 = vst.msk [vmem:[#allocation2 + $0x38] sm:$0xff] %vm729, %v648
      %1001 = vst.msk [vmem:[#allocation2 + $0x50] sm:$0xff] %vm729, %v649
      %1002 = vst.msk [vmem:[#allocation2 + $0x68] sm:$0xff] %vm729, %v650
      %1003 = vst.msk [vmem:[#allocation2 + $0x80] sm:$0xff] %vm729, %v651
      %1004 = vst.msk [vmem:[#allocation2 + $0x98] sm:$0xff] %vm729, %v652
      %1005 = vst.msk [vmem:[#allocation2 + $0xb0] sm:$0xff] %vm729, %v653
      %1006 = vset.pattern.permute.xlu0 4
      %1007 = vperm.xlu0 %1006, %v638
      %v1008 = vpop.permute.xlu0 %1007
      %1010 = vset.pattern.permute.xlu0 4
      %1011 = vperm.xlu0 %1010, %v639
      %v1012 = vpop.permute.xlu0 %1011
      %1014 = vset.pattern.permute.xlu0 4
      %1015 = vperm.xlu0 %1014, %v640
      %v1016 = vpop.permute.xlu0 %1015
      %1018 = vset.pattern.permute.xlu0 4
      %1019 = vperm.xlu0 %1018, %v641
      %v1020 = vpop.permute.xlu0 %1019
      %1022 = vset.pattern.permute.xlu0 4
      %1023 = vperm.xlu0 %1022, %v642
      %v1024 = vpop.permute.xlu0 %1023
      %1026 = vset.pattern.permute.xlu0 4
      %1027 = vperm.xlu0 %1026, %v643
      %v1028 = vpop.permute.xlu0 %1027
      %1030 = vset.pattern.permute.xlu0 4
      %1031 = vperm.xlu0 %1030, %v644
      %v1032 = vpop.permute.xlu0 %1031
      %1034 = vset.pattern.permute.xlu0 4
      %1035 = vperm.xlu0 %1034, %v645
      %v1036 = vpop.permute.xlu0 %1035
      %v1038 = vmul.f32 %v834, %v1008
      %v1039 = vmul.f32 %v833, %v1012
      %v1040 = vmul.f32 %v832, %v1016
      %v1041 = vmul.f32 %v831, %v1020
      %v1042 = vmul.f32 %v830, %v1024
      %v1043 = vmul.f32 %v829, %v1028
      %v1044 = vmul.f32 %v828, %v1032
      %v1045 = vmul.f32 %v835, %v1036
      %1054 = vrot.lane.b32.xlu0 %v1038, 32
      %v1055 = vpop.permute.xlu0 %1054
      %1056 = vrot.lane.b32.xlu0 %v1039, 32
      %v1057 = vpop.permute.xlu0 %1056
      %1058 = vrot.lane.b32.xlu0 %v1040, 32
      %v1059 = vpop.permute.xlu0 %1058
      %1060 = vrot.lane.b32.xlu0 %v1041, 32
      %v1061 = vpop.permute.xlu0 %1060
      %1062 = vrot.lane.b32.xlu0 %v1042, 32
      %v1063 = vpop.permute.xlu0 %1062
      %1064 = vrot.lane.b32.xlu0 %v1043, 32
      %v1065 = vpop.permute.xlu0 %1064
      %1066 = vrot.lane.b32.xlu0 %v1044, 32
      %v1067 = vpop.permute.xlu0 %1066
      %1068 = vrot.lane.b32.xlu0 %v1045, 32
      %v1069 = vpop.permute.xlu0 %1068
      %1078 = vst.msk [vmem:[#allocation2 + $0x8] sm:$0xff] %vm810, %v1055
      %1079 = vst.msk [vmem:[#allocation2 + $0x20] sm:$0xff] %vm810, %v1057
      %1080 = vst.msk [vmem:[#allocation2 + $0x38] sm:$0xff] %vm810, %v1059
      %1081 = vst.msk [vmem:[#allocation2 + $0x50] sm:$0xff] %vm810, %v1061
      %1082 = vst.msk [vmem:[#allocation2 + $0x68] sm:$0xff] %vm810, %v1063
      %1083 = vst.msk [vmem:[#allocation2 + $0x80] sm:$0xff] %vm810, %v1065
      %1084 = vst.msk [vmem:[#allocation2 + $0x98] sm:$0xff] %vm810, %v1067
      %1085 = vst.msk [vmem:[#allocation2 + $0xb0] sm:$0xff] %vm810, %v1069
      %1086 = vset.pattern.permute.xlu0 5
      %1087 = vperm.xlu0 %1086, %v638
      %v1088 = vpop.permute.xlu0 %1087
      %1090 = vset.pattern.permute.xlu0 5
      %1091 = vperm.xlu0 %1090, %v639
      %v1092 = vpop.permute.xlu0 %1091
      %1094 = vset.pattern.permute.xlu0 5
      %1095 = vperm.xlu0 %1094, %v640
      %v1096 = vpop.permute.xlu0 %1095
      %1098 = vset.pattern.permute.xlu0 5
      %1099 = vperm.xlu0 %1098, %v641
      %v1100 = vpop.permute.xlu0 %1099
      %1102 = vset.pattern.permute.xlu0 5
      %1103 = vperm.xlu0 %1102, %v642
      %v1104 = vpop.permute.xlu0 %1103
      %1106 = vset.pattern.permute.xlu0 5
      %1107 = vperm.xlu0 %1106, %v643
      %v1108 = vpop.permute.xlu0 %1107
      %1110 = vset.pattern.permute.xlu0 5
      %1111 = vperm.xlu0 %1110, %v644
      %v1112 = vpop.permute.xlu0 %1111
      %1114 = vset.pattern.permute.xlu0 5
      %1115 = vperm.xlu0 %1114, %v645
      %v1116 = vpop.permute.xlu0 %1115
      %v1118 = vmul.f32 %v679, %v1088
      %v1119 = vmul.f32 %v678, %v1092
      %v1120 = vmul.f32 %v677, %v1096
      %v1121 = vmul.f32 %v676, %v1100
      %v1122 = vmul.f32 %v675, %v1104
      %v1123 = vmul.f32 %v674, %v1108
      %v1124 = vmul.f32 %v673, %v1112
      %v1125 = vmul.f32 %v680, %v1116
      %1134 = vrot.lane.b32.xlu0 %v1118, 64
      %v1135 = vpop.permute.xlu0 %1134
      %1136 = vrot.lane.b32.xlu0 %v1119, 64
      %v1137 = vpop.permute.xlu0 %1136
      %1138 = vrot.lane.b32.xlu0 %v1120, 64
      %v1139 = vpop.permute.xlu0 %1138
      %1140 = vrot.lane.b32.xlu0 %v1121, 64
      %v1141 = vpop.permute.xlu0 %1140
      %1142 = vrot.lane.b32.xlu0 %v1122, 64
      %v1143 = vpop.permute.xlu0 %1142
      %1144 = vrot.lane.b32.xlu0 %v1123, 64
      %v1145 = vpop.permute.xlu0 %1144
      %1146 = vrot.lane.b32.xlu0 %v1124, 64
      %v1147 = vpop.permute.xlu0 %1146
      %1148 = vrot.lane.b32.xlu0 %v1125, 64
      %v1149 = vpop.permute.xlu0 %1148
      %1158 = vst.msk [vmem:[#allocation2 + $0x8] sm:$0xff] %vm908, %v1135
      %1159 = vst.msk [vmem:[#allocation2 + $0x20] sm:$0xff] %vm908, %v1137
      %1160 = vst.msk [vmem:[#allocation2 + $0x38] sm:$0xff] %vm908, %v1139
      %1161 = vst.msk [vmem:[#allocation2 + $0x50] sm:$0xff] %vm908, %v1141
      %1162 = vst.msk [vmem:[#allocation2 + $0x68] sm:$0xff] %vm908, %v1143
      %1163 = vst.msk [vmem:[#allocation2 + $0x80] sm:$0xff] %vm908, %v1145
      %1164 = vst.msk [vmem:[#allocation2 + $0x98] sm:$0xff] %vm908, %v1147
      %1165 = vst.msk [vmem:[#allocation2 + $0xb0] sm:$0xff] %vm908, %v1149
      %1166 = vset.pattern.permute.xlu0 6
      %1167 = vperm.xlu0 %1166, %v638
      %v1168 = vpop.permute.xlu0 %1167
      %1170 = vset.pattern.permute.xlu0 6
      %1171 = vperm.xlu0 %1170, %v639
      %v1172 = vpop.permute.xlu0 %1171
      %1174 = vset.pattern.permute.xlu0 6
      %1175 = vperm.xlu0 %1174, %v640
      %v1176 = vpop.permute.xlu0 %1175
      %1178 = vset.pattern.permute.xlu0 6
      %1179 = vperm.xlu0 %1178, %v641
      %v1180 = vpop.permute.xlu0 %1179
      %1182 = vset.pattern.permute.xlu0 6
      %1183 = vperm.xlu0 %1182, %v642
      %v1184 = vpop.permute.xlu0 %1183
      %1186 = vset.pattern.permute.xlu0 6
      %1187 = vperm.xlu0 %1186, %v643
      %v1188 = vpop.permute.xlu0 %1187
      %1190 = vset.pattern.permute.xlu0 6
      %1191 = vperm.xlu0 %1190, %v644
      %v1192 = vpop.permute.xlu0 %1191
      %1194 = vset.pattern.permute.xlu0 6
      %1195 = vperm.xlu0 %1194, %v645
      %v1196 = vpop.permute.xlu0 %1195
      %v1198 = vmul.f32 %v647, %v1168
      %v1199 = vmul.f32 %v648, %v1172
      %v1200 = vmul.f32 %v649, %v1176
      %v1201 = vmul.f32 %v650, %v1180
      %v1202 = vmul.f32 %v651, %v1184
      %v1203 = vmul.f32 %v652, %v1188
      %v1204 = vmul.f32 %v653, %v1192
      %v1205 = vmul.f32 %v646, %v1196
      %1214 = vrot.lane.b32.xlu0 %v1198, 96
      %v1215 = vpop.permute.xlu0 %1214
      %1216 = vrot.lane.b32.xlu0 %v1199, 96
      %v1217 = vpop.permute.xlu0 %1216
      %1218 = vrot.lane.b32.xlu0 %v1200, 96
      %v1219 = vpop.permute.xlu0 %1218
      %1220 = vrot.lane.b32.xlu0 %v1201, 96
      %v1221 = vpop.permute.xlu0 %1220
      %1222 = vrot.lane.b32.xlu0 %v1202, 96
      %v1223 = vpop.permute.xlu0 %1222
      %1224 = vrot.lane.b32.xlu0 %v1203, 96
      %v1225 = vpop.permute.xlu0 %1224
      %1226 = vrot.lane.b32.xlu0 %v1204, 96
      %v1227 = vpop.permute.xlu0 %1226
      %1228 = vrot.lane.b32.xlu0 %v1205, 96
      %v1229 = vpop.permute.xlu0 %1228
      %1238 = vst.msk [vmem:[#allocation2 + $0x8] sm:$0xff] %vm989, %v1215
      %1239 = vst.msk [vmem:[#allocation2 + $0x20] sm:$0xff] %vm989, %v1217
      %1240 = vst.msk [vmem:[#allocation2 + $0x38] sm:$0xff] %vm989, %v1219
      %1241 = vst.msk [vmem:[#allocation2 + $0x50] sm:$0xff] %vm989, %v1221
      %1242 = vst.msk [vmem:[#allocation2 + $0x68] sm:$0xff] %vm989, %v1223
      %1243 = vst.msk [vmem:[#allocation2 + $0x80] sm:$0xff] %vm989, %v1225
      %1244 = vst.msk [vmem:[#allocation2 + $0x98] sm:$0xff] %vm989, %v1227
      %1245 = vst.msk [vmem:[#allocation2 + $0xb0] sm:$0xff] %vm989, %v1229
      %1246 = vset.pattern.permute.xlu0 7
      %1247 = vperm.xlu0 %1246, %v638
      %v1248 = vpop.permute.xlu0 %1247
      %1250 = vset.pattern.permute.xlu0 7
      %1251 = vperm.xlu0 %1250, %v639
      %v1252 = vpop.permute.xlu0 %1251
      %1254 = vset.pattern.permute.xlu0 7
      %1255 = vperm.xlu0 %1254, %v640
      %v1256 = vpop.permute.xlu0 %1255
      %1258 = vset.pattern.permute.xlu0 7
      %1259 = vperm.xlu0 %1258, %v641
      %v1260 = vpop.permute.xlu0 %1259
      %1262 = vset.pattern.permute.xlu0 7
      %1263 = vperm.xlu0 %1262, %v642
      %v1264 = vpop.permute.xlu0 %1263
      %1266 = vset.pattern.permute.xlu0 7
      %1267 = vperm.xlu0 %1266, %v643
      %v1268 = vpop.permute.xlu0 %1267
      %1270 = vset.pattern.permute.xlu0 7
      %1271 = vperm.xlu0 %1270, %v644
      %v1272 = vpop.permute.xlu0 %1271
      %1274 = vset.pattern.permute.xlu0 7
      %1275 = vperm.xlu0 %1274, %v645
      %v1276 = vpop.permute.xlu0 %1275
      %v1278 = vmul.f32 %v833, %v1248
      %v1279 = vmul.f32 %v832, %v1252
      %v1280 = vmul.f32 %v831, %v1256
      %v1281 = vmul.f32 %v830, %v1260
      %v1282 = vmul.f32 %v829, %v1264
      %v1283 = vmul.f32 %v828, %v1268
      %v1284 = vmul.f32 %v835, %v1272
      %v1285 = vmul.f32 %v834, %v1276
      %1286 = vst.msk [vmem:[#allocation2 + $0x10] sm:$0xff] %vm729, %v1278
      %1287 = vst.msk [vmem:[#allocation2 + $0x28] sm:$0xff] %vm729, %v1279
      %1288 = vst.msk [vmem:[#allocation2 + $0x40] sm:$0xff] %vm729, %v1280
      %1289 = vst.msk [vmem:[#allocation2 + $0x58] sm:$0xff] %vm729, %v1281
      %1290 = vst.msk [vmem:[#allocation2 + $0x70] sm:$0xff] %vm729, %v1282
      %1291 = vst.msk [vmem:[#allocation2 + $0x88] sm:$0xff] %vm729, %v1283
      %1292 = vst.msk [vmem:[#allocation2 + $0xa0] sm:$0xff] %vm729, %v1284
      %1293 = vst.msk [vmem:[#allocation2 + $0xb8] sm:$0xff] %vm729, %v1285
      %v1294 = vld [vmem:[#allocation2] sm:$0xff]
      %v1295 = vld [vmem:[#allocation2 + $0x8] sm:$0xff]
      %v1296 = vld [vmem:[#allocation2 + $0x10] sm:$0xff]
      %v1297 = vld [vmem:[#allocation2 + $0x18] sm:$0xff]
      %v1298 = vld [vmem:[#allocation2 + $0x20] sm:$0xff]
      %v1299 = vld [vmem:[#allocation2 + $0x28] sm:$0xff]
      %v1300 = vld [vmem:[#allocation2 + $0x30] sm:$0xff]
      %v1301 = vld [vmem:[#allocation2 + $0x38] sm:$0xff]
      %v1302 = vld [vmem:[#allocation2 + $0x40] sm:$0xff]
      %v1303 = vld [vmem:[#allocation2 + $0x48] sm:$0xff]
      %v1304 = vld [vmem:[#allocation2 + $0x50] sm:$0xff]
      %v1305 = vld [vmem:[#allocation2 + $0x58] sm:$0xff]
      %v1306 = vld [vmem:[#allocation2 + $0x60] sm:$0xff]
      %v1307 = vld [vmem:[#allocation2 + $0x68] sm:$0xff]
      %v1308 = vld [vmem:[#allocation2 + $0x70] sm:$0xff]
      %v1309 = vld [vmem:[#allocation2 + $0x78] sm:$0xff]
      %v1310 = vld [vmem:[#allocation2 + $0x80] sm:$0xff]
      %v1311 = vld [vmem:[#allocation2 + $0x88] sm:$0xff]
      %v1312 = vld [vmem:[#allocation2 + $0x90] sm:$0xff]
      %v1313 = vld [vmem:[#allocation2 + $0x98] sm:$0xff]
      %v1314 = vld [vmem:[#allocation2 + $0xa0] sm:$0xff]
      %v1315 = vld [vmem:[#allocation2 + $0xa8] sm:$0xff]
      %v1316 = vld [vmem:[#allocation2 + $0xb0] sm:$0xff]
      %v1317 = vld [vmem:[#allocation2 + $0xb8] sm:$0xff]
      %v1318 = vpack.c.bf16 %v1297, %v1294
      %v1319 = vpack.c.bf16 %v1298, %v1295
      %v1320 = vpack.c.bf16 %v1299, %v1296
      %v1321 = vpack.c.bf16 %v1303, %v1300
      %v1322 = vpack.c.bf16 %v1304, %v1301
      %v1323 = vpack.c.bf16 %v1305, %v1302
      %v1324 = vpack.c.bf16 %v1309, %v1306
      %v1325 = vpack.c.bf16 %v1310, %v1307
      %v1326 = vpack.c.bf16 %v1311, %v1308
      %v1327 = vpack.c.bf16 %v1315, %v1312
      %v1328 = vpack.c.bf16 %v1316, %v1313
      %v1329 = vpack.c.bf16 %v1317, %v1314
      %v1330 = vld [vmem:[%s5] sm:$0xf]
      %v1331 = vld [vmem:[%s5 + $0x4] sm:$0xf]
      %v1332 = vld [vmem:[%s5 + $0x8] sm:$0xf]
      %v1333 = vld [vmem:[%s5 + $0xc] sm:$0xf]
      %v1334 = vld [vmem:[%s5 + $0x10] sm:$0xf]
      %v1335 = vld [vmem:[%s5 + $0x14] sm:$0xf]
      %v1336 = vld [vmem:[%s5 + $0x18] sm:$0xf]
      %v1337 = vld [vmem:[%s5 + $0x1c] sm:$0xf]
      %v1338 = vld [vmem:[%s5 + $0x20] sm:$0xf]
      %v1339 = vld [vmem:[%s5 + $0x24] sm:$0xf]
      %v1340 = vld [vmem:[%s5 + $0x28] sm:$0xf]
      %v1341 = vld [vmem:[%s5 + $0x2c] sm:$0xf]
      %v1342 = vld [vmem:[%s5 + $0x30] sm:$0xf]
      %v1343 = vld [vmem:[%s5 + $0x34] sm:$0xf]
      %v1344 = vld [vmem:[%s5 + $0x38] sm:$0xf]
      %v1345 = vld [vmem:[%s5 + $0x3c] sm:$0xf]
      %v1346 = vld [vmem:[%s5 + $0x40] sm:$0xf]
      %v1347 = vld [vmem:[%s5 + $0x44] sm:$0xf]
      %v1348 = vld [vmem:[%s5 + $0x48] sm:$0xf]
      %v1349 = vld [vmem:[%s5 + $0x4c] sm:$0xf]
      %v1350 = vld [vmem:[%s5 + $0x50] sm:$0xf]
      %v1351 = vld [vmem:[%s5 + $0x54] sm:$0xf]
      %v1352 = vld [vmem:[%s5 + $0x58] sm:$0xf]
      %v1353 = vld [vmem:[%s5 + $0x5c] sm:$0xf]
      %v1354 = vld [vmem:[%s5 + $0x60] sm:$0xf]
      %v1355 = vld [vmem:[%s5 + $0x64] sm:$0xf]
      %v1356 = vld [vmem:[%s5 + $0x68] sm:$0xf]
      %v1357 = vld [vmem:[%s5 + $0x6c] sm:$0xf]
      %v1358 = vld [vmem:[%s5 + $0x70] sm:$0xf]
      %v1359 = vld [vmem:[%s5 + $0x74] sm:$0xf]
      %v1360 = vld [vmem:[%s5 + $0x78] sm:$0xf]
      %v1361 = vld [vmem:[%s5 + $0x7c] sm:$0xf]
      %v1362 = vld [vmem:[%s5 + $0x80] sm:$0xf]
      %v1363 = vld [vmem:[%s5 + $0x84] sm:$0xf]
      %v1364 = vld [vmem:[%s5 + $0x88] sm:$0xf]
      %v1365 = vld [vmem:[%s5 + $0x8c] sm:$0xf]
      %v1402 = vunpack.c.l.b16 %v1330
      %v1403 = vunpack.c.l.b16 %v1331
      %v1404 = vunpack.c.l.b16 %v1332
      %v1405 = vunpack.c.l.b16 %v1333
      %v1406 = vunpack.c.l.b16 %v1334
      %v1407 = vunpack.c.l.b16 %v1335
      %v1408 = vunpack.c.l.b16 %v1336
      %v1409 = vunpack.c.l.b16 %v1337
      %v1410 = vunpack.c.l.b16 %v1338
      %v1411 = vunpack.c.l.b16 %v1339
      %v1412 = vunpack.c.l.b16 %v1340
      %v1413 = vunpack.c.l.b16 %v1341
      %v1414 = vunpack.c.l.b16 %v1342
      %v1415 = vunpack.c.l.b16 %v1343
      %v1416 = vunpack.c.l.b16 %v1344
      %v1417 = vunpack.c.l.b16 %v1345
      %v1418 = vunpack.c.l.b16 %v1346
      %v1419 = vunpack.c.l.b16 %v1347
      %v1420 = vunpack.c.l.b16 %v1348
      %v1421 = vunpack.c.l.b16 %v1349
      %v1422 = vunpack.c.l.b16 %v1350
      %v1423 = vunpack.c.l.b16 %v1351
      %v1424 = vunpack.c.l.b16 %v1352
      %v1425 = vunpack.c.l.b16 %v1353
      %v1426 = vunpack.c.l.b16 %v1354
      %v1427 = vunpack.c.l.b16 %v1355
      %v1428 = vunpack.c.l.b16 %v1356
      %v1429 = vunpack.c.l.b16 %v1357
      %v1430 = vunpack.c.l.b16 %v1358
      %v1431 = vunpack.c.l.b16 %v1359
      %v1432 = vunpack.c.l.b16 %v1360
      %v1433 = vunpack.c.l.b16 %v1361
      %v1434 = vunpack.c.l.b16 %v1362
      %v1435 = vunpack.c.l.b16 %v1363
      %v1436 = vunpack.c.l.b16 %v1364
      %v1437 = vunpack.c.l.b16 %v1365
      %v1438 = vpack.c.b16 %v1403, %v1402
      %v1439 = vpack.c.b16 %v1405, %v1404
      %v1440 = vpack.c.b16 %v1407, %v1406
      %v1441 = vpack.c.b16 %v1409, %v1408
      %v1442 = vpack.c.b16 %v1411, %v1410
      %v1443 = vpack.c.b16 %v1413, %v1412
      %v1444 = vpack.c.b16 %v1415, %v1414
      %v1445 = vpack.c.b16 %v1417, %v1416
      %v1446 = vpack.c.b16 %v1419, %v1418
      %v1447 = vpack.c.b16 %v1421, %v1420
      %v1448 = vpack.c.b16 %v1423, %v1422
      %v1449 = vpack.c.b16 %v1425, %v1424
      %v1450 = vpack.c.b16 %v1427, %v1426
      %v1451 = vpack.c.b16 %v1429, %v1428
      %v1452 = vpack.c.b16 %v1431, %v1430
      %v1453 = vpack.c.b16 %v1433, %v1432
      %v1454 = vpack.c.b16 %v1435, %v1434
      %v1455 = vpack.c.b16 %v1437, %v1436
      %v1475 = vsel %vm729, %v1320, 0
      %v1478 = vsel %vm729, %v1323, 0
      %v1481 = vsel %vm729, %v1326, 0
      %v1484 = vsel %vm729, %v1329, 0
      %1486 = vmatprep.subr.bf16.mxu0 0
      %1487 = vmatpush1.bf16.msra.mxu0 %v1445
      %1488 = vmatprep.subr.bf16.mxu0 0
      %1489 = vmatpush1.bf16.msra.mxu0 %v1444
      %1490 = vmatprep.subr.bf16.mxu0 0
      %1491 = vmatpush1.bf16.msra.mxu0 %v1443
      %1492 = vmatprep.subr.bf16.mxu0 0
      %1493 = vmatpush1.bf16.msra.mxu0 %v1442
      %1494 = vmatprep.subr.bf16.mxu0 0
      %1495 = vmatpush1.bf16.msra.mxu0 %v1441
      %1496 = vmatprep.subr.bf16.mxu0 0
      %1497 = vmatpush1.bf16.msra.mxu0 %v1440
      %1498 = vmatprep.subr.bf16.mxu0 0
      %1499 = vmatpush1.bf16.msra.mxu0 %v1439
      %1500 = vmatprep.subr.bf16.mxu0 0
      %1501 = vmatpush1.bf16.msra.mxu0 %v1438
      %1502 = vmatprep.subr.bf16.mxu0 0
      %1503 = vmatpush2.bf16.msra.mxu0 %v1453
      %1504 = vmatprep.subr.bf16.mxu0 0
      %1505 = vmatpush2.bf16.msra.mxu0 %v1452
      %1506 = vmatprep.subr.bf16.mxu0 0
      %1507 = vmatpush2.bf16.msra.mxu0 %v1451
      %1508 = vmatprep.subr.bf16.mxu0 0
      %1509 = vmatpush2.bf16.msra.mxu0 %v1450
      %1510 = vmatprep.subr.bf16.mxu0 0
      %1511 = vmatpush2.bf16.msra.mxu0 %v1449
      %1512 = vmatprep.subr.bf16.mxu0 0
      %1513 = vmatpush2.bf16.msra.mxu0 %v1448
      %1514 = vmatprep.subr.bf16.mxu0 0
      %1515 = vmatpush2.bf16.msra.mxu0 %v1447
      %1516 = vmatprep.subr.bf16.mxu0 0
      %1517 = vmatpush2.bf16.msra.mxu0 %v1446
      %1518 = vmatprep.mubr.bf16.mxu0 %v1319
      %1519 = vmatmul.mubr.bf16.gmra.mxu0 %v1318
      %v1520 = vpop.f32.mrf.mxu0
      %v1521 = vadd.f32 %v654, %v1520
      %v1522 = vpop.f32.mrf.mxu0
      %v1523 = vpop.f32.mrf.mxu0
      %v1524 = vadd.f32 %v655, %v1523
      %v1525 = vpop.f32.mrf.mxu0
      %1526 = vmatprep.mubr.bf16.mxu0 %v1322
      %1527 = vmatmul.mubr.bf16.gmra.mxu0 %v1321
      %v1528 = vpop.f32.mrf.mxu0
      %v1529 = vadd.f32 %v656, %v1528
      %v1530 = vpop.f32.mrf.mxu0
      %v1531 = vpop.f32.mrf.mxu0
      %v1532 = vadd.f32 %v657, %v1531
      %v1533 = vpop.f32.mrf.mxu0
      %1534 = vmatprep.mubr.bf16.mxu0 %v1325
      %1535 = vmatmul.mubr.bf16.gmra.mxu0 %v1324
      %v1536 = vpop.f32.mrf.mxu0
      %v1537 = vadd.f32 %v658, %v1536
      %v1538 = vpop.f32.mrf.mxu0
      %v1539 = vpop.f32.mrf.mxu0
      %v1540 = vadd.f32 %v659, %v1539
      %v1541 = vpop.f32.mrf.mxu0
      %1542 = vmatprep.mubr.bf16.mxu0 %v1328
      %1543 = vmatmul.mubr.bf16.gmra.mxu0 %v1327
      %v1544 = vpop.f32.mrf.mxu0
      %v1545 = vadd.f32 %v660, %v1544
      %v1546 = vpop.f32.mrf.mxu0
      %v1547 = vpop.f32.mrf.mxu0
      %v1548 = vadd.f32 %v661, %v1547
      %v1549 = vpop.f32.mrf.mxu0
      %1550 = vdwg.mxu0
      %1551 = vmatprep.subr.bf16.mxu0 0
      %1552 = vmatpush1.bf16.msra.mxu0 0
      %1553 = vmatprep.subr.bf16.mxu0 0
      %1554 = vmatpush1.bf16.msra.mxu0 0
      %1555 = vmatprep.subr.bf16.mxu0 0
      %1556 = vmatpush1.bf16.msra.mxu0 0
      %1557 = vmatprep.subr.bf16.mxu0 0
      %1558 = vmatpush1.bf16.msra.mxu0 0
      %1559 = vmatprep.subr.bf16.mxu0 0
      %1560 = vmatpush1.bf16.msra.mxu0 0
      %1561 = vmatprep.subr.bf16.mxu0 0
      %1562 = vmatpush1.bf16.msra.mxu0 0
      %1563 = vmatprep.subr.bf16.mxu0 0
      %1564 = vmatpush1.bf16.msra.mxu0 %v1455
      %1565 = vmatprep.subr.bf16.mxu0 0
      %1566 = vmatpush1.bf16.msra.mxu0 %v1454
      %1567 = vmatprep.subr.bf16.mxu0 0
      %1568 = vmatpush2.bf16.msra.mxu0 0
      %1569 = vmatprep.subr.bf16.mxu0 0
      %1570 = vmatpush2.bf16.msra.mxu0 0
      %1571 = vmatprep.subr.bf16.mxu0 0
      %1572 = vmatpush2.bf16.msra.mxu0 0
      %1573 = vmatprep.subr.bf16.mxu0 0
      %1574 = vmatpush2.bf16.msra.mxu0 0
      %1575 = vmatprep.subr.bf16.mxu0 0
      %1576 = vmatpush2.bf16.msra.mxu0 0
      %1577 = vmatprep.subr.bf16.mxu0 0
      %1578 = vmatpush2.bf16.msra.mxu0 0
      %1579 = vmatprep.subr.bf16.mxu0 0
      %1580 = vmatpush2.bf16.msra.mxu0 0
      %1581 = vmatprep.subr.bf16.mxu0 0
      %1582 = vmatpush2.bf16.msra.mxu0 0
      %1583 = vmatprep.mubr.bf16.mxu0 0
      %1584 = vmatmul.mubr.bf16.gmra.mxu0 %v1475
      %v1585 = vpop.f32.mrf.mxu0
      %v1586 = vadd.f32 %v1521, %v1585
      %v1587 = vpop.f32.mrf.mxu0
      %v1588 = vpop.f32.mrf.mxu0
      %v1589 = vadd.f32 %v1524, %v1588
      %v1590 = vpop.f32.mrf.mxu0
      %1591 = vmatprep.mubr.bf16.mxu0 0
      %1592 = vmatmul.mubr.bf16.gmra.mxu0 %v1478
      %v1593 = vpop.f32.mrf.mxu0
      %v1594 = vadd.f32 %v1529, %v1593
      %v1595 = vpop.f32.mrf.mxu0
      %v1596 = vpop.f32.mrf.mxu0
      %v1597 = vadd.f32 %v1532, %v1596
      %v1598 = vpop.f32.mrf.mxu0
      %1599 = vmatprep.mubr.bf16.mxu0 0
      %1600 = vmatmul.mubr.bf16.gmra.mxu0 %v1481
      %v1601 = vpop.f32.mrf.mxu0
      %v1602 = vadd.f32 %v1537, %v1601
      %v1603 = vpop.f32.mrf.mxu0
      %v1604 = vpop.f32.mrf.mxu0
      %v1605 = vadd.f32 %v1540, %v1604
      %v1606 = vpop.f32.mrf.mxu0
      %1607 = vmatprep.mubr.bf16.mxu0 0
      %1608 = vmatmul.mubr.bf16.gmra.mxu0 %v1484
      %v1609 = vpop.f32.mrf.mxu0
      %v1610 = vadd.f32 %v1545, %v1609
      %v1611 = vpop.f32.mrf.mxu0
      %v1612 = vpop.f32.mrf.mxu0
      %v1613 = vadd.f32 %v1548, %v1612
      %v1614 = vpop.f32.mrf.mxu0
      %1615 = vdwg.mxu0
      %v1616 = vmax.f32 %v1586, 0.0
      %v1617 = vmax.f32 %v1589, 0.0
      %v1618 = vmax.f32 %v1594, 0.0
      %v1619 = vmax.f32 %v1597, 0.0
      %v1620 = vmax.f32 %v1602, 0.0
      %v1621 = vmax.f32 %v1605, 0.0
      %v1622 = vmax.f32 %v1610, 0.0
      %v1623 = vmax.f32 %v1613, 0.0
      %v1624 = vld [vmem:[%s8] sm:$0x1]
      %v1625 = vrot.slane %v1616, 7
      %v1626 = vrot.slane %v1617, 7
      %v1627 = vrot.slane %v1618, 7
      %v1628 = vrot.slane %v1619, 7
      %v1629 = vrot.slane %v1620, 7
      %v1630 = vrot.slane %v1621, 7
      %v1631 = vrot.slane %v1622, 7
      %v1632 = vrot.slane %v1623, 7
      %v1633 = vsel %vm672, %v1631, %v1632
      %v1634 = vsel %vm672, %v1630, %v1631
      %v1635 = vsel %vm672, %v1629, %v1630
      %v1636 = vsel %vm672, %v1628, %v1629
      %v1637 = vsel %vm672, %v1627, %v1628
      %v1638 = vsel %vm672, %v1626, %v1627
      %v1639 = vsel %vm672, %v1625, %v1626
      %v1640 = vsel %vm672, %v1632, %v1625
      %v1641 = vmul.f32 %v1633, %v684
      %v1642 = vmul.f32 %v1640, %v689
      %v1643 = vmul.f32 %v1639, %v694
      %v1644 = vmul.f32 %v1638, %v699
      %v1645 = vmul.f32 %v1637, %v704
      %v1646 = vmul.f32 %v1636, %v709
      %v1647 = vmul.f32 %v1635, %v714
      %v1648 = vmul.f32 %v1634, %v719
      %1649 = vst.msk [vmem:[#allocation2] sm:$0xff] %vm729, %v1641
      %1650 = vst.msk [vmem:[#allocation2 + $0x18] sm:$0xff] %vm729, %v1642
      %1651 = vst.msk [vmem:[#allocation2 + $0x30] sm:$0xff] %vm729, %v1643
      %1652 = vst.msk [vmem:[#allocation2 + $0x48] sm:$0xff] %vm729, %v1644
      %1653 = vst.msk [vmem:[#allocation2 + $0x60] sm:$0xff] %vm729, %v1645
      %1654 = vst.msk [vmem:[#allocation2 + $0x78] sm:$0xff] %vm729, %v1646
      %1655 = vst.msk [vmem:[#allocation2 + $0x90] sm:$0xff] %vm729, %v1647
      %1656 = vst.msk [vmem:[#allocation2 + $0xa8] sm:$0xff] %vm729, %v1648
      %v1657 = vmul.f32 %v1623, %v740
      %v1658 = vmul.f32 %v1616, %v744
      %v1659 = vmul.f32 %v1617, %v748
      %v1660 = vmul.f32 %v1618, %v752
      %v1661 = vmul.f32 %v1619, %v756
      %v1662 = vmul.f32 %v1620, %v760
      %v1663 = vmul.f32 %v1621, %v764
      %v1664 = vmul.f32 %v1622, %v768
      %1673 = vrot.lane.b32.xlu0 %v1657, 32
      %v1674 = vpop.permute.xlu0 %1673
      %1675 = vrot.lane.b32.xlu0 %v1658, 32
      %v1676 = vpop.permute.xlu0 %1675
      %1677 = vrot.lane.b32.xlu0 %v1659, 32
      %v1678 = vpop.permute.xlu0 %1677
      %1679 = vrot.lane.b32.xlu0 %v1660, 32
      %v1680 = vpop.permute.xlu0 %1679
      %1681 = vrot.lane.b32.xlu0 %v1661, 32
      %v1682 = vpop.permute.xlu0 %1681
      %1683 = vrot.lane.b32.xlu0 %v1662, 32
      %v1684 = vpop.permute.xlu0 %1683
      %1685 = vrot.lane.b32.xlu0 %v1663, 32
      %v1686 = vpop.permute.xlu0 %1685
      %1687 = vrot.lane.b32.xlu0 %v1664, 32
      %v1688 = vpop.permute.xlu0 %1687
      %1697 = vst.msk [vmem:[#allocation2] sm:$0xff] %vm810, %v1674
      %1698 = vst.msk [vmem:[#allocation2 + $0x18] sm:$0xff] %vm810, %v1676
      %1699 = vst.msk [vmem:[#allocation2 + $0x30] sm:$0xff] %vm810, %v1678
      %1700 = vst.msk [vmem:[#allocation2 + $0x48] sm:$0xff] %vm810, %v1680
      %1701 = vst.msk [vmem:[#allocation2 + $0x60] sm:$0xff] %vm810, %v1682
      %1702 = vst.msk [vmem:[#allocation2 + $0x78] sm:$0xff] %vm810, %v1684
      %1703 = vst.msk [vmem:[#allocation2 + $0x90] sm:$0xff] %vm810, %v1686
      %1704 = vst.msk [vmem:[#allocation2 + $0xa8] sm:$0xff] %vm810, %v1688
      %v1705 = vrot.slane %v1616, 1
      %v1706 = vrot.slane %v1617, 1
      %v1707 = vrot.slane %v1618, 1
      %v1708 = vrot.slane %v1619, 1
      %v1709 = vrot.slane %v1620, 1
      %v1710 = vrot.slane %v1621, 1
      %v1711 = vrot.slane %v1622, 1
      %v1712 = vrot.slane %v1623, 1
      %v1713 = vsel %vm827, %v1711, %v1712
      %v1714 = vsel %vm827, %v1710, %v1711
      %v1715 = vsel %vm827, %v1709, %v1710
      %v1716 = vsel %vm827, %v1708, %v1709
      %v1717 = vsel %vm827, %v1707, %v1708
      %v1718 = vsel %vm827, %v1706, %v1707
      %v1719 = vsel %vm827, %v1705, %v1706
      %v1720 = vsel %vm827, %v1712, %v1705
      %v1721 = vmul.f32 %v1720, %v838
      %v1722 = vmul.f32 %v1719, %v842
      %v1723 = vmul.f32 %v1718, %v846
      %v1724 = vmul.f32 %v1717, %v850
      %v1725 = vmul.f32 %v1716, %v854
      %v1726 = vmul.f32 %v1715, %v858
      %v1727 = vmul.f32 %v1714, %v862
      %v1728 = vmul.f32 %v1713, %v866
      %1737 = vrot.lane.b32.xlu0 %v1721, 64
      %v1738 = vpop.permute.xlu0 %1737
      %1739 = vrot.lane.b32.xlu0 %v1722, 64
      %v1740 = vpop.permute.xlu0 %1739
      %1741 = vrot.lane.b32.xlu0 %v1723, 64
      %v1742 = vpop.permute.xlu0 %1741
      %1743 = vrot.lane.b32.xlu0 %v1724, 64
      %v1744 = vpop.permute.xlu0 %1743
      %1745 = vrot.lane.b32.xlu0 %v1725, 64
      %v1746 = vpop.permute.xlu0 %1745
      %1747 = vrot.lane.b32.xlu0 %v1726, 64
      %v1748 = vpop.permute.xlu0 %1747
      %1749 = vrot.lane.b32.xlu0 %v1727, 64
      %v1750 = vpop.permute.xlu0 %1749
      %1751 = vrot.lane.b32.xlu0 %v1728, 64
      %v1752 = vpop.permute.xlu0 %1751
      %1761 = vst.msk [vmem:[#allocation2] sm:$0xff] %vm908, %v1738
      %1762 = vst.msk [vmem:[#allocation2 + $0x18] sm:$0xff] %vm908, %v1740
      %1763 = vst.msk [vmem:[#allocation2 + $0x30] sm:$0xff] %vm908, %v1742
      %1764 = vst.msk [vmem:[#allocation2 + $0x48] sm:$0xff] %vm908, %v1744
      %1765 = vst.msk [vmem:[#allocation2 + $0x60] sm:$0xff] %vm908, %v1746
      %1766 = vst.msk [vmem:[#allocation2 + $0x78] sm:$0xff] %vm908, %v1748
      %1767 = vst.msk [vmem:[#allocation2 + $0x90] sm:$0xff] %vm908, %v1750
      %1768 = vst.msk [vmem:[#allocation2 + $0xa8] sm:$0xff] %vm908, %v1752
      %v1769 = vmul.f32 %v1640, %v919
      %v1770 = vmul.f32 %v1639, %v923
      %v1771 = vmul.f32 %v1638, %v927
      %v1772 = vmul.f32 %v1637, %v931
      %v1773 = vmul.f32 %v1636, %v935
      %v1774 = vmul.f32 %v1635, %v939
      %v1775 = vmul.f32 %v1634, %v943
      %v1776 = vmul.f32 %v1633, %v947
      %1785 = vrot.lane.b32.xlu0 %v1769, 96
      %v1786 = vpop.permute.xlu0 %1785
      %1787 = vrot.lane.b32.xlu0 %v1770, 96
      %v1788 = vpop.permute.xlu0 %1787
      %1789 = vrot.lane.b32.xlu0 %v1771, 96
      %v1790 = vpop.permute.xlu0 %1789
      %1791 = vrot.lane.b32.xlu0 %v1772, 96
      %v1792 = vpop.permute.xlu0 %1791
      %1793 = vrot.lane.b32.xlu0 %v1773, 96
      %v1794 = vpop.permute.xlu0 %1793
      %1795 = vrot.lane.b32.xlu0 %v1774, 96
      %v1796 = vpop.permute.xlu0 %1795
      %1797 = vrot.lane.b32.xlu0 %v1775, 96
      %v1798 = vpop.permute.xlu0 %1797
      %1799 = vrot.lane.b32.xlu0 %v1776, 96
      %v1800 = vpop.permute.xlu0 %1799
      %1809 = vst.msk [vmem:[#allocation2] sm:$0xff] %vm989, %v1786
      %1810 = vst.msk [vmem:[#allocation2 + $0x18] sm:$0xff] %vm989, %v1788
      %1811 = vst.msk [vmem:[#allocation2 + $0x30] sm:$0xff] %vm989, %v1790
      %1812 = vst.msk [vmem:[#allocation2 + $0x48] sm:$0xff] %vm989, %v1792
      %1813 = vst.msk [vmem:[#allocation2 + $0x60] sm:$0xff] %vm989, %v1794
      %1814 = vst.msk [vmem:[#allocation2 + $0x78] sm:$0xff] %vm989, %v1796
      %1815 = vst.msk [vmem:[#allocation2 + $0x90] sm:$0xff] %vm989, %v1798
      %1816 = vst.msk [vmem:[#allocation2 + $0xa8] sm:$0xff] %vm989, %v1800
      %1817 = vst.msk [vmem:[#allocation2 + $0x8] sm:$0xff] %vm729, %v1616
      %1818 = vst.msk [vmem:[#allocation2 + $0x20] sm:$0xff] %vm729, %v1617
      %1819 = vst.msk [vmem:[#allocation2 + $0x38] sm:$0xff] %vm729, %v1618
      %1820 = vst.msk [vmem:[#allocation2 + $0x50] sm:$0xff] %vm729, %v1619
      %1821 = vst.msk [vmem:[#allocation2 + $0x68] sm:$0xff] %vm729, %v1620
      %1822 = vst.msk [vmem:[#allocation2 + $0x80] sm:$0xff] %vm729, %v1621
      %1823 = vst.msk [vmem:[#allocation2 + $0x98] sm:$0xff] %vm729, %v1622
      %1824 = vst.msk [vmem:[#allocation2 + $0xb0] sm:$0xff] %vm729, %v1623
      %v1825 = vmul.f32 %v1719, %v1008
      %v1826 = vmul.f32 %v1718, %v1012
      %v1827 = vmul.f32 %v1717, %v1016
      %v1828 = vmul.f32 %v1716, %v1020
      %v1829 = vmul.f32 %v1715, %v1024
      %v1830 = vmul.f32 %v1714, %v1028
      %v1831 = vmul.f32 %v1713, %v1032
      %v1832 = vmul.f32 %v1720, %v1036
      %1841 = vrot.lane.b32.xlu0 %v1825, 32
      %v1842 = vpop.permute.xlu0 %1841
      %1843 = vrot.lane.b32.xlu0 %v1826, 32
      %v1844 = vpop.permute.xlu0 %1843
      %1845 = vrot.lane.b32.xlu0 %v1827, 32
      %v1846 = vpop.permute.xlu0 %1845
      %1847 = vrot.lane.b32.xlu0 %v1828, 32
      %v1848 = vpop.permute.xlu0 %1847
      %1849 = vrot.lane.b32.xlu0 %v1829, 32
      %v1850 = vpop.permute.xlu0 %1849
      %1851 = vrot.lane.b32.xlu0 %v1830, 32
      %v1852 = vpop.permute.xlu0 %1851
      %1853 = vrot.lane.b32.xlu0 %v1831, 32
      %v1854 = vpop.permute.xlu0 %1853
      %1855 = vrot.lane.b32.xlu0 %v1832, 32
      %v1856 = vpop.permute.xlu0 %1855
      %1865 = vst.msk [vmem:[#allocation2 + $0x8] sm:$0xff] %vm810, %v1842
      %1866 = vst.msk [vmem:[#allocation2 + $0x20] sm:$0xff] %vm810, %v1844
      %1867 = vst.msk [vmem:[#allocation2 + $0x38] sm:$0xff] %vm810, %v1846
      %1868 = vst.msk [vmem:[#allocation2 + $0x50] sm:$0xff] %vm810, %v1848
      %1869 = vst.msk [vmem:[#allocation2 + $0x68] sm:$0xff] %vm810, %v1850
      %1870 = vst.msk [vmem:[#allocation2 + $0x80] sm:$0xff] %vm810, %v1852
      %1871 = vst.msk [vmem:[#allocation2 + $0x98] sm:$0xff] %vm810, %v1854
      %1872 = vst.msk [vmem:[#allocation2 + $0xb0] sm:$0xff] %vm810, %v1856
      %v1873 = vmul.f32 %v1639, %v1088
      %v1874 = vmul.f32 %v1638, %v1092
      %v1875 = vmul.f32 %v1637, %v1096
      %v1876 = vmul.f32 %v1636, %v1100
      %v1877 = vmul.f32 %v1635, %v1104
      %v1878 = vmul.f32 %v1634, %v1108
      %v1879 = vmul.f32 %v1633, %v1112
      %v1880 = vmul.f32 %v1640, %v1116
      %1889 = vrot.lane.b32.xlu0 %v1873, 64
      %v1890 = vpop.permute.xlu0 %1889
      %1891 = vrot.lane.b32.xlu0 %v1874, 64
      %v1892 = vpop.permute.xlu0 %1891
      %1893 = vrot.lane.b32.xlu0 %v1875, 64
      %v1894 = vpop.permute.xlu0 %1893
      %1895 = vrot.lane.b32.xlu0 %v1876, 64
      %v1896 = vpop.permute.xlu0 %1895
      %1897 = vrot.lane.b32.xlu0 %v1877, 64
      %v1898 = vpop.permute.xlu0 %1897
      %1899 = vrot.lane.b32.xlu0 %v1878, 64
      %v1900 = vpop.permute.xlu0 %1899
      %1901 = vrot.lane.b32.xlu0 %v1879, 64
      %v1902 = vpop.permute.xlu0 %1901
      %1903 = vrot.lane.b32.xlu0 %v1880, 64
      %v1904 = vpop.permute.xlu0 %1903
      %1913 = vst.msk [vmem:[#allocation2 + $0x8] sm:$0xff] %vm908, %v1890
      %1914 = vst.msk [vmem:[#allocation2 + $0x20] sm:$0xff] %vm908, %v1892
      %1915 = vst.msk [vmem:[#allocation2 + $0x38] sm:$0xff] %vm908, %v1894
      %1916 = vst.msk [vmem:[#allocation2 + $0x50] sm:$0xff] %vm908, %v1896
      %1917 = vst.msk [vmem:[#allocation2 + $0x68] sm:$0xff] %vm908, %v1898
      %1918 = vst.msk [vmem:[#allocation2 + $0x80] sm:$0xff] %vm908, %v1900
      %1919 = vst.msk [vmem:[#allocation2 + $0x98] sm:$0xff] %vm908, %v1902
      %1920 = vst.msk [vmem:[#allocation2 + $0xb0] sm:$0xff] %vm908, %v1904
      %v1921 = vmul.f32 %v1617, %v1168
      %v1922 = vmul.f32 %v1618, %v1172
      %v1923 = vmul.f32 %v1619, %v1176
      %v1924 = vmul.f32 %v1620, %v1180
      %v1925 = vmul.f32 %v1621, %v1184
      %v1926 = vmul.f32 %v1622, %v1188
      %v1927 = vmul.f32 %v1623, %v1192
      %v1928 = vmul.f32 %v1616, %v1196
      %1937 = vrot.lane.b32.xlu0 %v1921, 96
      %v1938 = vpop.permute.xlu0 %1937
      %1939 = vrot.lane.b32.xlu0 %v1922, 96
      %v1940 = vpop.permute.xlu0 %1939
      %1941 = vrot.lane.b32.xlu0 %v1923, 96
      %v1942 = vpop.permute.xlu0 %1941
      %1943 = vrot.lane.b32.xlu0 %v1924, 96
      %v1944 = vpop.permute.xlu0 %1943
      %1945 = vrot.lane.b32.xlu0 %v1925, 96
      %v1946 = vpop.permute.xlu0 %1945
      %1947 = vrot.lane.b32.xlu0 %v1926, 96
      %v1948 = vpop.permute.xlu0 %1947
      %1949 = vrot.lane.b32.xlu0 %v1927, 96
      %v1950 = vpop.permute.xlu0 %1949
      %1951 = vrot.lane.b32.xlu0 %v1928, 96
      %v1952 = vpop.permute.xlu0 %1951
      %1961 = vst.msk [vmem:[#allocation2 + $0x8] sm:$0xff] %vm989, %v1938
      %1962 = vst.msk [vmem:[#allocation2 + $0x20] sm:$0xff] %vm989, %v1940
      %1963 = vst.msk [vmem:[#allocation2 + $0x38] sm:$0xff] %vm989, %v1942
      %1964 = vst.msk [vmem:[#allocation2 + $0x50] sm:$0xff] %vm989, %v1944
      %1965 = vst.msk [vmem:[#allocation2 + $0x68] sm:$0xff] %vm989, %v1946
      %1966 = vst.msk [vmem:[#allocation2 + $0x80] sm:$0xff] %vm989, %v1948
      %1967 = vst.msk [vmem:[#allocation2 + $0x98] sm:$0xff] %vm989, %v1950
      %1968 = vst.msk [vmem:[#allocation2 + $0xb0] sm:$0xff] %vm989, %v1952
      %v1969 = vmul.f32 %v1718, %v1248
      %v1970 = vmul.f32 %v1717, %v1252
      %v1971 = vmul.f32 %v1716, %v1256
      %v1972 = vmul.f32 %v1715, %v1260
      %v1973 = vmul.f32 %v1714, %v1264
      %v1974 = vmul.f32 %v1713, %v1268
      %v1975 = vmul.f32 %v1720, %v1272
      %v1976 = vmul.f32 %v1719, %v1276
      %1977 = vst.msk [vmem:[#allocation2 + $0x10] sm:$0xff] %vm729, %v1969
      %1978 = vst.msk [vmem:[#allocation2 + $0x28] sm:$0xff] %vm729, %v1970
      %1979 = vst.msk [vmem:[#allocation2 + $0x40] sm:$0xff] %vm729, %v1971
      %1980 = vst.msk [vmem:[#allocation2 + $0x58] sm:$0xff] %vm729, %v1972
      %1981 = vst.msk [vmem:[#allocation2 + $0x70] sm:$0xff] %vm729, %v1973
      %1982 = vst.msk [vmem:[#allocation2 + $0x88] sm:$0xff] %vm729, %v1974
      %1983 = vst.msk [vmem:[#allocation2 + $0xa0] sm:$0xff] %vm729, %v1975
      %1984 = vst.msk [vmem:[#allocation2 + $0xb8] sm:$0xff] %vm729, %v1976
      %v1985 = vld [vmem:[#allocation2] sm:$0xff]
      %v1986 = vld [vmem:[#allocation2 + $0x8] sm:$0xff]
      %v1987 = vld [vmem:[#allocation2 + $0x10] sm:$0xff]
      %v1988 = vld [vmem:[#allocation2 + $0x18] sm:$0xff]
      %v1989 = vld [vmem:[#allocation2 + $0x20] sm:$0xff]
      %v1990 = vld [vmem:[#allocation2 + $0x28] sm:$0xff]
      %v1991 = vld [vmem:[#allocation2 + $0x30] sm:$0xff]
      %v1992 = vld [vmem:[#allocation2 + $0x38] sm:$0xff]
      %v1993 = vld [vmem:[#allocation2 + $0x40] sm:$0xff]
      %v1994 = vld [vmem:[#allocation2 + $0x48] sm:$0xff]
      %v1995 = vld [vmem:[#allocation2 + $0x50] sm:$0xff]
      %v1996 = vld [vmem:[#allocation2 + $0x58] sm:$0xff]
      %v1997 = vld [vmem:[#allocation2 + $0x60] sm:$0xff]
      %v1998 = vld [vmem:[#allocation2 + $0x68] sm:$0xff]
      %v1999 = vld [vmem:[#allocation2 + $0x70] sm:$0xff]
      %v2000 = vld [vmem:[#allocation2 + $0x78] sm:$0xff]
      %v2001 = vld [vmem:[#allocation2 + $0x80] sm:$0xff]
      %v2002 = vld [vmem:[#allocation2 + $0x88] sm:$0xff]
      %v2003 = vld [vmem:[#allocation2 + $0x90] sm:$0xff]
      %v2004 = vld [vmem:[#allocation2 + $0x98] sm:$0xff]
      %v2005 = vld [vmem:[#allocation2 + $0xa0] sm:$0xff]
      %v2006 = vld [vmem:[#allocation2 + $0xa8] sm:$0xff]
      %v2007 = vld [vmem:[#allocation2 + $0xb0] sm:$0xff]
      %v2008 = vld [vmem:[#allocation2 + $0xb8] sm:$0xff]
      %v2009 = vpack.c.bf16 %v1988, %v1985
      %v2010 = vpack.c.bf16 %v1989, %v1986
      %v2011 = vpack.c.bf16 %v1990, %v1987
      %v2012 = vpack.c.bf16 %v1994, %v1991
      %v2013 = vpack.c.bf16 %v1995, %v1992
      %v2014 = vpack.c.bf16 %v1996, %v1993
      %v2015 = vpack.c.bf16 %v2000, %v1997
      %v2016 = vpack.c.bf16 %v2001, %v1998
      %v2017 = vpack.c.bf16 %v2002, %v1999
      %v2018 = vpack.c.bf16 %v2006, %v2003
      %v2019 = vpack.c.bf16 %v2007, %v2004
      %v2020 = vpack.c.bf16 %v2008, %v2005
      %v2021 = vld [vmem:[%s6] sm:$0xf]
      %v2022 = vld [vmem:[%s6 + $0x4] sm:$0xf]
      %v2023 = vld [vmem:[%s6 + $0x8] sm:$0xf]
      %v2024 = vld [vmem:[%s6 + $0xc] sm:$0xf]
      %v2025 = vld [vmem:[%s6 + $0x10] sm:$0xf]
      %v2026 = vld [vmem:[%s6 + $0x14] sm:$0xf]
      %v2027 = vld [vmem:[%s6 + $0x18] sm:$0xf]
      %v2028 = vld [vmem:[%s6 + $0x1c] sm:$0xf]
      %v2029 = vld [vmem:[%s6 + $0x20] sm:$0xf]
      %v2030 = vld [vmem:[%s6 + $0x24] sm:$0xf]
      %v2031 = vld [vmem:[%s6 + $0x28] sm:$0xf]
      %v2032 = vld [vmem:[%s6 + $0x2c] sm:$0xf]
      %v2033 = vld [vmem:[%s6 + $0x30] sm:$0xf]
      %v2034 = vld [vmem:[%s6 + $0x34] sm:$0xf]
      %v2035 = vld [vmem:[%s6 + $0x38] sm:$0xf]
      %v2036 = vld [vmem:[%s6 + $0x3c] sm:$0xf]
      %v2037 = vld [vmem:[%s6 + $0x40] sm:$0xf]
      %v2038 = vld [vmem:[%s6 + $0x44] sm:$0xf]
      %v2039 = vld [vmem:[%s6 + $0x48] sm:$0xf]
      %v2040 = vld [vmem:[%s6 + $0x4c] sm:$0xf]
      %v2041 = vld [vmem:[%s6 + $0x50] sm:$0xf]
      %v2042 = vld [vmem:[%s6 + $0x54] sm:$0xf]
      %v2043 = vld [vmem:[%s6 + $0x58] sm:$0xf]
      %v2044 = vld [vmem:[%s6 + $0x5c] sm:$0xf]
      %v2045 = vld [vmem:[%s6 + $0x60] sm:$0xf]
      %v2046 = vld [vmem:[%s6 + $0x64] sm:$0xf]
      %v2047 = vld [vmem:[%s6 + $0x68] sm:$0xf]
      %v2048 = vld [vmem:[%s6 + $0x6c] sm:$0xf]
      %v2049 = vld [vmem:[%s6 + $0x70] sm:$0xf]
      %v2050 = vld [vmem:[%s6 + $0x74] sm:$0xf]
      %v2051 = vld [vmem:[%s6 + $0x78] sm:$0xf]
      %v2052 = vld [vmem:[%s6 + $0x7c] sm:$0xf]
      %v2053 = vld [vmem:[%s6 + $0x80] sm:$0xf]
      %v2054 = vld [vmem:[%s6 + $0x84] sm:$0xf]
      %v2055 = vld [vmem:[%s6 + $0x88] sm:$0xf]
      %v2056 = vld [vmem:[%s6 + $0x8c] sm:$0xf]
      %v2057 = vlaneseq
      %v2058 = vshrl.u32 %v2057, 7
      %v2059 = vsub.s32 0, %v2058
      %v2060 = vrot.slane %v1624, %v2059
      %v2097 = vunpack.c.l.b16 %v2021
      %v2098 = vunpack.c.l.b16 %v2022
      %v2099 = vunpack.c.l.b16 %v2023
      %v2100 = vunpack.c.l.b16 %v2024
      %v2101 = vunpack.c.l.b16 %v2025
      %v2102 = vunpack.c.l.b16 %v2026
      %v2103 = vunpack.c.l.b16 %v2027
      %v2104 = vunpack.c.l.b16 %v2028
      %v2105 = vunpack.c.l.b16 %v2029
      %v2106 = vunpack.c.l.b16 %v2030
      %v2107 = vunpack.c.l.b16 %v2031
      %v2108 = vunpack.c.l.b16 %v2032
      %v2109 = vunpack.c.l.b16 %v2033
      %v2110 = vunpack.c.l.b16 %v2034
      %v2111 = vunpack.c.l.b16 %v2035
      %v2112 = vunpack.c.l.b16 %v2036
      %v2113 = vunpack.c.l.b16 %v2037
      %v2114 = vunpack.c.l.b16 %v2038
      %v2115 = vunpack.c.l.b16 %v2039
      %v2116 = vunpack.c.l.b16 %v2040
      %v2117 = vunpack.c.l.b16 %v2041
      %v2118 = vunpack.c.l.b16 %v2042
      %v2119 = vunpack.c.l.b16 %v2043
      %v2120 = vunpack.c.l.b16 %v2044
      %v2121 = vunpack.c.l.b16 %v2045
      %v2122 = vunpack.c.l.b16 %v2046
      %v2123 = vunpack.c.l.b16 %v2047
      %v2124 = vunpack.c.l.b16 %v2048
      %v2125 = vunpack.c.l.b16 %v2049
      %v2126 = vunpack.c.l.b16 %v2050
      %v2127 = vunpack.c.l.b16 %v2051
      %v2128 = vunpack.c.l.b16 %v2052
      %v2129 = vunpack.c.l.b16 %v2053
      %v2130 = vunpack.c.l.b16 %v2054
      %v2131 = vunpack.c.l.b16 %v2055
      %v2132 = vunpack.c.l.b16 %v2056
      %v2133 = vpack.c.b16 %v2098, %v2097
      %v2134 = vpack.c.b16 %v2100, %v2099
      %v2135 = vpack.c.b16 %v2102, %v2101
      %v2136 = vpack.c.b16 %v2104, %v2103
      %v2137 = vpack.c.b16 %v2106, %v2105
      %v2138 = vpack.c.b16 %v2108, %v2107
      %v2139 = vpack.c.b16 %v2110, %v2109
      %v2140 = vpack.c.b16 %v2112, %v2111
      %v2141 = vpack.c.b16 %v2114, %v2113
      %v2142 = vpack.c.b16 %v2116, %v2115
      %v2143 = vpack.c.b16 %v2118, %v2117
      %v2144 = vpack.c.b16 %v2120, %v2119
      %v2145 = vpack.c.b16 %v2122, %v2121
      %v2146 = vpack.c.b16 %v2124, %v2123
      %v2147 = vpack.c.b16 %v2126, %v2125
      %v2148 = vpack.c.b16 %v2128, %v2127
      %v2149 = vpack.c.b16 %v2130, %v2129
      %v2150 = vpack.c.b16 %v2132, %v2131
      %v2170 = vsel %vm729, %v2011, 0
      %v2173 = vsel %vm729, %v2014, 0
      %v2176 = vsel %vm729, %v2017, 0
      %v2179 = vsel %vm729, %v2020, 0
      %2181 = vmatprep.subr.bf16.mxu0 0
      %2182 = vmatpush1.bf16.msra.mxu0 %v2140
      %2183 = vmatprep.subr.bf16.mxu0 0
      %2184 = vmatpush1.bf16.msra.mxu0 %v2139
      %2185 = vmatprep.subr.bf16.mxu0 0
      %2186 = vmatpush1.bf16.msra.mxu0 %v2138
      %2187 = vmatprep.subr.bf16.mxu0 0
      %2188 = vmatpush1.bf16.msra.mxu0 %v2137
      %2189 = vmatprep.subr.bf16.mxu0 0
      %2190 = vmatpush1.bf16.msra.mxu0 %v2136
      %2191 = vmatprep.subr.bf16.mxu0 0
      %2192 = vmatpush1.bf16.msra.mxu0 %v2135
      %2193 = vmatprep.subr.bf16.mxu0 0
      %2194 = vmatpush1.bf16.msra.mxu0 %v2134
      %2195 = vmatprep.subr.bf16.mxu0 0
      %2196 = vmatpush1.bf16.msra.mxu0 %v2133
      %2197 = vmatprep.subr.bf16.mxu0 0
      %2198 = vmatpush2.bf16.msra.mxu0 %v2148
      %2199 = vmatprep.subr.bf16.mxu0 0
      %2200 = vmatpush2.bf16.msra.mxu0 %v2147
      %2201 = vmatprep.subr.bf16.mxu0 0
      %2202 = vmatpush2.bf16.msra.mxu0 %v2146
      %2203 = vmatprep.subr.bf16.mxu0 0
      %2204 = vmatpush2.bf16.msra.mxu0 %v2145
      %2205 = vmatprep.subr.bf16.mxu0 0
      %2206 = vmatpush2.bf16.msra.mxu0 %v2144
      %2207 = vmatprep.subr.bf16.mxu0 0
      %2208 = vmatpush2.bf16.msra.mxu0 %v2143
      %2209 = vmatprep.subr.bf16.mxu0 0
      %2210 = vmatpush2.bf16.msra.mxu0 %v2142
      %2211 = vmatprep.subr.bf16.mxu0 0
      %2212 = vmatpush2.bf16.msra.mxu0 %v2141
      %2213 = vmatprep.mubr.bf16.mxu0 %v2010
      %2214 = vmatmul.mubr.bf16.gmra.mxu0 %v2009
      %v2215 = vpop.f32.mrf.mxu0
      %v2216 = vadd.f32 %v2060, %v2215
      %v2217 = vpop.f32.mrf.mxu0
      %v2218 = vpop.f32.mrf.mxu0
      %v2219 = vadd.f32 %v2060, %v2218
      %v2220 = vpop.f32.mrf.mxu0
      %2221 = vmatprep.mubr.bf16.mxu0 %v2013
      %2222 = vmatmul.mubr.bf16.gmra.mxu0 %v2012
      %v2223 = vpop.f32.mrf.mxu0
      %v2224 = vadd.f32 %v2060, %v2223
      %v2225 = vpop.f32.mrf.mxu0
      %v2226 = vpop.f32.mrf.mxu0
      %v2227 = vadd.f32 %v2060, %v2226
      %v2228 = vpop.f32.mrf.mxu0
      %2229 = vmatprep.mubr.bf16.mxu0 %v2016
      %2230 = vmatmul.mubr.bf16.gmra.mxu0 %v2015
      %v2231 = vpop.f32.mrf.mxu0
      %v2232 = vadd.f32 %v2060, %v2231
      %v2233 = vpop.f32.mrf.mxu0
      %v2234 = vpop.f32.mrf.mxu0
      %v2235 = vadd.f32 %v2060, %v2234
      %v2236 = vpop.f32.mrf.mxu0
      %2237 = vmatprep.mubr.bf16.mxu0 %v2019
      %2238 = vmatmul.mubr.bf16.gmra.mxu0 %v2018
      %v2239 = vpop.f32.mrf.mxu0
      %v2240 = vadd.f32 %v2060, %v2239
      %v2241 = vpop.f32.mrf.mxu0
      %v2242 = vpop.f32.mrf.mxu0
      %v2243 = vadd.f32 %v2060, %v2242
      %v2244 = vpop.f32.mrf.mxu0
      %2245 = vdwg.mxu0
      %2246 = vmatprep.subr.bf16.mxu0 0
      %2247 = vmatpush1.bf16.msra.mxu0 0
      %2248 = vmatprep.subr.bf16.mxu0 0
      %2249 = vmatpush1.bf16.msra.mxu0 0
      %2250 = vmatprep.subr.bf16.mxu0 0
      %2251 = vmatpush1.bf16.msra.mxu0 0
      %2252 = vmatprep.subr.bf16.mxu0 0
      %2253 = vmatpush1.bf16.msra.mxu0 0
      %2254 = vmatprep.subr.bf16.mxu0 0
      %2255 = vmatpush1.bf16.msra.mxu0 0
      %2256 = vmatprep.subr.bf16.mxu0 0
      %2257 = vmatpush1.bf16.msra.mxu0 0
      %2258 = vmatprep.subr.bf16.mxu0 0
      %2259 = vmatpush1.bf16.msra.mxu0 %v2150
      %2260 = vmatprep.subr.bf16.mxu0 0
      %2261 = vmatpush1.bf16.msra.mxu0 %v2149
      %2262 = vmatprep.subr.bf16.mxu0 0
      %2263 = vmatpush2.bf16.msra.mxu0 0
      %2264 = vmatprep.subr.bf16.mxu0 0
      %2265 = vmatpush2.bf16.msra.mxu0 0
      %2266 = vmatprep.subr.bf16.mxu0 0
      %2267 = vmatpush2.bf16.msra.mxu0 0
      %2268 = vmatprep.subr.bf16.mxu0 0
      %2269 = vmatpush2.bf16.msra.mxu0 0
      %2270 = vmatprep.subr.bf16.mxu0 0
      %2271 = vmatpush2.bf16.msra.mxu0 0
      %2272 = vmatprep.subr.bf16.mxu0 0
      %2273 = vmatpush2.bf16.msra.mxu0 0
      %2274 = vmatprep.subr.bf16.mxu0 0
      %2275 = vmatpush2.bf16.msra.mxu0 0
      %2276 = vmatprep.subr.bf16.mxu0 0
      %2277 = vmatpush2.bf16.msra.mxu0 0
      %2278 = vmatprep.mubr.bf16.mxu0 0
      %2279 = vmatmul.mubr.bf16.gmra.mxu0 %v2170
      %v2280 = vpop.f32.mrf.mxu0
      %v2281 = vadd.f32 %v2216, %v2280
      %v2282 = vpop.f32.mrf.mxu0
      %v2283 = vpop.f32.mrf.mxu0
      %v2284 = vadd.f32 %v2219, %v2283
      %v2285 = vpop.f32.mrf.mxu0
      %2286 = vmatprep.mubr.bf16.mxu0 0
      %2287 = vmatmul.mubr.bf16.gmra.mxu0 %v2173
      %v2288 = vpop.f32.mrf.mxu0
      %v2289 = vadd.f32 %v2224, %v2288
      %v2290 = vpop.f32.mrf.mxu0
      %v2291 = vpop.f32.mrf.mxu0
      %v2292 = vadd.f32 %v2227, %v2291
      %v2293 = vpop.f32.mrf.mxu0
      %2294 = vmatprep.mubr.bf16.mxu0 0
      %2295 = vmatmul.mubr.bf16.gmra.mxu0 %v2176
      %v2296 = vpop.f32.mrf.mxu0
      %v2297 = vadd.f32 %v2232, %v2296
      %v2298 = vpop.f32.mrf.mxu0
      %v2299 = vpop.f32.mrf.mxu0
      %v2300 = vadd.f32 %v2235, %v2299
      %v2301 = vpop.f32.mrf.mxu0
      %2302 = vmatprep.mubr.bf16.mxu0 0
      %2303 = vmatmul.mubr.bf16.gmra.mxu0 %v2179
      %v2304 = vpop.f32.mrf.mxu0
      %v2305 = vadd.f32 %v2240, %v2304
      %v2306 = vpop.f32.mrf.mxu0
      %v2307 = vpop.f32.mrf.mxu0
      %v2308 = vadd.f32 %v2243, %v2307
      %v2309 = vpop.f32.mrf.mxu0
      %2310 = vdwg.mxu0
      %v2311 = vmax.f32 %v2281, 0.0
      %v2312 = vmax.f32 %v2284, 0.0
      %v2313 = vmax.f32 %v2289, 0.0
      %v2314 = vmax.f32 %v2292, 0.0
      %v2315 = vmax.f32 %v2297, 0.0
      %v2316 = vmax.f32 %v2300, 0.0
      %v2317 = vmax.f32 %v2305, 0.0
      %v2318 = vmax.f32 %v2308, 0.0
      %v2319 = vld [vmem:[%s8 + $0x1] sm:$0x1]
      %v2320 = vrot.slane %v2311, 7
      %v2321 = vrot.slane %v2312, 7
      %v2322 = vrot.slane %v2313, 7
      %v2323 = vrot.slane %v2314, 7
      %v2324 = vrot.slane %v2315, 7
      %v2325 = vrot.slane %v2316, 7
      %v2326 = vrot.slane %v2317, 7
      %v2327 = vrot.slane %v2318, 7
      %v2328 = vsel %vm672, %v2326, %v2327
      %v2329 = vsel %vm672, %v2325, %v2326
      %v2330 = vsel %vm672, %v2324, %v2325
      %v2331 = vsel %vm672, %v2323, %v2324
      %v2332 = vsel %vm672, %v2322, %v2323
      %v2333 = vsel %vm672, %v2321, %v2322
      %v2334 = vsel %vm672, %v2320, %v2321
      %v2335 = vsel %vm672, %v2327, %v2320
      %v2336 = vmul.f32 %v2328, %v684
      %v2337 = vmul.f32 %v2335, %v689
      %v2338 = vmul.f32 %v2334, %v694
      %v2339 = vmul.f32 %v2333, %v699
      %v2340 = vmul.f32 %v2332, %v704
      %v2341 = vmul.f32 %v2331, %v709
      %v2342 = vmul.f32 %v2330, %v714
      %v2343 = vmul.f32 %v2329, %v719
      %2344 = vst.msk [vmem:[#allocation2] sm:$0xff] %vm729, %v2336
      %2345 = vst.msk [vmem:[#allocation2 + $0x18] sm:$0xff] %vm729, %v2337
      %2346 = vst.msk [vmem:[#allocation2 + $0x30] sm:$0xff] %vm729, %v2338
      %2347 = vst.msk [vmem:[#allocation2 + $0x48] sm:$0xff] %vm729, %v2339
      %2348 = vst.msk [vmem:[#allocation2 + $0x60] sm:$0xff] %vm729, %v2340
      %2349 = vst.msk [vmem:[#allocation2 + $0x78] sm:$0xff] %vm729, %v2341
      %2350 = vst.msk [vmem:[#allocation2 + $0x90] sm:$0xff] %vm729, %v2342
      %2351 = vst.msk [vmem:[#allocation2 + $0xa8] sm:$0xff] %vm729, %v2343
      %v2352 = vmul.f32 %v2318, %v740
      %v2353 = vmul.f32 %v2311, %v744
      %v2354 = vmul.f32 %v2312, %v748
      %v2355 = vmul.f32 %v2313, %v752
      %v2356 = vmul.f32 %v2314, %v756
      %v2357 = vmul.f32 %v2315, %v760
      %v2358 = vmul.f32 %v2316, %v764
      %v2359 = vmul.f32 %v2317, %v768
      %2368 = vrot.lane.b32.xlu0 %v2352, 32
      %v2369 = vpop.permute.xlu0 %2368
      %2370 = vrot.lane.b32.xlu0 %v2353, 32
      %v2371 = vpop.permute.xlu0 %2370
      %2372 = vrot.lane.b32.xlu0 %v2354, 32
      %v2373 = vpop.permute.xlu0 %2372
      %2374 = vrot.lane.b32.xlu0 %v2355, 32
      %v2375 = vpop.permute.xlu0 %2374
      %2376 = vrot.lane.b32.xlu0 %v2356, 32
      %v2377 = vpop.permute.xlu0 %2376
      %2378 = vrot.lane.b32.xlu0 %v2357, 32
      %v2379 = vpop.permute.xlu0 %2378
      %2380 = vrot.lane.b32.xlu0 %v2358, 32
      %v2381 = vpop.permute.xlu0 %2380
      %2382 = vrot.lane.b32.xlu0 %v2359, 32
      %v2383 = vpop.permute.xlu0 %2382
      %2392 = vst.msk [vmem:[#allocation2] sm:$0xff] %vm810, %v2369
      %2393 = vst.msk [vmem:[#allocation2 + $0x18] sm:$0xff] %vm810, %v2371
      %2394 = vst.msk [vmem:[#allocation2 + $0x30] sm:$0xff] %vm810, %v2373
      %2395 = vst.msk [vmem:[#allocation2 + $0x48] sm:$0xff] %vm810, %v2375
      %2396 = vst.msk [vmem:[#allocation2 + $0x60] sm:$0xff] %vm810, %v2377
      %2397 = vst.msk [vmem:[#allocation2 + $0x78] sm:$0xff] %vm810, %v2379
      %2398 = vst.msk [vmem:[#allocation2 + $0x90] sm:$0xff] %vm810, %v2381
      %2399 = vst.msk [vmem:[#allocation2 + $0xa8] sm:$0xff] %vm810, %v2383
      %v2400 = vrot.slane %v2311, 1
      %v2401 = vrot.slane %v2312, 1
      %v2402 = vrot.slane %v2313, 1
      %v2403 = vrot.slane %v2314, 1
      %v2404 = vrot.slane %v2315, 1
      %v2405 = vrot.slane %v2316, 1
      %v2406 = vrot.slane %v2317, 1
      %v2407 = vrot.slane %v2318, 1
      %v2408 = vsel %vm827, %v2406, %v2407
      %v2409 = vsel %vm827, %v2405, %v2406
      %v2410 = vsel %vm827, %v2404, %v2405
      %v2411 = vsel %vm827, %v2403, %v2404
      %v2412 = vsel %vm827, %v2402, %v2403
      %v2413 = vsel %vm827, %v2401, %v2402
      %v2414 = vsel %vm827, %v2400, %v2401
      %v2415 = vsel %vm827, %v2407, %v2400
      %v2416 = vmul.f32 %v2415, %v838
      %v2417 = vmul.f32 %v2414, %v842
      %v2418 = vmul.f32 %v2413, %v846
      %v2419 = vmul.f32 %v2412, %v850
      %v2420 = vmul.f32 %v2411, %v854
      %v2421 = vmul.f32 %v2410, %v858
      %v2422 = vmul.f32 %v2409, %v862
      %v2423 = vmul.f32 %v2408, %v866
      %2432 = vrot.lane.b32.xlu0 %v2416, 64
      %v2433 = vpop.permute.xlu0 %2432
      %2434 = vrot.lane.b32.xlu0 %v2417, 64
      %v2435 = vpop.permute.xlu0 %2434
      %2436 = vrot.lane.b32.xlu0 %v2418, 64
      %v2437 = vpop.permute.xlu0 %2436
      %2438 = vrot.lane.b32.xlu0 %v2419, 64
      %v2439 = vpop.permute.xlu0 %2438
      %2440 = vrot.lane.b32.xlu0 %v2420, 64
      %v2441 = vpop.permute.xlu0 %2440
      %2442 = vrot.lane.b32.xlu0 %v2421, 64
      %v2443 = vpop.permute.xlu0 %2442
      %2444 = vrot.lane.b32.xlu0 %v2422, 64
      %v2445 = vpop.permute.xlu0 %2444
      %2446 = vrot.lane.b32.xlu0 %v2423, 64
      %v2447 = vpop.permute.xlu0 %2446
      %2456 = vst.msk [vmem:[#allocation2] sm:$0xff] %vm908, %v2433
      %2457 = vst.msk [vmem:[#allocation2 + $0x18] sm:$0xff] %vm908, %v2435
      %2458 = vst.msk [vmem:[#allocation2 + $0x30] sm:$0xff] %vm908, %v2437
      %2459 = vst.msk [vmem:[#allocation2 + $0x48] sm:$0xff] %vm908, %v2439
      %2460 = vst.msk [vmem:[#allocation2 + $0x60] sm:$0xff] %vm908, %v2441
      %2461 = vst.msk [vmem:[#allocation2 + $0x78] sm:$0xff] %vm908, %v2443
      %2462 = vst.msk [vmem:[#allocation2 + $0x90] sm:$0xff] %vm908, %v2445
      %2463 = vst.msk [vmem:[#allocation2 + $0xa8] sm:$0xff] %vm908, %v2447
      %v2464 = vmul.f32 %v2335, %v919
      %v2465 = vmul.f32 %v2334, %v923
      %v2466 = vmul.f32 %v2333, %v927
      %v2467 = vmul.f32 %v2332, %v931
      %v2468 = vmul.f32 %v2331, %v935
      %v2469 = vmul.f32 %v2330, %v939
      %v2470 = vmul.f32 %v2329, %v943
      %v2471 = vmul.f32 %v2328, %v947
      %2480 = vrot.lane.b32.xlu0 %v2464, 96
      %v2481 = vpop.permute.xlu0 %2480
      %2482 = vrot.lane.b32.xlu0 %v2465, 96
      %v2483 = vpop.permute.xlu0 %2482
      %2484 = vrot.lane.b32.xlu0 %v2466, 96
      %v2485 = vpop.permute.xlu0 %2484
      %2486 = vrot.lane.b32.xlu0 %v2467, 96
      %v2487 = vpop.permute.xlu0 %2486
      %2488 = vrot.lane.b32.xlu0 %v2468, 96
      %v2489 = vpop.permute.xlu0 %2488
      %2490 = vrot.lane.b32.xlu0 %v2469, 96
      %v2491 = vpop.permute.xlu0 %2490
      %2492 = vrot.lane.b32.xlu0 %v2470, 96
      %v2493 = vpop.permute.xlu0 %2492
      %2494 = vrot.lane.b32.xlu0 %v2471, 96
      %v2495 = vpop.permute.xlu0 %2494
      %2504 = vst.msk [vmem:[#allocation2] sm:$0xff] %vm989, %v2481
      %2505 = vst.msk [vmem:[#allocation2 + $0x18] sm:$0xff] %vm989, %v2483
      %2506 = vst.msk [vmem:[#allocation2 + $0x30] sm:$0xff] %vm989, %v2485
      %2507 = vst.msk [vmem:[#allocation2 + $0x48] sm:$0xff] %vm989, %v2487
      %2508 = vst.msk [vmem:[#allocation2 + $0x60] sm:$0xff] %vm989, %v2489
      %2509 = vst.msk [vmem:[#allocation2 + $0x78] sm:$0xff] %vm989, %v2491
      %2510 = vst.msk [vmem:[#allocation2 + $0x90] sm:$0xff] %vm989, %v2493
      %2511 = vst.msk [vmem:[#allocation2 + $0xa8] sm:$0xff] %vm989, %v2495
      %2512 = vst.msk [vmem:[#allocation2 + $0x8] sm:$0xff] %vm729, %v2311
      %2513 = vst.msk [vmem:[#allocation2 + $0x20] sm:$0xff] %vm729, %v2312
      %2514 = vst.msk [vmem:[#allocation2 + $0x38] sm:$0xff] %vm729, %v2313
      %2515 = vst.msk [vmem:[#allocation2 + $0x50] sm:$0xff] %vm729, %v2314
      %2516 = vst.msk [vmem:[#allocation2 + $0x68] sm:$0xff] %vm729, %v2315
      %2517 = vst.msk [vmem:[#allocation2 + $0x80] sm:$0xff] %vm729, %v2316
      %2518 = vst.msk [vmem:[#allocation2 + $0x98] sm:$0xff] %vm729, %v2317
      %2519 = vst.msk [vmem:[#allocation2 + $0xb0] sm:$0xff] %vm729, %v2318
      %v2520 = vmul.f32 %v2414, %v1008
      %v2521 = vmul.f32 %v2413, %v1012
      %v2522 = vmul.f32 %v2412, %v1016
      %v2523 = vmul.f32 %v2411, %v1020
      %v2524 = vmul.f32 %v2410, %v1024
      %v2525 = vmul.f32 %v2409, %v1028
      %v2526 = vmul.f32 %v2408, %v1032
      %v2527 = vmul.f32 %v2415, %v1036
      %2536 = vrot.lane.b32.xlu0 %v2520, 32
      %v2537 = vpop.permute.xlu0 %2536
      %2538 = vrot.lane.b32.xlu0 %v2521, 32
      %v2539 = vpop.permute.xlu0 %2538
      %2540 = vrot.lane.b32.xlu0 %v2522, 32
      %v2541 = vpop.permute.xlu0 %2540
      %2542 = vrot.lane.b32.xlu0 %v2523, 32
      %v2543 = vpop.permute.xlu0 %2542
      %2544 = vrot.lane.b32.xlu0 %v2524, 32
      %v2545 = vpop.permute.xlu0 %2544
      %2546 = vrot.lane.b32.xlu0 %v2525, 32
      %v2547 = vpop.permute.xlu0 %2546
      %2548 = vrot.lane.b32.xlu0 %v2526, 32
      %v2549 = vpop.permute.xlu0 %2548
      %2550 = vrot.lane.b32.xlu0 %v2527, 32
      %v2551 = vpop.permute.xlu0 %2550
      %2560 = vst.msk [vmem:[#allocation2 + $0x8] sm:$0xff] %vm810, %v2537
      %2561 = vst.msk [vmem:[#allocation2 + $0x20] sm:$0xff] %vm810, %v2539
      %2562 = vst.msk [vmem:[#allocation2 + $0x38] sm:$0xff] %vm810, %v2541
      %2563 = vst.msk [vmem:[#allocation2 + $0x50] sm:$0xff] %vm810, %v2543
      %2564 = vst.msk [vmem:[#allocation2 + $0x68] sm:$0xff] %vm810, %v2545
      %2565 = vst.msk [vmem:[#allocation2 + $0x80] sm:$0xff] %vm810, %v2547
      %2566 = vst.msk [vmem:[#allocation2 + $0x98] sm:$0xff] %vm810, %v2549
      %2567 = vst.msk [vmem:[#allocation2 + $0xb0] sm:$0xff] %vm810, %v2551
      %v2568 = vmul.f32 %v2334, %v1088
      %v2569 = vmul.f32 %v2333, %v1092
      %v2570 = vmul.f32 %v2332, %v1096
      %v2571 = vmul.f32 %v2331, %v1100
      %v2572 = vmul.f32 %v2330, %v1104
      %v2573 = vmul.f32 %v2329, %v1108
      %v2574 = vmul.f32 %v2328, %v1112
      %v2575 = vmul.f32 %v2335, %v1116
      %2584 = vrot.lane.b32.xlu0 %v2568, 64
      %v2585 = vpop.permute.xlu0 %2584
      %2586 = vrot.lane.b32.xlu0 %v2569, 64
      %v2587 = vpop.permute.xlu0 %2586
      %2588 = vrot.lane.b32.xlu0 %v2570, 64
      %v2589 = vpop.permute.xlu0 %2588
      %2590 = vrot.lane.b32.xlu0 %v2571, 64
      %v2591 = vpop.permute.xlu0 %2590
      %2592 = vrot.lane.b32.xlu0 %v2572, 64
      %v2593 = vpop.permute.xlu0 %2592
      %2594 = vrot.lane.b32.xlu0 %v2573, 64
      %v2595 = vpop.permute.xlu0 %2594
      %2596 = vrot.lane.b32.xlu0 %v2574, 64
      %v2597 = vpop.permute.xlu0 %2596
      %2598 = vrot.lane.b32.xlu0 %v2575, 64
      %v2599 = vpop.permute.xlu0 %2598
      %2608 = vst.msk [vmem:[#allocation2 + $0x8] sm:$0xff] %vm908, %v2585
      %2609 = vst.msk [vmem:[#allocation2 + $0x20] sm:$0xff] %vm908, %v2587
      %2610 = vst.msk [vmem:[#allocation2 + $0x38] sm:$0xff] %vm908, %v2589
      %2611 = vst.msk [vmem:[#allocation2 + $0x50] sm:$0xff] %vm908, %v2591
      %2612 = vst.msk [vmem:[#allocation2 + $0x68] sm:$0xff] %vm908, %v2593
      %2613 = vst.msk [vmem:[#allocation2 + $0x80] sm:$0xff] %vm908, %v2595
      %2614 = vst.msk [vmem:[#allocation2 + $0x98] sm:$0xff] %vm908, %v2597
      %2615 = vst.msk [vmem:[#allocation2 + $0xb0] sm:$0xff] %vm908, %v2599
      %v2616 = vmul.f32 %v2312, %v1168
      %v2617 = vmul.f32 %v2313, %v1172
      %v2618 = vmul.f32 %v2314, %v1176
      %v2619 = vmul.f32 %v2315, %v1180
      %v2620 = vmul.f32 %v2316, %v1184
      %v2621 = vmul.f32 %v2317, %v1188
      %v2622 = vmul.f32 %v2318, %v1192
      %v2623 = vmul.f32 %v2311, %v1196
      %2632 = vrot.lane.b32.xlu0 %v2616, 96
      %v2633 = vpop.permute.xlu0 %2632
      %2634 = vrot.lane.b32.xlu0 %v2617, 96
      %v2635 = vpop.permute.xlu0 %2634
      %2636 = vrot.lane.b32.xlu0 %v2618, 96
      %v2637 = vpop.permute.xlu0 %2636
      %2638 = vrot.lane.b32.xlu0 %v2619, 96
      %v2639 = vpop.permute.xlu0 %2638
      %2640 = vrot.lane.b32.xlu0 %v2620, 96
      %v2641 = vpop.permute.xlu0 %2640
      %2642 = vrot.lane.b32.xlu0 %v2621, 96
      %v2643 = vpop.permute.xlu0 %2642
      %2644 = vrot.lane.b32.xlu0 %v2622, 96
      %v2645 = vpop.permute.xlu0 %2644
      %2646 = vrot.lane.b32.xlu0 %v2623, 96
      %v2647 = vpop.permute.xlu0 %2646
      %2656 = vst.msk [vmem:[#allocation2 + $0x8] sm:$0xff] %vm989, %v2633
      %2657 = vst.msk [vmem:[#allocation2 + $0x20] sm:$0xff] %vm989, %v2635
      %2658 = vst.msk [vmem:[#allocation2 + $0x38] sm:$0xff] %vm989, %v2637
      %2659 = vst.msk [vmem:[#allocation2 + $0x50] sm:$0xff] %vm989, %v2639
      %2660 = vst.msk [vmem:[#allocation2 + $0x68] sm:$0xff] %vm989, %v2641
      %2661 = vst.msk [vmem:[#allocation2 + $0x80] sm:$0xff] %vm989, %v2643
      %2662 = vst.msk [vmem:[#allocation2 + $0x98] sm:$0xff] %vm989, %v2645
      %2663 = vst.msk [vmem:[#allocation2 + $0xb0] sm:$0xff] %vm989, %v2647
      %v2664 = vmul.f32 %v2413, %v1248
      %v2665 = vmul.f32 %v2412, %v1252
      %v2666 = vmul.f32 %v2411, %v1256
      %v2667 = vmul.f32 %v2410, %v1260
      %v2668 = vmul.f32 %v2409, %v1264
      %v2669 = vmul.f32 %v2408, %v1268
      %v2670 = vmul.f32 %v2415, %v1272
      %v2671 = vmul.f32 %v2414, %v1276
      %2672 = vst.msk [vmem:[#allocation2 + $0x10] sm:$0xff] %vm729, %v2664
      %2673 = vst.msk [vmem:[#allocation2 + $0x28] sm:$0xff] %vm729, %v2665
      %2674 = vst.msk [vmem:[#allocation2 + $0x40] sm:$0xff] %vm729, %v2666
      %2675 = vst.msk [vmem:[#allocation2 + $0x58] sm:$0xff] %vm729, %v2667
      %2676 = vst.msk [vmem:[#allocation2 + $0x70] sm:$0xff] %vm729, %v2668
      %2677 = vst.msk [vmem:[#allocation2 + $0x88] sm:$0xff] %vm729, %v2669
      %2678 = vst.msk [vmem:[#allocation2 + $0xa0] sm:$0xff] %vm729, %v2670
      %2679 = vst.msk [vmem:[#allocation2 + $0xb8] sm:$0xff] %vm729, %v2671
      %v2680 = vld [vmem:[#allocation2] sm:$0xff]
      %v2681 = vld [vmem:[#allocation2 + $0x8] sm:$0xff]
      %v2682 = vld [vmem:[#allocation2 + $0x10] sm:$0xff]
      %v2683 = vld [vmem:[#allocation2 + $0x18] sm:$0xff]
      %v2684 = vld [vmem:[#allocation2 + $0x20] sm:$0xff]
      %v2685 = vld [vmem:[#allocation2 + $0x28] sm:$0xff]
      %v2686 = vld [vmem:[#allocation2 + $0x30] sm:$0xff]
      %v2687 = vld [vmem:[#allocation2 + $0x38] sm:$0xff]
      %v2688 = vld [vmem:[#allocation2 + $0x40] sm:$0xff]
      %v2689 = vld [vmem:[#allocation2 + $0x48] sm:$0xff]
      %v2690 = vld [vmem:[#allocation2 + $0x50] sm:$0xff]
      %v2691 = vld [vmem:[#allocation2 + $0x58] sm:$0xff]
      %v2692 = vld [vmem:[#allocation2 + $0x60] sm:$0xff]
      %v2693 = vld [vmem:[#allocation2 + $0x68] sm:$0xff]
      %v2694 = vld [vmem:[#allocation2 + $0x70] sm:$0xff]
      %v2695 = vld [vmem:[#allocation2 + $0x78] sm:$0xff]
      %v2696 = vld [vmem:[#allocation2 + $0x80] sm:$0xff]
      %v2697 = vld [vmem:[#allocation2 + $0x88] sm:$0xff]
      %v2698 = vld [vmem:[#allocation2 + $0x90] sm:$0xff]
      %v2699 = vld [vmem:[#allocation2 + $0x98] sm:$0xff]
      %v2700 = vld [vmem:[#allocation2 + $0xa0] sm:$0xff]
      %v2701 = vld [vmem:[#allocation2 + $0xa8] sm:$0xff]
      %v2702 = vld [vmem:[#allocation2 + $0xb0] sm:$0xff]
      %v2703 = vld [vmem:[#allocation2 + $0xb8] sm:$0xff]
      %v2704 = vpack.c.bf16 %v2683, %v2680
      %v2705 = vpack.c.bf16 %v2684, %v2681
      %v2706 = vpack.c.bf16 %v2685, %v2682
      %v2707 = vpack.c.bf16 %v2689, %v2686
      %v2708 = vpack.c.bf16 %v2690, %v2687
      %v2709 = vpack.c.bf16 %v2691, %v2688
      %v2710 = vpack.c.bf16 %v2695, %v2692
      %v2711 = vpack.c.bf16 %v2696, %v2693
      %v2712 = vpack.c.bf16 %v2697, %v2694
      %v2713 = vpack.c.bf16 %v2701, %v2698
      %v2714 = vpack.c.bf16 %v2702, %v2699
      %v2715 = vpack.c.bf16 %v2703, %v2700
      %v2716 = vld [vmem:[%s7] sm:$0xf]
      %v2717 = vld [vmem:[%s7 + $0x4] sm:$0xf]
      %v2718 = vld [vmem:[%s7 + $0x8] sm:$0xf]
      %v2719 = vld [vmem:[%s7 + $0xc] sm:$0xf]
      %v2720 = vld [vmem:[%s7 + $0x10] sm:$0xf]
      %v2721 = vld [vmem:[%s7 + $0x14] sm:$0xf]
      %v2722 = vld [vmem:[%s7 + $0x18] sm:$0xf]
      %v2723 = vld [vmem:[%s7 + $0x1c] sm:$0xf]
      %v2724 = vld [vmem:[%s7 + $0x20] sm:$0xf]
      %v2725 = vld [vmem:[%s7 + $0x24] sm:$0xf]
      %v2726 = vld [vmem:[%s7 + $0x28] sm:$0xf]
      %v2727 = vld [vmem:[%s7 + $0x2c] sm:$0xf]
      %v2728 = vld [vmem:[%s7 + $0x30] sm:$0xf]
      %v2729 = vld [vmem:[%s7 + $0x34] sm:$0xf]
      %v2730 = vld [vmem:[%s7 + $0x38] sm:$0xf]
      %v2731 = vld [vmem:[%s7 + $0x3c] sm:$0xf]
      %v2732 = vld [vmem:[%s7 + $0x40] sm:$0xf]
      %v2733 = vld [vmem:[%s7 + $0x44] sm:$0xf]
      %v2734 = vld [vmem:[%s7 + $0x48] sm:$0xf]
      %v2735 = vld [vmem:[%s7 + $0x4c] sm:$0xf]
      %v2736 = vld [vmem:[%s7 + $0x50] sm:$0xf]
      %v2737 = vld [vmem:[%s7 + $0x54] sm:$0xf]
      %v2738 = vld [vmem:[%s7 + $0x58] sm:$0xf]
      %v2739 = vld [vmem:[%s7 + $0x5c] sm:$0xf]
      %v2740 = vld [vmem:[%s7 + $0x60] sm:$0xf]
      %v2741 = vld [vmem:[%s7 + $0x64] sm:$0xf]
      %v2742 = vld [vmem:[%s7 + $0x68] sm:$0xf]
      %v2743 = vld [vmem:[%s7 + $0x6c] sm:$0xf]
      %v2744 = vld [vmem:[%s7 + $0x70] sm:$0xf]
      %v2745 = vld [vmem:[%s7 + $0x74] sm:$0xf]
      %v2746 = vld [vmem:[%s7 + $0x78] sm:$0xf]
      %v2747 = vld [vmem:[%s7 + $0x7c] sm:$0xf]
      %v2748 = vld [vmem:[%s7 + $0x80] sm:$0xf]
      %v2749 = vld [vmem:[%s7 + $0x84] sm:$0xf]
      %v2750 = vld [vmem:[%s7 + $0x88] sm:$0xf]
      %v2751 = vld [vmem:[%s7 + $0x8c] sm:$0xf]
      %v2752 = vlaneseq
      %v2753 = vshrl.u32 %v2752, 7
      %v2754 = vsub.s32 0, %v2753
      %v2755 = vrot.slane %v2319, %v2754
      %v2792 = vunpack.c.l.b16 %v2716
      %v2793 = vunpack.c.l.b16 %v2717
      %v2794 = vunpack.c.l.b16 %v2718
      %v2795 = vunpack.c.l.b16 %v2719
      %v2796 = vunpack.c.l.b16 %v2720
      %v2797 = vunpack.c.l.b16 %v2721
      %v2798 = vunpack.c.l.b16 %v2722
      %v2799 = vunpack.c.l.b16 %v2723
      %v2800 = vunpack.c.l.b16 %v2724
      %v2801 = vunpack.c.l.b16 %v2725
      %v2802 = vunpack.c.l.b16 %v2726
      %v2803 = vunpack.c.l.b16 %v2727
      %v2804 = vunpack.c.l.b16 %v2728
      %v2805 = vunpack.c.l.b16 %v2729
      %v2806 = vunpack.c.l.b16 %v2730
      %v2807 = vunpack.c.l.b16 %v2731
      %v2808 = vunpack.c.l.b16 %v2732
      %v2809 = vunpack.c.l.b16 %v2733
      %v2810 = vunpack.c.l.b16 %v2734
      %v2811 = vunpack.c.l.b16 %v2735
      %v2812 = vunpack.c.l.b16 %v2736
      %v2813 = vunpack.c.l.b16 %v2737
      %v2814 = vunpack.c.l.b16 %v2738
      %v2815 = vunpack.c.l.b16 %v2739
      %v2816 = vunpack.c.l.b16 %v2740
      %v2817 = vunpack.c.l.b16 %v2741
      %v2818 = vunpack.c.l.b16 %v2742
      %v2819 = vunpack.c.l.b16 %v2743
      %v2820 = vunpack.c.l.b16 %v2744
      %v2821 = vunpack.c.l.b16 %v2745
      %v2822 = vunpack.c.l.b16 %v2746
      %v2823 = vunpack.c.l.b16 %v2747
      %v2824 = vunpack.c.l.b16 %v2748
      %v2825 = vunpack.c.l.b16 %v2749
      %v2826 = vunpack.c.l.b16 %v2750
      %v2827 = vunpack.c.l.b16 %v2751
      %v2828 = vpack.c.b16 %v2793, %v2792
      %v2829 = vpack.c.b16 %v2795, %v2794
      %v2830 = vpack.c.b16 %v2797, %v2796
      %v2831 = vpack.c.b16 %v2799, %v2798
      %v2832 = vpack.c.b16 %v2801, %v2800
      %v2833 = vpack.c.b16 %v2803, %v2802
      %v2834 = vpack.c.b16 %v2805, %v2804
      %v2835 = vpack.c.b16 %v2807, %v2806
      %v2836 = vpack.c.b16 %v2809, %v2808
      %v2837 = vpack.c.b16 %v2811, %v2810
      %v2838 = vpack.c.b16 %v2813, %v2812
      %v2839 = vpack.c.b16 %v2815, %v2814
      %v2840 = vpack.c.b16 %v2817, %v2816
      %v2841 = vpack.c.b16 %v2819, %v2818
      %v2842 = vpack.c.b16 %v2821, %v2820
      %v2843 = vpack.c.b16 %v2823, %v2822
      %v2844 = vpack.c.b16 %v2825, %v2824
      %v2845 = vpack.c.b16 %v2827, %v2826
      %v2865 = vsel %vm729, %v2706, 0
      %v2868 = vsel %vm729, %v2709, 0
      %v2871 = vsel %vm729, %v2712, 0
      %v2874 = vsel %vm729, %v2715, 0
      %2876 = vmatprep.subr.bf16.mxu0 0
      %2877 = vmatpush1.bf16.msra.mxu0 %v2835
      %2878 = vmatprep.subr.bf16.mxu0 0
      %2879 = vmatpush1.bf16.msra.mxu0 %v2834
      %2880 = vmatprep.subr.bf16.mxu0 0
      %2881 = vmatpush1.bf16.msra.mxu0 %v2833
      %2882 = vmatprep.subr.bf16.mxu0 0
      %2883 = vmatpush1.bf16.msra.mxu0 %v2832
      %2884 = vmatprep.subr.bf16.mxu0 0
      %2885 = vmatpush1.bf16.msra.mxu0 %v2831
      %2886 = vmatprep.subr.bf16.mxu0 0
      %2887 = vmatpush1.bf16.msra.mxu0 %v2830
      %2888 = vmatprep.subr.bf16.mxu0 0
      %2889 = vmatpush1.bf16.msra.mxu0 %v2829
      %2890 = vmatprep.subr.bf16.mxu0 0
      %2891 = vmatpush1.bf16.msra.mxu0 %v2828
      %2892 = vmatprep.subr.bf16.mxu0 0
      %2893 = vmatpush2.bf16.msra.mxu0 %v2843
      %2894 = vmatprep.subr.bf16.mxu0 0
      %2895 = vmatpush2.bf16.msra.mxu0 %v2842
      %2896 = vmatprep.subr.bf16.mxu0 0
      %2897 = vmatpush2.bf16.msra.mxu0 %v2841
      %2898 = vmatprep.subr.bf16.mxu0 0
      %2899 = vmatpush2.bf16.msra.mxu0 %v2840
      %2900 = vmatprep.subr.bf16.mxu0 0
      %2901 = vmatpush2.bf16.msra.mxu0 %v2839
      %2902 = vmatprep.subr.bf16.mxu0 0
      %2903 = vmatpush2.bf16.msra.mxu0 %v2838
      %2904 = vmatprep.subr.bf16.mxu0 0
      %2905 = vmatpush2.bf16.msra.mxu0 %v2837
      %2906 = vmatprep.subr.bf16.mxu0 0
      %2907 = vmatpush2.bf16.msra.mxu0 %v2836
      %2908 = vmatprep.mubr.bf16.mxu0 %v2705
      %2909 = vmatmul.mubr.bf16.gmra.mxu0 %v2704
      %v2910 = vpop.f32.mrf.mxu0
      %v2911 = vadd.f32 %v2755, %v2910
      %v2912 = vpop.f32.mrf.mxu0
      %v2913 = vpop.f32.mrf.mxu0
      %v2914 = vadd.f32 %v2755, %v2913
      %v2915 = vpop.f32.mrf.mxu0
      %2916 = vmatprep.mubr.bf16.mxu0 %v2708
      %2917 = vmatmul.mubr.bf16.gmra.mxu0 %v2707
      %v2918 = vpop.f32.mrf.mxu0
      %v2919 = vadd.f32 %v2755, %v2918
      %v2920 = vpop.f32.mrf.mxu0
      %v2921 = vpop.f32.mrf.mxu0
      %v2922 = vadd.f32 %v2755, %v2921
      %v2923 = vpop.f32.mrf.mxu0
      %2924 = vmatprep.mubr.bf16.mxu0 %v2711
      %2925 = vmatmul.mubr.bf16.gmra.mxu0 %v2710
      %v2926 = vpop.f32.mrf.mxu0
      %v2927 = vadd.f32 %v2755, %v2926
      %v2928 = vpop.f32.mrf.mxu0
      %v2929 = vpop.f32.mrf.mxu0
      %v2930 = vadd.f32 %v2755, %v2929
      %v2931 = vpop.f32.mrf.mxu0
      %2932 = vmatprep.mubr.bf16.mxu0 %v2714
      %2933 = vmatmul.mubr.bf16.gmra.mxu0 %v2713
      %v2934 = vpop.f32.mrf.mxu0
      %v2935 = vadd.f32 %v2755, %v2934
      %v2936 = vpop.f32.mrf.mxu0
      %v2937 = vpop.f32.mrf.mxu0
      %v2938 = vadd.f32 %v2755, %v2937
      %v2939 = vpop.f32.mrf.mxu0
      %2940 = vdwg.mxu0
      %2941 = vmatprep.subr.bf16.mxu0 0
      %2942 = vmatpush1.bf16.msra.mxu0 0
      %2943 = vmatprep.subr.bf16.mxu0 0
      %2944 = vmatpush1.bf16.msra.mxu0 0
      %2945 = vmatprep.subr.bf16.mxu0 0
      %2946 = vmatpush1.bf16.msra.mxu0 0
      %2947 = vmatprep.subr.bf16.mxu0 0
      %2948 = vmatpush1.bf16.msra.mxu0 0
      %2949 = vmatprep.subr.bf16.mxu0 0
      %2950 = vmatpush1.bf16.msra.mxu0 0
      %2951 = vmatprep.subr.bf16.mxu0 0
      %2952 = vmatpush1.bf16.msra.mxu0 0
      %2953 = vmatprep.subr.bf16.mxu0 0
      %2954 = vmatpush1.bf16.msra.mxu0 %v2845
      %2955 = vmatprep.subr.bf16.mxu0 0
      %2956 = vmatpush1.bf16.msra.mxu0 %v2844
      %2957 = vmatprep.subr.bf16.mxu0 0
      %2958 = vmatpush2.bf16.msra.mxu0 0
      %2959 = vmatprep.subr.bf16.mxu0 0
      %2960 = vmatpush2.bf16.msra.mxu0 0
      %2961 = vmatprep.subr.bf16.mxu0 0
      %2962 = vmatpush2.bf16.msra.mxu0 0
      %2963 = vmatprep.subr.bf16.mxu0 0
      %2964 = vmatpush2.bf16.msra.mxu0 0
      %2965 = vmatprep.subr.bf16.mxu0 0
      %2966 = vmatpush2.bf16.msra.mxu0 0
      %2967 = vmatprep.subr.bf16.mxu0 0
      %2968 = vmatpush2.bf16.msra.mxu0 0
      %2969 = vmatprep.subr.bf16.mxu0 0
      %2970 = vmatpush2.bf16.msra.mxu0 0
      %2971 = vmatprep.subr.bf16.mxu0 0
      %2972 = vmatpush2.bf16.msra.mxu0 0
      %2973 = vmatprep.mubr.bf16.mxu0 0
      %2974 = vmatmul.mubr.bf16.gmra.mxu0 %v2865
      %v2975 = vpop.f32.mrf.mxu0
      %v2976 = vadd.f32 %v2911, %v2975
      %v2977 = vpop.f32.mrf.mxu0
      %v2978 = vpop.f32.mrf.mxu0
      %v2979 = vadd.f32 %v2914, %v2978
      %v2980 = vpop.f32.mrf.mxu0
      %2981 = vmatprep.mubr.bf16.mxu0 0
      %2982 = vmatmul.mubr.bf16.gmra.mxu0 %v2868
      %v2983 = vpop.f32.mrf.mxu0
      %v2984 = vadd.f32 %v2919, %v2983
      %v2985 = vpop.f32.mrf.mxu0
      %v2986 = vpop.f32.mrf.mxu0
      %v2987 = vadd.f32 %v2922, %v2986
      %v2988 = vpop.f32.mrf.mxu0
      %2989 = vmatprep.mubr.bf16.mxu0 0
      %2990 = vmatmul.mubr.bf16.gmra.mxu0 %v2871
      %v2991 = vpop.f32.mrf.mxu0
      %v2992 = vadd.f32 %v2927, %v2991
      %v2993 = vpop.f32.mrf.mxu0
      %v2994 = vpop.f32.mrf.mxu0
      %v2995 = vadd.f32 %v2930, %v2994
      %v2996 = vpop.f32.mrf.mxu0
      %2997 = vmatprep.mubr.bf16.mxu0 0
      %2998 = vmatmul.mubr.bf16.gmra.mxu0 %v2874
      %v2999 = vpop.f32.mrf.mxu0
      %v3000 = vadd.f32 %v2935, %v2999
      %v3001 = vpop.f32.mrf.mxu0
      %v3002 = vpop.f32.mrf.mxu0
      %v3003 = vadd.f32 %v2938, %v3002
      %v3004 = vpop.f32.mrf.mxu0
      %3005 = vdwg.mxu0
      %v3006 = vmax.f32 %v2976, 0.0
      %v3007 = vmax.f32 %v2979, 0.0
      %v3008 = vmax.f32 %v2984, 0.0
      %v3009 = vmax.f32 %v2987, 0.0
      %v3010 = vmax.f32 %v2992, 0.0
      %v3011 = vmax.f32 %v2995, 0.0
      %v3012 = vmax.f32 %v3000, 0.0
      %v3013 = vmax.f32 %v3003, 0.0
      %v3014 = vpack.c.bf16 %v3007, %v3006
      %v3015 = vpack.c.bf16 %v3009, %v3008
      %v3016 = vpack.c.bf16 %v3011, %v3010
      %v3017 = vpack.c.bf16 %v3013, %v3012
      %v3018 = vld [vmem:[%s9] sm:$0xf]
      %v3019 = vld [vmem:[%s9 + $0x4] sm:$0xf]
      %v3020 = vld [vmem:[%s9 + $0x8] sm:$0xf]
      %v3021 = vld [vmem:[%s9 + $0xc] sm:$0xf]
      %v3026 = vunpack.c.l.b16 %v3018
      %v3027 = vunpack.c.l.b16 %v3019
      %v3028 = vunpack.c.l.b16 %v3020
      %v3029 = vunpack.c.l.b16 %v3021
      %v3030 = vpack.c.b16 %v3027, %v3026
      %v3031 = vpack.c.b16 %v3029, %v3028
      %v3035 = vsel %vm729, %v3014, 0
      %v3038 = vsel %vm729, %v3015, 0
      %v3041 = vsel %vm729, %v3016, 0
      %v3044 = vsel %vm729, %v3017, 0
      %3046 = vmatprep.subr.bf16.mxu0 0
      %3047 = vmatpush1.bf16.msra.mxu0 0
      %3048 = vmatprep.subr.bf16.mxu0 0
      %3049 = vmatpush1.bf16.msra.mxu0 0
      %3050 = vmatprep.subr.bf16.mxu0 0
      %3051 = vmatpush1.bf16.msra.mxu0 0
      %3052 = vmatprep.subr.bf16.mxu0 0
      %3053 = vmatpush1.bf16.msra.mxu0 0
      %3054 = vmatprep.subr.bf16.mxu0 0
      %3055 = vmatpush1.bf16.msra.mxu0 0
      %3056 = vmatprep.subr.bf16.mxu0 0
      %3057 = vmatpush1.bf16.msra.mxu0 0
      %3058 = vmatprep.subr.bf16.mxu0 0
      %3059 = vmatpush1.bf16.msra.mxu0 %v3031
      %3060 = vmatprep.subr.bf16.mxu0 0
      %3061 = vmatpush1.bf16.msra.mxu0 %v3030
      %3062 = vmatprep.subr.bf16.mxu0 0
      %3063 = vmatpush2.bf16.msra.mxu0 0
      %3064 = vmatprep.subr.bf16.mxu0 0
      %3065 = vmatpush2.bf16.msra.mxu0 0
      %3066 = vmatprep.subr.bf16.mxu0 0
      %3067 = vmatpush2.bf16.msra.mxu0 0
      %3068 = vmatprep.subr.bf16.mxu0 0
      %3069 = vmatpush2.bf16.msra.mxu0 0
      %3070 = vmatprep.subr.bf16.mxu0 0
      %3071 = vmatpush2.bf16.msra.mxu0 0
      %3072 = vmatprep.subr.bf16.mxu0 0
      %3073 = vmatpush2.bf16.msra.mxu0 0
      %3074 = vmatprep.subr.bf16.mxu0 0
      %3075 = vmatpush2.bf16.msra.mxu0 0
      %3076 = vmatprep.subr.bf16.mxu0 0
      %3077 = vmatpush2.bf16.msra.mxu0 0
      %3078 = vmatprep.mubr.bf16.mxu0 0
      %3079 = vmatmul.mubr.bf16.gmra.mxu0 %v3035
      %v3080 = vpop.f32.mrf.mxu0
      %v3081 = vadd.f32 0.0, %v3080
      %v3082 = vpop.f32.mrf.mxu0
      %v3083 = vpop.f32.mrf.mxu0
      %v3084 = vadd.f32 0.0, %v3083
      %v3085 = vpop.f32.mrf.mxu0
      %3086 = vmatprep.mubr.bf16.mxu0 0
      %3087 = vmatmul.mubr.bf16.gmra.mxu0 %v3038
      %v3088 = vpop.f32.mrf.mxu0
      %v3089 = vadd.f32 0.0, %v3088
      %v3090 = vpop.f32.mrf.mxu0
      %v3091 = vpop.f32.mrf.mxu0
      %v3092 = vadd.f32 0.0, %v3091
      %v3093 = vpop.f32.mrf.mxu0
      %3094 = vmatprep.mubr.bf16.mxu0 0
      %3095 = vmatmul.mubr.bf16.gmra.mxu0 %v3041
      %v3096 = vpop.f32.mrf.mxu0
      %v3097 = vadd.f32 0.0, %v3096
      %v3098 = vpop.f32.mrf.mxu0
      %v3099 = vpop.f32.mrf.mxu0
      %v3100 = vadd.f32 0.0, %v3099
      %v3101 = vpop.f32.mrf.mxu0
      %3102 = vmatprep.mubr.bf16.mxu0 0
      %3103 = vmatmul.mubr.bf16.gmra.mxu0 %v3044
      %v3104 = vpop.f32.mrf.mxu0
      %v3105 = vadd.f32 0.0, %v3104
      %v3106 = vpop.f32.mrf.mxu0
      %v3107 = vpop.f32.mrf.mxu0
      %v3108 = vadd.f32 0.0, %v3107
      %v3109 = vpop.f32.mrf.mxu0
      %3110 = vdwg.mxu0
      %v3111 = vpack.c.bf16 %v3084, %v3081
      %v3112 = vpack.c.bf16 %v3092, %v3089
      %v3113 = vpack.c.bf16 %v3100, %v3097
      %v3114 = vpack.c.bf16 %v3108, %v3105
      %v3115 = vld [vmem:[%s10] sm:$0xf]
      %v3116 = vld [vmem:[%s10 + $0x4] sm:$0xf]
      %v3117 = vld [vmem:[%s10 + $0x8] sm:$0xf]
      %v3118 = vld [vmem:[%s10 + $0xc] sm:$0xf]
      %v3119 = vld [vmem:[%s10 + $0x10] sm:$0xf]
      %v3120 = vld [vmem:[%s10 + $0x14] sm:$0xf]
      %v3121 = vld [vmem:[%s10 + $0x18] sm:$0xf]
      %v3122 = vld [vmem:[%s10 + $0x1c] sm:$0xf]
      %3123 = vxpose.xlu0.c.b16.start [1/8] %v3111, 128
      %3124 = vxpose.xlu0.c.b16.cont [2/8] %v3112, 128
      %3125 = vxpose.xlu0.c.b16.cont [3/8] %v3113, 128
      %3126 = vxpose.xlu0.c.b16.cont [4/8] %v3114, 128
      %3127 = vxpose.xlu0.c.b16.cont [5/8] 0, 128
      %3128 = vxpose.xlu0.c.b16.cont [6/8] 0, 128
      %3129 = vxpose.xlu0.c.b16.cont [7/8] 0, 128
      %3130 = vxpose.xlu0.c.b16.end [8/8] 0, 128
      %v3131 = vpop.trf.xlu0
      %v3132 = vpop.trf.xlu0
      %v3133 = vpop.trf.xlu0
      %v3134 = vpop.trf.xlu0
      %v3135 = vpop.trf.xlu0
      %v3136 = vpop.trf.xlu0
      %v3137 = vpop.trf.xlu0
      %v3138 = vpop.trf.xlu0
      %v3147 = vunpack.c.l.b16 %v3115
      %v3148 = vunpack.c.l.b16 %v3116
      %v3149 = vunpack.c.l.b16 %v3117
      %v3150 = vunpack.c.l.b16 %v3118
      %v3151 = vunpack.c.l.b16 %v3119
      %v3152 = vunpack.c.l.b16 %v3120
      %v3153 = vunpack.c.l.b16 %v3121
      %v3154 = vunpack.c.l.b16 %v3122
      %v3155 = vpack.c.b16 %v3148, %v3147
      %v3156 = vpack.c.b16 %v3150, %v3149
      %v3157 = vpack.c.b16 %v3152, %v3151
      %v3158 = vpack.c.b16 %v3154, %v3153
      %vm3163 = vcmask 523264
      %v3165 = vsel %vm3163, %v3131, 0
      %3167 = vmatprep.subr.bf16.mxu0 0
      %3168 = vmatpush1.bf16.msra.mxu0 0
      %3169 = vmatprep.subr.bf16.mxu0 0
      %3170 = vmatpush1.bf16.msra.mxu0 0
      %3171 = vmatprep.subr.bf16.mxu0 0
      %3172 = vmatpush1.bf16.msra.mxu0 0
      %3173 = vmatprep.subr.bf16.mxu0 0
      %3174 = vmatpush1.bf16.msra.mxu0 0
      %3175 = vmatprep.subr.bf16.mxu0 0
      %3176 = vmatpush1.bf16.msra.mxu0 %v3158
      %3177 = vmatprep.subr.bf16.mxu0 0
      %3178 = vmatpush1.bf16.msra.mxu0 %v3157
      %3179 = vmatprep.subr.bf16.mxu0 0
      %3180 = vmatpush1.bf16.msra.mxu0 %v3156
      %3181 = vmatprep.subr.bf16.mxu0 0
      %3182 = vmatpush1.bf16.msra.mxu0 %v3155
      %3183 = vmatprep.subr.bf16.mxu0 0
      %3184 = vmatpush2.bf16.msra.mxu0 0
      %3185 = vmatprep.subr.bf16.mxu0 0
      %3186 = vmatpush2.bf16.msra.mxu0 0
      %3187 = vmatprep.subr.bf16.mxu0 0
      %3188 = vmatpush2.bf16.msra.mxu0 0
      %3189 = vmatprep.subr.bf16.mxu0 0
      %3190 = vmatpush2.bf16.msra.mxu0 0
      %3191 = vmatprep.subr.bf16.mxu0 0
      %3192 = vmatpush2.bf16.msra.mxu0 0
      %3193 = vmatprep.subr.bf16.mxu0 0
      %3194 = vmatpush2.bf16.msra.mxu0 0
      %3195 = vmatprep.subr.bf16.mxu0 0
      %3196 = vmatpush2.bf16.msra.mxu0 0
      %3197 = vmatprep.subr.bf16.mxu0 0
      %3198 = vmatpush2.bf16.msra.mxu0 0
      %3199 = vmatprep.mubr.bf16.mxu0 0
      %3200 = vmatmul.mubr.bf16.gmra.mxu0 %v3165
      %v3201 = vpop.f32.mrf.mxu0
      %v3202 = vadd.f32 0.0, %v3201
      %v3203 = vpop.f32.mrf.mxu0
      %v3204 = vpop.f32.mrf.mxu0
      %v3205 = vadd.f32 0.0, %v3204
      %v3206 = vpop.f32.mrf.mxu0
      %3207 = vdwg.mxu0
      %v3208 = vmax.f32 %v3202, 0.0
      %v3209 = vmax.f32 %v3205, 0.0
      %v3210 = vld [vmem:[%s628] sm:$0xff]
      %v3211 = vld [vmem:[%s628 + $0x8] sm:$0xff]
      %v3212 = vpack.c.bf16 %v3211, %v3210
      %v3213 = vld [vmem:[%s11] sm:$0xf]
      %v3214 = vld [vmem:[%s11 + $0x4] sm:$0xf]
      %v3215 = vld [vmem:[%s11 + $0x8] sm:$0xf]
      %v3216 = vld [vmem:[%s11 + $0xc] sm:$0xf]
      %v3217 = vld [vmem:[%s11 + $0x10] sm:$0xf]
      %v3218 = vld [vmem:[%s11 + $0x14] sm:$0xf]
      %v3219 = vld [vmem:[%s11 + $0x18] sm:$0xf]
      %v3220 = vld [vmem:[%s11 + $0x1c] sm:$0xf]
      %v3229 = vunpack.c.l.b16 %v3213
      %v3230 = vunpack.c.l.b16 %v3214
      %v3231 = vunpack.c.l.b16 %v3215
      %v3232 = vunpack.c.l.b16 %v3216
      %v3233 = vunpack.c.l.b16 %v3217
      %v3234 = vunpack.c.l.b16 %v3218
      %v3235 = vunpack.c.l.b16 %v3219
      %v3236 = vunpack.c.l.b16 %v3220
      %v3237 = vpack.c.b16 %v3230, %v3229
      %v3238 = vpack.c.b16 %v3232, %v3231
      %v3239 = vpack.c.b16 %v3234, %v3233
      %v3240 = vpack.c.b16 %v3236, %v3235
      %v3246 = vsel %vm3163, %v3212, 0
      %3248 = vmatprep.subr.bf16.mxu0 0
      %3249 = vmatpush1.bf16.msra.mxu0 0
      %3250 = vmatprep.subr.bf16.mxu0 0
      %3251 = vmatpush1.bf16.msra.mxu0 0
      %3252 = vmatprep.subr.bf16.mxu0 0
      %3253 = vmatpush1.bf16.msra.mxu0 0
      %3254 = vmatprep.subr.bf16.mxu0 0
      %3255 = vmatpush1.bf16.msra.mxu0 0
      %3256 = vmatprep.subr.bf16.mxu0 0
      %3257 = vmatpush1.bf16.msra.mxu0 %v3240
      %3258 = vmatprep.subr.bf16.mxu0 0
      %3259 = vmatpush1.bf16.msra.mxu0 %v3239
      %3260 = vmatprep.subr.bf16.mxu0 0
      %3261 = vmatpush1.bf16.msra.mxu0 %v3238
      %3262 = vmatprep.subr.bf16.mxu0 0
      %3263 = vmatpush1.bf16.msra.mxu0 %v3237
      %3264 = vmatprep.subr.bf16.mxu0 0
      %3265 = vmatpush2.bf16.msra.mxu0 0
      %3266 = vmatprep.subr.bf16.mxu0 0
      %3267 = vmatpush2.bf16.msra.mxu0 0
      %3268 = vmatprep.subr.bf16.mxu0 0
      %3269 = vmatpush2.bf16.msra.mxu0 0
      %3270 = vmatprep.subr.bf16.mxu0 0
      %3271 = vmatpush2.bf16.msra.mxu0 0
      %3272 = vmatprep.subr.bf16.mxu0 0
      %3273 = vmatpush2.bf16.msra.mxu0 0
      %3274 = vmatprep.subr.bf16.mxu0 0
      %3275 = vmatpush2.bf16.msra.mxu0 0
      %3276 = vmatprep.subr.bf16.mxu0 0
      %3277 = vmatpush2.bf16.msra.mxu0 0
      %3278 = vmatprep.subr.bf16.mxu0 0
      %3279 = vmatpush2.bf16.msra.mxu0 0
      %3280 = vmatprep.mubr.bf16.mxu0 0
      %3281 = vmatmul.mubr.bf16.gmra.mxu0 %v3246
      %v3282 = vpop.f32.mrf.mxu0
      %v3283 = vadd.f32 0.0, %v3282
      %v3284 = vpop.f32.mrf.mxu0
      %v3285 = vpop.f32.mrf.mxu0
      %v3286 = vadd.f32 0.0, %v3285
      %v3287 = vpop.f32.mrf.mxu0
      %3288 = vdwg.mxu0
      %v3289 = vmax.f32 %v3283, 0.0
      %v3290 = vmax.f32 %v3286, 0.0
      %v3291 = vld [vmem:[%s12] sm:$0xff]
      %v3292 = vld [vmem:[%s12 + $0x8] sm:$0xff]
      %v3293 = vadd.f32 %v3208, %v3291
      %v3294 = vadd.f32 %v3209, %v3292
      %v3295 = vpack.c.bf16 %v3294, %v3293
      %v3296 = vld [vmem:[%s13] sm:$0xff]
      %v3297 = vld [vmem:[%s13 + $0x8] sm:$0xff]
      %v3298 = vadd.f32 %v3289, %v3296
      %v3299 = vadd.f32 %v3290, %v3297
      %v3300 = vpack.c.bf16 %v3299, %v3298
      %v3301 = vld [vmem:[%s14] sm:$0xf]
      %v3302 = vld [vmem:[%s14 + $0x4] sm:$0xf]
      %v3303 = vld [vmem:[%s14 + $0x8] sm:$0xf]
      %v3304 = vld [vmem:[%s14 + $0xc] sm:$0xf]
      %v3305 = vld [vmem:[%s14 + $0x10] sm:$0xf]
      %v3306 = vld [vmem:[%s14 + $0x14] sm:$0xf]
      %v3307 = vld [vmem:[%s14 + $0x18] sm:$0xf]
      %v3308 = vld [vmem:[%s14 + $0x1c] sm:$0xf]
      %v3309 = vld [vmem:[%s18] sm:$0x1]
      %v3310 = vlaneseq
      %v3311 = vshrl.u32 %v3310, 7
      %v3312 = vsub.s32 0, %v3311
      %v3313 = vrot.slane %v3309, %v3312
      %v3322 = vunpack.c.l.b16 %v3301
      %v3323 = vunpack.c.l.b16 %v3302
      %v3324 = vunpack.c.l.b16 %v3303
      %v3325 = vunpack.c.l.b16 %v3304
      %v3326 = vunpack.c.l.b16 %v3305
      %v3327 = vunpack.c.l.b16 %v3306
      %v3328 = vunpack.c.l.b16 %v3307
      %v3329 = vunpack.c.l.b16 %v3308
      %v3330 = vpack.c.b16 %v3323, %v3322
      %v3331 = vpack.c.b16 %v3325, %v3324
      %v3332 = vpack.c.b16 %v3327, %v3326
      %v3333 = vpack.c.b16 %v3329, %v3328
      %v3339 = vsel %vm3163, %v3295, 0
      %3341 = vmatprep.subr.bf16.mxu0 0
      %3342 = vmatpush1.bf16.msra.mxu0 0
      %3343 = vmatprep.subr.bf16.mxu0 0
      %3344 = vmatpush1.bf16.msra.mxu0 0
      %3345 = vmatprep.subr.bf16.mxu0 0
      %3346 = vmatpush1.bf16.msra.mxu0 0
      %3347 = vmatprep.subr.bf16.mxu0 0
      %3348 = vmatpush1.bf16.msra.mxu0 0
      %3349 = vmatprep.subr.bf16.mxu0 0
      %3350 = vmatpush1.bf16.msra.mxu0 %v3333
      %3351 = vmatprep.subr.bf16.mxu0 0
      %3352 = vmatpush1.bf16.msra.mxu0 %v3332
      %3353 = vmatprep.subr.bf16.mxu0 0
      %3354 = vmatpush1.bf16.msra.mxu0 %v3331
      %3355 = vmatprep.subr.bf16.mxu0 0
      %3356 = vmatpush1.bf16.msra.mxu0 %v3330
      %3357 = vmatprep.subr.bf16.mxu0 0
      %3358 = vmatpush2.bf16.msra.mxu0 0
      %3359 = vmatprep.subr.bf16.mxu0 0
      %3360 = vmatpush2.bf16.msra.mxu0 0
      %3361 = vmatprep.subr.bf16.mxu0 0
      %3362 = vmatpush2.bf16.msra.mxu0 0
      %3363 = vmatprep.subr.bf16.mxu0 0
      %3364 = vmatpush2.bf16.msra.mxu0 0
      %3365 = vmatprep.subr.bf16.mxu0 0
      %3366 = vmatpush2.bf16.msra.mxu0 0
      %3367 = vmatprep.subr.bf16.mxu0 0
      %3368 = vmatpush2.bf16.msra.mxu0 0
      %3369 = vmatprep.subr.bf16.mxu0 0
      %3370 = vmatpush2.bf16.msra.mxu0 0
      %3371 = vmatprep.subr.bf16.mxu0 0
      %3372 = vmatpush2.bf16.msra.mxu0 0
      %3373 = vmatprep.mubr.bf16.mxu0 0
      %3374 = vmatmul.mubr.bf16.gmra.mxu0 %v3339
      %v3375 = vpop.f32.mrf.mxu0
      %v3376 = vadd.f32 %v3313, %v3375
      %v3377 = vpop.f32.mrf.mxu0
      %v3378 = vpop.f32.mrf.mxu0
      %v3379 = vadd.f32 %v3313, %v3378
      %v3380 = vpop.f32.mrf.mxu0
      %3381 = vdwg.mxu0
      %v3382 = vld [vmem:[%s15] sm:$0xf]
      %v3383 = vld [vmem:[%s15 + $0x4] sm:$0xf]
      %v3384 = vld [vmem:[%s15 + $0x8] sm:$0xf]
      %v3385 = vld [vmem:[%s15 + $0xc] sm:$0xf]
      %v3386 = vld [vmem:[%s15 + $0x10] sm:$0xf]
      %v3387 = vld [vmem:[%s15 + $0x14] sm:$0xf]
      %v3388 = vld [vmem:[%s15 + $0x18] sm:$0xf]
      %v3389 = vld [vmem:[%s15 + $0x1c] sm:$0xf]
      %v3390 = vld [vmem:[%s18 + $0x1] sm:$0x1]
      %v3391 = vlaneseq
      %v3392 = vshrl.u32 %v3391, 7
      %v3393 = vsub.s32 0, %v3392
      %v3394 = vrot.slane %v3390, %v3393
      %v3403 = vunpack.c.l.b16 %v3382
      %v3404 = vunpack.c.l.b16 %v3383
      %v3405 = vunpack.c.l.b16 %v3384
      %v3406 = vunpack.c.l.b16 %v3385
      %v3407 = vunpack.c.l.b16 %v3386
      %v3408 = vunpack.c.l.b16 %v3387
      %v3409 = vunpack.c.l.b16 %v3388
      %v3410 = vunpack.c.l.b16 %v3389
      %v3411 = vpack.c.b16 %v3404, %v3403
      %v3412 = vpack.c.b16 %v3406, %v3405
      %v3413 = vpack.c.b16 %v3408, %v3407
      %v3414 = vpack.c.b16 %v3410, %v3409
      %v3420 = vsel %vm3163, %v3300, 0
      %3422 = vmatprep.subr.bf16.mxu0 0
      %3423 = vmatpush1.bf16.msra.mxu0 0
      %3424 = vmatprep.subr.bf16.mxu0 0
      %3425 = vmatpush1.bf16.msra.mxu0 0
      %3426 = vmatprep.subr.bf16.mxu0 0
      %3427 = vmatpush1.bf16.msra.mxu0 0
      %3428 = vmatprep.subr.bf16.mxu0 0
      %3429 = vmatpush1.bf16.msra.mxu0 0
      %3430 = vmatprep.subr.bf16.mxu0 0
      %3431 = vmatpush1.bf16.msra.mxu0 %v3414
      %3432 = vmatprep.subr.bf16.mxu0 0
      %3433 = vmatpush1.bf16.msra.mxu0 %v3413
      %3434 = vmatprep.subr.bf16.mxu0 0
      %3435 = vmatpush1.bf16.msra.mxu0 %v3412
      %3436 = vmatprep.subr.bf16.mxu0 0
      %3437 = vmatpush1.bf16.msra.mxu0 %v3411
      %3438 = vmatprep.subr.bf16.mxu0 0
      %3439 = vmatpush2.bf16.msra.mxu0 0
      %3440 = vmatprep.subr.bf16.mxu0 0
      %3441 = vmatpush2.bf16.msra.mxu0 0
      %3442 = vmatprep.subr.bf16.mxu0 0
      %3443 = vmatpush2.bf16.msra.mxu0 0
      %3444 = vmatprep.subr.bf16.mxu0 0
      %3445 = vmatpush2.bf16.msra.mxu0 0
      %3446 = vmatprep.subr.bf16.mxu0 0
      %3447 = vmatpush2.bf16.msra.mxu0 0
      %3448 = vmatprep.subr.bf16.mxu0 0
      %3449 = vmatpush2.bf16.msra.mxu0 0
      %3450 = vmatprep.subr.bf16.mxu0 0
      %3451 = vmatpush2.bf16.msra.mxu0 0
      %3452 = vmatprep.subr.bf16.mxu0 0
      %3453 = vmatpush2.bf16.msra.mxu0 0
      %3454 = vmatprep.mubr.bf16.mxu0 0
      %3455 = vmatmul.mubr.bf16.gmra.mxu0 %v3420
      %v3456 = vpop.f32.mrf.mxu0
      %v3457 = vadd.f32 %v3394, %v3456
      %v3458 = vpop.f32.mrf.mxu0
      %v3459 = vpop.f32.mrf.mxu0
      %v3460 = vadd.f32 %v3394, %v3459
      %v3461 = vpop.f32.mrf.mxu0
      %3462 = vdwg.mxu0
      %v3463 = vld [vmem:[%s16] sm:$0xf]
      %v3464 = vld [vmem:[%s16 + $0x4] sm:$0xf]
      %v3465 = vld [vmem:[%s16 + $0x8] sm:$0xf]
      %v3466 = vld [vmem:[%s16 + $0xc] sm:$0xf]
      %v3467 = vld [vmem:[%s16 + $0x10] sm:$0xf]
      %v3468 = vld [vmem:[%s16 + $0x14] sm:$0xf]
      %v3469 = vld [vmem:[%s16 + $0x18] sm:$0xf]
      %v3470 = vld [vmem:[%s16 + $0x1c] sm:$0xf]
      %v3471 = vld [vmem:[%s18 + $0x2] sm:$0x1]
      %v3472 = vlaneseq
      %v3473 = vshrl.u32 %v3472, 7
      %v3474 = vsub.s32 0, %v3473
      %v3475 = vrot.slane %v3471, %v3474
      %v3484 = vunpack.c.l.b16 %v3463
      %v3485 = vunpack.c.l.b16 %v3464
      %v3486 = vunpack.c.l.b16 %v3465
      %v3487 = vunpack.c.l.b16 %v3466
      %v3488 = vunpack.c.l.b16 %v3467
      %v3489 = vunpack.c.l.b16 %v3468
      %v3490 = vunpack.c.l.b16 %v3469
      %v3491 = vunpack.c.l.b16 %v3470
      %v3492 = vpack.c.b16 %v3485, %v3484
      %v3493 = vpack.c.b16 %v3487, %v3486
      %v3494 = vpack.c.b16 %v3489, %v3488
      %v3495 = vpack.c.b16 %v3491, %v3490
      %3500 = vmatprep.subr.bf16.mxu0 0
      %3501 = vmatpush1.bf16.msra.mxu0 0
      %3502 = vmatprep.subr.bf16.mxu0 0
      %3503 = vmatpush1.bf16.msra.mxu0 0
      %3504 = vmatprep.subr.bf16.mxu0 0
      %3505 = vmatpush1.bf16.msra.mxu0 0
      %3506 = vmatprep.subr.bf16.mxu0 0
      %3507 = vmatpush1.bf16.msra.mxu0 0
      %3508 = vmatprep.subr.bf16.mxu0 0
      %3509 = vmatpush1.bf16.msra.mxu0 %v3495
      %3510 = vmatprep.subr.bf16.mxu0 0
      %3511 = vmatpush1.bf16.msra.mxu0 %v3494
      %3512 = vmatprep.subr.bf16.mxu0 0
      %3513 = vmatpush1.bf16.msra.mxu0 %v3493
      %3514 = vmatprep.subr.bf16.mxu0 0
      %3515 = vmatpush1.bf16.msra.mxu0 %v3492
      %3516 = vmatprep.subr.bf16.mxu0 0
      %3517 = vmatpush2.bf16.msra.mxu0 0
      %3518 = vmatprep.subr.bf16.mxu0 0
      %3519 = vmatpush2.bf16.msra.mxu0 0
      %3520 = vmatprep.subr.bf16.mxu0 0
      %3521 = vmatpush2.bf16.msra.mxu0 0
      %3522 = vmatprep.subr.bf16.mxu0 0
      %3523 = vmatpush2.bf16.msra.mxu0 0
      %3524 = vmatprep.subr.bf16.mxu0 0
      %3525 = vmatpush2.bf16.msra.mxu0 0
      %3526 = vmatprep.subr.bf16.mxu0 0
      %3527 = vmatpush2.bf16.msra.mxu0 0
      %3528 = vmatprep.subr.bf16.mxu0 0
      %3529 = vmatpush2.bf16.msra.mxu0 0
      %3530 = vmatprep.subr.bf16.mxu0 0
      %3531 = vmatpush2.bf16.msra.mxu0 0
      %3532 = vmatprep.mubr.bf16.mxu0 0
      %3533 = vmatmul.mubr.bf16.gmra.mxu0 %v3420
      %v3534 = vpop.f32.mrf.mxu0
      %v3535 = vadd.f32 %v3475, %v3534
      %v3536 = vpop.f32.mrf.mxu0
      %v3537 = vpop.f32.mrf.mxu0
      %v3538 = vadd.f32 %v3475, %v3537
      %v3539 = vpop.f32.mrf.mxu0
      %3540 = vdwg.mxu0
      %v3541 = vld [vmem:[%s631] sm:$0x1]
      %v3542 = vsub.f32 %v3541, 1.0
      %v3543 = vmul.f32 %v3542, 1e+30
      %v3544 = vmul.f32 %v3376, 0.35355338
      %v3545 = vmul.f32 %v3379, 0.35355338
      %v3546 = vpack.c.bf16 %v3545, %v3544
      %v3547 = vpack.c.bf16 %v3460, %v3457
      %v3548 = vpack.c.bf16 %v3538, %v3535
      %v3550 = vlaneseq
      %v3551 = vshrl.u32 %v3550, 7
      %v3552 = vsub.s32 0, %v3551
      %v3553 = vrot.slane %v3543, %v3552
      %vm3555 = vcmask 64512
      %v3557 = vsel %vm3555, %v3546, 0
      %v3560 = vsel %vm3555, %v3547, 0
      %3562 = vmatprep.subr.bf16.mxu0 0
      %3563 = vmatpush1.bf16.xpose.msra.mxu0 0
      %3564 = vmatprep.subr.bf16.mxu0 0
      %3565 = vmatpush1.bf16.xpose.msra.mxu0 0
      %3566 = vmatprep.subr.bf16.mxu0 0
      %3567 = vmatpush1.bf16.xpose.msra.mxu0 0
      %3568 = vmatprep.subr.bf16.mxu0 0
      %3569 = vmatpush1.bf16.xpose.msra.mxu0 0
      %3570 = vmatprep.subr.bf16.mxu0 0
      %3571 = vmatpush1.bf16.xpose.msra.mxu0 0
      %3572 = vmatprep.subr.bf16.mxu0 0
      %3573 = vmatpush1.bf16.xpose.msra.mxu0 0
      %3574 = vmatprep.subr.bf16.mxu0 0
      %3575 = vmatpush1.bf16.xpose.msra.mxu0 0
      %3576 = vmatprep.subr.bf16.mxu0 0
      %3577 = vmatpush1.bf16.xpose.msra.mxu0 %v3560
      %3578 = vmatprep.subr.bf16.mxu0 0
      %3579 = vmatpush2.bf16.xpose.msra.mxu0 0
      %3580 = vmatprep.subr.bf16.mxu0 0
      %3581 = vmatpush2.bf16.xpose.msra.mxu0 0
      %3582 = vmatprep.subr.bf16.mxu0 0
      %3583 = vmatpush2.bf16.xpose.msra.mxu0 0
      %3584 = vmatprep.subr.bf16.mxu0 0
      %3585 = vmatpush2.bf16.xpose.msra.mxu0 0
      %3586 = vmatprep.subr.bf16.mxu0 0
      %3587 = vmatpush2.bf16.xpose.msra.mxu0 0
      %3588 = vmatprep.subr.bf16.mxu0 0
      %3589 = vmatpush2.bf16.xpose.msra.mxu0 0
      %3590 = vmatprep.subr.bf16.mxu0 0
      %3591 = vmatpush2.bf16.xpose.msra.mxu0 0
      %3592 = vmatprep.subr.bf16.mxu0 0
      %3593 = vmatpush2.bf16.xpose.msra.mxu0 0
      %3594 = vmatprep.mubr.bf16.mxu0 0
      %3595 = vmatmul.mubr.bf16.gmra.mxu0 %v3557
      %v3596 = vpop.f32.mrf.mxu0
      %v3597 = vadd.f32 %v3553, %v3596
      %v3598 = vpop.f32.mrf.mxu0
      %v3599 = vpop.f32.mrf.mxu0
      %v3600 = vadd.f32 %v3553, %v3599
      %v3601 = vpop.f32.mrf.mxu0
      %3602 = vdwg.mxu0
      %vm3603 = vcmask 130048
      %v3604 = vsel %vm3603, %v3597, -inf
      %3605 = vmax.xlane.f32.xlu0 %v3604
      %v3606 = vpop.xlane.xlu0 %3605
      %v3607 = vsel %vm3603, %v3600, -inf
      %3608 = vmax.xlane.f32.xlu0 %v3607
      %v3609 = vpop.xlane.xlu0 %3608
      %v3610 = vsub.f32 %v3597, %v3606
      %v3611 = vsub.f32 %v3600, %v3609
      %v3612 = vmul.f32 %v3610, 1.442695
      %v3613 = vpow.pop %v3612
      %v3614 = vmul.f32 %v3611, 1.442695
      %v3615 = vpow.pop %v3614
      %v3616 = vsel %vm3603, %v3613, 0.0
      %3617 = vadd.xlane.f32.xlu0 %v3616
      %v3618 = vpop.xlane.xlu0 %3617
      %v3619 = vsel %vm3603, %v3615, 0.0
      %3620 = vadd.xlane.f32.xlu0 %v3619
      %v3621 = vpop.xlane.xlu0 %3620
      %v3622 = vrcp.pop %v3618
      %v3623 = vrcp.pop %v3621
      %v3624 = vmul.f32 %v3613, %v3622
      %v3625 = vmul.f32 %v3615, %v3623
      %v3626 = vpack.c.bf16 %v3625, %v3624
      %v3628 = vsel %vm3603, %v3626, 0
      %3630 = vmatprep.subr.bf16.mxu0 0
      %3631 = vmatpush1.bf16.msra.mxu0 0
      %3632 = vmatprep.subr.bf16.mxu0 0
      %3633 = vmatpush1.bf16.msra.mxu0 0
      %3634 = vmatprep.subr.bf16.mxu0 0
      %3635 = vmatpush1.bf16.msra.mxu0 0
      %3636 = vmatprep.subr.bf16.mxu0 0
      %3637 = vmatpush1.bf16.msra.mxu0 0
      %3638 = vmatprep.subr.bf16.mxu0 0
      %3639 = vmatpush1.bf16.msra.mxu0 0
      %3640 = vmatprep.subr.bf16.mxu0 0
      %3641 = vmatpush1.bf16.msra.mxu0 0
      %3642 = vmatprep.subr.bf16.mxu0 0
      %3643 = vmatpush1.bf16.msra.mxu0 0
      %3644 = vmatprep.subr.bf16.mxu0 0
      %3645 = vmatpush1.bf16.msra.mxu0 %v3548
      %3646 = vmatprep.subr.bf16.mxu0 0
      %3647 = vmatpush2.bf16.msra.mxu0 0
      %3648 = vmatprep.subr.bf16.mxu0 0
      %3649 = vmatpush2.bf16.msra.mxu0 0
      %3650 = vmatprep.subr.bf16.mxu0 0
      %3651 = vmatpush2.bf16.msra.mxu0 0
      %3652 = vmatprep.subr.bf16.mxu0 0
      %3653 = vmatpush2.bf16.msra.mxu0 0
      %3654 = vmatprep.subr.bf16.mxu0 0
      %3655 = vmatpush2.bf16.msra.mxu0 0
      %3656 = vmatprep.subr.bf16.mxu0 0
      %3657 = vmatpush2.bf16.msra.mxu0 0
      %3658 = vmatprep.subr.bf16.mxu0 0
      %3659 = vmatpush2.bf16.msra.mxu0 0
      %3660 = vmatprep.subr.bf16.mxu0 0
      %3661 = vmatpush2.bf16.msra.mxu0 0
      %3662 = vmatprep.mubr.bf16.mxu0 0
      %3663 = vmatmul.mubr.bf16.gmra.mxu0 %v3628
      %v3664 = vpop.f32.mrf.mxu0
      %v3665 = vadd.f32 0.0, %v3664
      %v3666 = vpop.f32.mrf.mxu0
      %v3667 = vpop.f32.mrf.mxu0
      %v3668 = vadd.f32 0.0, %v3667
      %v3669 = vpop.f32.mrf.mxu0
      %3670 = vdwg.mxu0
      %v3671 = vpack.c.bf16 %v3668, %v3665
      %v3672 = vld [vmem:[%s17] sm:$0xf]
      %3674 = vrot.lane.b32.xlu0 %v3546, 120
      %v3675 = vpop.permute.xlu0 %3674
      %3677 = vrot.lane.b32.xlu0 %v3547, 120
      %v3678 = vpop.permute.xlu0 %3677
      %v3680 = vsel %vm3555, %v3675, 0
      %v3683 = vsel %vm3555, %v3678, 0
      %3685 = vmatprep.subr.bf16.mxu0 0
      %3686 = vmatpush1.bf16.xpose.msra.mxu0 0
      %3687 = vmatprep.subr.bf16.mxu0 0
      %3688 = vmatpush1.bf16.xpose.msra.mxu0 0
      %3689 = vmatprep.subr.bf16.mxu0 0
      %3690 = vmatpush1.bf16.xpose.msra.mxu0 0
      %3691 = vmatprep.subr.bf16.mxu0 0
      %3692 = vmatpush1.bf16.xpose.msra.mxu0 0
      %3693 = vmatprep.subr.bf16.mxu0 0
      %3694 = vmatpush1.bf16.xpose.msra.mxu0 0
      %3695 = vmatprep.subr.bf16.mxu0 0
      %3696 = vmatpush1.bf16.xpose.msra.mxu0 0
      %3697 = vmatprep.subr.bf16.mxu0 0
      %3698 = vmatpush1.bf16.xpose.msra.mxu0 0
      %3699 = vmatprep.subr.bf16.mxu0 0
      %3700 = vmatpush1.bf16.xpose.msra.mxu0 %v3683
      %3701 = vmatprep.subr.bf16.mxu0 0
      %3702 = vmatpush2.bf16.xpose.msra.mxu0 0
      %3703 = vmatprep.subr.bf16.mxu0 0
      %3704 = vmatpush2.bf16.xpose.msra.mxu0 0
      %3705 = vmatprep.subr.bf16.mxu0 0
      %3706 = vmatpush2.bf16.xpose.msra.mxu0 0
      %3707 = vmatprep.subr.bf16.mxu0 0
      %3708 = vmatpush2.bf16.xpose.msra.mxu0 0
      %3709 = vmatprep.subr.bf16.mxu0 0
      %3710 = vmatpush2.bf16.xpose.msra.mxu0 0
      %3711 = vmatprep.subr.bf16.mxu0 0
      %3712 = vmatpush2.bf16.xpose.msra.mxu0 0
      %3713 = vmatprep.subr.bf16.mxu0 0
      %3714 = vmatpush2.bf16.xpose.msra.mxu0 0
      %3715 = vmatprep.subr.bf16.mxu0 0
      %3716 = vmatpush2.bf16.xpose.msra.mxu0 0
      %3717 = vmatprep.mubr.bf16.mxu0 0
      %3718 = vmatmul.mubr.bf16.gmra.mxu0 %v3680
      %v3719 = vpop.f32.mrf.mxu0
      %v3720 = vadd.f32 %v3553, %v3719
      %v3721 = vpop.f32.mrf.mxu0
      %v3722 = vpop.f32.mrf.mxu0
      %v3723 = vadd.f32 %v3553, %v3722
      %v3724 = vpop.f32.mrf.mxu0
      %3725 = vdwg.mxu0
      %v3726 = vsel %vm3603, %v3720, -inf
      %3727 = vmax.xlane.f32.xlu0 %v3726
      %v3728 = vpop.xlane.xlu0 %3727
      %v3729 = vsel %vm3603, %v3723, -inf
      %3730 = vmax.xlane.f32.xlu0 %v3729
      %v3731 = vpop.xlane.xlu0 %3730
      %v3732 = vsub.f32 %v3720, %v3728
      %v3733 = vsub.f32 %v3723, %v3731
      %v3734 = vmul.f32 %v3732, 1.442695
      %v3735 = vpow.pop %v3734
      %v3736 = vmul.f32 %v3733, 1.442695
      %v3737 = vpow.pop %v3736
      %v3738 = vsel %vm3603, %v3735, 0.0
      %3739 = vadd.xlane.f32.xlu0 %v3738
      %v3740 = vpop.xlane.xlu0 %3739
      %v3741 = vsel %vm3603, %v3737, 0.0
      %3742 = vadd.xlane.f32.xlu0 %v3741
      %v3743 = vpop.xlane.xlu0 %3742
      %v3744 = vrcp.pop %v3740
      %v3745 = vrcp.pop %v3743
      %v3746 = vmul.f32 %v3735, %v3744
      %v3747 = vmul.f32 %v3737, %v3745
      %v3748 = vpack.c.bf16 %v3747, %v3746
      %3750 = vrot.lane.b32.xlu0 %v3548, 120
      %v3751 = vpop.permute.xlu0 %3750
      %v3754 = vsel %vm3603, %v3748, 0
      %3756 = vmatprep.subr.bf16.mxu0 0
      %3757 = vmatpush1.bf16.msra.mxu0 0
      %3758 = vmatprep.subr.bf16.mxu0 0
      %3759 = vmatpush1.bf16.msra.mxu0 0
      %3760 = vmatprep.subr.bf16.mxu0 0
      %3761 = vmatpush1.bf16.msra.mxu0 0
      %3762 = vmatprep.subr.bf16.mxu0 0
      %3763 = vmatpush1.bf16.msra.mxu0 0
      %3764 = vmatprep.subr.bf16.mxu0 0
      %3765 = vmatpush1.bf16.msra.mxu0 0
      %3766 = vmatprep.subr.bf16.mxu0 0
      %3767 = vmatpush1.bf16.msra.mxu0 0
      %3768 = vmatprep.subr.bf16.mxu0 0
      %3769 = vmatpush1.bf16.msra.mxu0 0
      %3770 = vmatprep.subr.bf16.mxu0 0
      %3771 = vmatpush1.bf16.msra.mxu0 %v3751
      %3772 = vmatprep.subr.bf16.mxu0 0
      %3773 = vmatpush2.bf16.msra.mxu0 0
      %3774 = vmatprep.subr.bf16.mxu0 0
      %3775 = vmatpush2.bf16.msra.mxu0 0
      %3776 = vmatprep.subr.bf16.mxu0 0
      %3777 = vmatpush2.bf16.msra.mxu0 0
      %3778 = vmatprep.subr.bf16.mxu0 0
      %3779 = vmatpush2.bf16.msra.mxu0 0
      %3780 = vmatprep.subr.bf16.mxu0 0
      %3781 = vmatpush2.bf16.msra.mxu0 0
      %3782 = vmatprep.subr.bf16.mxu0 0
      %3783 = vmatpush2.bf16.msra.mxu0 0
      %3784 = vmatprep.subr.bf16.mxu0 0
      %3785 = vmatpush2.bf16.msra.mxu0 0
      %3786 = vmatprep.subr.bf16.mxu0 0
      %3787 = vmatpush2.bf16.msra.mxu0 0
      %3788 = vmatprep.mubr.bf16.mxu0 0
      %3789 = vmatmul.mubr.bf16.gmra.mxu0 %v3754
      %v3790 = vpop.f32.mrf.mxu0
      %v3791 = vadd.f32 0.0, %v3790
      %v3792 = vpop.f32.mrf.mxu0
      %v3793 = vpop.f32.mrf.mxu0
      %v3794 = vadd.f32 0.0, %v3793
      %v3795 = vpop.f32.mrf.mxu0
      %3796 = vdwg.mxu0
      %v3797 = vpack.c.bf16 %v3794, %v3791
      %v3798 = vld [vmem:[%s17 + $0x4] sm:$0xf]
      %v3800 = vsel %vm3555, %v3797, 0
      %vm3802 = vcmask 1043456
      %v3804 = vsel %vm3802, %v3798, 0
      %3806 = vmatprep.subr.bf16.mxu0 0
      %3807 = vmatpush1.bf16.msra.mxu0 0
      %3808 = vmatprep.subr.bf16.mxu0 0
      %3809 = vmatpush1.bf16.msra.mxu0 0
      %3810 = vmatprep.subr.bf16.mxu0 0
      %3811 = vmatpush1.bf16.msra.mxu0 0
      %3812 = vmatprep.subr.bf16.mxu0 0
      %3813 = vmatpush1.bf16.msra.mxu0 0
      %3814 = vmatprep.subr.bf16.mxu0 0
      %3815 = vmatpush1.bf16.msra.mxu0 0
      %3816 = vmatprep.subr.bf16.mxu0 0
      %3817 = vmatpush1.bf16.msra.mxu0 0
      %3818 = vmatprep.subr.bf16.mxu0 0
      %3819 = vmatpush1.bf16.msra.mxu0 0
      %3820 = vmatprep.subr.bf16.mxu0 0
      %3821 = vmatpush1.bf16.msra.mxu0 %v3804
      %3822 = vmatprep.subr.bf16.mxu0 0
      %3823 = vmatpush2.bf16.msra.mxu0 0
      %3824 = vmatprep.subr.bf16.mxu0 0
      %3825 = vmatpush2.bf16.msra.mxu0 0
      %3826 = vmatprep.subr.bf16.mxu0 0
      %3827 = vmatpush2.bf16.msra.mxu0 0
      %3828 = vmatprep.subr.bf16.mxu0 0
      %3829 = vmatpush2.bf16.msra.mxu0 0
      %3830 = vmatprep.subr.bf16.mxu0 0
      %3831 = vmatpush2.bf16.msra.mxu0 0
      %3832 = vmatprep.subr.bf16.mxu0 0
      %3833 = vmatpush2.bf16.msra.mxu0 0
      %3834 = vmatprep.subr.bf16.mxu0 0
      %3835 = vmatpush2.bf16.msra.mxu0 0
      %3836 = vmatprep.subr.bf16.mxu0 0
      %3837 = vmatpush2.bf16.msra.mxu0 0
      %3838 = vmatprep.mubr.bf16.mxu0 0
      %3839 = vmatmul.mubr.bf16.gmra.mxu0 %v3800
      %v3840 = vpop.f32.mrf.mxu0
      %v3841 = vadd.f32 0.0, %v3840
      %v3842 = vpop.f32.mrf.mxu0
      %v3843 = vpop.f32.mrf.mxu0
      %v3844 = vadd.f32 0.0, %v3843
      %v3845 = vpop.f32.mrf.mxu0
      %3846 = vdwg.mxu0
      %v3848 = vsel %vm3555, %v3671, 0
      %v3851 = vsel %vm3802, %v3672, 0
      %3853 = vmatprep.subr.bf16.mxu0 0
      %3854 = vmatpush1.bf16.msra.mxu0 0
      %3855 = vmatprep.subr.bf16.mxu0 0
      %3856 = vmatpush1.bf16.msra.mxu0 0
      %3857 = vmatprep.subr.bf16.mxu0 0
      %3858 = vmatpush1.bf16.msra.mxu0 0
      %3859 = vmatprep.subr.bf16.mxu0 0
      %3860 = vmatpush1.bf16.msra.mxu0 0
      %3861 = vmatprep.subr.bf16.mxu0 0
      %3862 = vmatpush1.bf16.msra.mxu0 0
      %3863 = vmatprep.subr.bf16.mxu0 0
      %3864 = vmatpush1.bf16.msra.mxu0 0
      %3865 = vmatprep.subr.bf16.mxu0 0
      %3866 = vmatpush1.bf16.msra.mxu0 0
      %3867 = vmatprep.subr.bf16.mxu0 0
      %3868 = vmatpush1.bf16.msra.mxu0 %v3851
      %3869 = vmatprep.subr.bf16.mxu0 0
      %3870 = vmatpush2.bf16.msra.mxu0 0
      %3871 = vmatprep.subr.bf16.mxu0 0
      %3872 = vmatpush2.bf16.msra.mxu0 0
      %3873 = vmatprep.subr.bf16.mxu0 0
      %3874 = vmatpush2.bf16.msra.mxu0 0
      %3875 = vmatprep.subr.bf16.mxu0 0
      %3876 = vmatpush2.bf16.msra.mxu0 0
      %3877 = vmatprep.subr.bf16.mxu0 0
      %3878 = vmatpush2.bf16.msra.mxu0 0
      %3879 = vmatprep.subr.bf16.mxu0 0
      %3880 = vmatpush2.bf16.msra.mxu0 0
      %3881 = vmatprep.subr.bf16.mxu0 0
      %3882 = vmatpush2.bf16.msra.mxu0 0
      %3883 = vmatprep.subr.bf16.mxu0 0
      %3884 = vmatpush2.bf16.msra.mxu0 0
      %3885 = vmatprep.mubr.bf16.mxu0 0
      %3886 = vmatmul.mubr.bf16.gmra.mxu0 %v3848
      %v3887 = vpop.f32.mrf.mxu0
      %v3888 = vadd.f32 %v3841, %v3887
      %v3889 = vpop.f32.mrf.mxu0
      %v3890 = vpop.f32.mrf.mxu0
      %v3891 = vadd.f32 %v3844, %v3890
      %v3892 = vpop.f32.mrf.mxu0
      %3893 = vdwg.mxu0
      %3894 = vrot.lane.b32.xlu0 %v3546, 112
      %v3895 = vpop.permute.xlu0 %3894
      %3896 = vrot.lane.b32.xlu0 %v3547, 112
      %v3897 = vpop.permute.xlu0 %3896
      %v3899 = vsel %vm3555, %v3895, 0
      %v3902 = vsel %vm3555, %v3897, 0
      %3904 = vmatprep.subr.bf16.mxu0 0
      %3905 = vmatpush1.bf16.xpose.msra.mxu0 0
      %3906 = vmatprep.subr.bf16.mxu0 0
      %3907 = vmatpush1.bf16.xpose.msra.mxu0 0
      %3908 = vmatprep.subr.bf16.mxu0 0
      %3909 = vmatpush1.bf16.xpose.msra.mxu0 0
      %3910 = vmatprep.subr.bf16.mxu0 0
      %3911 = vmatpush1.bf16.xpose.msra.mxu0 0
      %3912 = vmatprep.subr.bf16.mxu0 0
      %3913 = vmatpush1.bf16.xpose.msra.mxu0 0
      %3914 = vmatprep.subr.bf16.mxu0 0
      %3915 = vmatpush1.bf16.xpose.msra.mxu0 0
      %3916 = vmatprep.subr.bf16.mxu0 0
      %3917 = vmatpush1.bf16.xpose.msra.mxu0 0
      %3918 = vmatprep.subr.bf16.mxu0 0
      %3919 = vmatpush1.bf16.xpose.msra.mxu0 %v3902
      %3920 = vmatprep.subr.bf16.mxu0 0
      %3921 = vmatpush2.bf16.xpose.msra.mxu0 0
      %3922 = vmatprep.subr.bf16.mxu0 0
      %3923 = vmatpush2.bf16.xpose.msra.mxu0 0
      %3924 = vmatprep.subr.bf16.mxu0 0
      %3925 = vmatpush2.bf16.xpose.msra.mxu0 0
      %3926 = vmatprep.subr.bf16.mxu0 0
      %3927 = vmatpush2.bf16.xpose.msra.mxu0 0
      %3928 = vmatprep.subr.bf16.mxu0 0
      %3929 = vmatpush2.bf16.xpose.msra.mxu0 0
      %3930 = vmatprep.subr.bf16.mxu0 0
      %3931 = vmatpush2.bf16.xpose.msra.mxu0 0
      %3932 = vmatprep.subr.bf16.mxu0 0
      %3933 = vmatpush2.bf16.xpose.msra.mxu0 0
      %3934 = vmatprep.subr.bf16.mxu0 0
      %3935 = vmatpush2.bf16.xpose.msra.mxu0 0
      %3936 = vmatprep.mubr.bf16.mxu0 0
      %3937 = vmatmul.mubr.bf16.gmra.mxu0 %v3899
      %v3938 = vpop.f32.mrf.mxu0
      %v3939 = vadd.f32 %v3553, %v3938
      %v3940 = vpop.f32.mrf.mxu0
      %v3941 = vpop.f32.mrf.mxu0
      %v3942 = vadd.f32 %v3553, %v3941
      %v3943 = vpop.f32.mrf.mxu0
      %3944 = vdwg.mxu0
      %v3945 = vsel %vm3603, %v3939, -inf
      %3946 = vmax.xlane.f32.xlu0 %v3945
      %v3947 = vpop.xlane.xlu0 %3946
      %v3948 = vsel %vm3603, %v3942, -inf
      %3949 = vmax.xlane.f32.xlu0 %v3948
      %v3950 = vpop.xlane.xlu0 %3949
      %v3951 = vsub.f32 %v3939, %v3947
      %v3952 = vsub.f32 %v3942, %v3950
      %v3953 = vmul.f32 %v3951, 1.442695
      %v3954 = vpow.pop %v3953
      %v3955 = vmul.f32 %v3952, 1.442695
      %v3956 = vpow.pop %v3955
      %v3957 = vsel %vm3603, %v3954, 0.0
      %3958 = vadd.xlane.f32.xlu0 %v3957
      %v3959 = vpop.xlane.xlu0 %3958
      %v3960 = vsel %vm3603, %v3956, 0.0
      %3961 = vadd.xlane.f32.xlu0 %v3960
      %v3962 = vpop.xlane.xlu0 %3961
      %v3963 = vrcp.pop %v3959
      %v3964 = vrcp.pop %v3962
      %v3965 = vmul.f32 %v3954, %v3963
      %v3966 = vmul.f32 %v3956, %v3964
      %v3967 = vpack.c.bf16 %v3966, %v3965
      %3968 = vrot.lane.b32.xlu0 %v3548, 112
      %v3969 = vpop.permute.xlu0 %3968
      %v3972 = vsel %vm3603, %v3967, 0
      %3974 = vmatprep.subr.bf16.mxu0 0
      %3975 = vmatpush1.bf16.msra.mxu0 0
      %3976 = vmatprep.subr.bf16.mxu0 0
      %3977 = vmatpush1.bf16.msra.mxu0 0
      %3978 = vmatprep.subr.bf16.mxu0 0
      %3979 = vmatpush1.bf16.msra.mxu0 0
      %3980 = vmatprep.subr.bf16.mxu0 0
      %3981 = vmatpush1.bf16.msra.mxu0 0
      %3982 = vmatprep.subr.bf16.mxu0 0
      %3983 = vmatpush1.bf16.msra.mxu0 0
      %3984 = vmatprep.subr.bf16.mxu0 0
      %3985 = vmatpush1.bf16.msra.mxu0 0
      %3986 = vmatprep.subr.bf16.mxu0 0
      %3987 = vmatpush1.bf16.msra.mxu0 0
      %3988 = vmatprep.subr.bf16.mxu0 0
      %3989 = vmatpush1.bf16.msra.mxu0 %v3969
      %3990 = vmatprep.subr.bf16.mxu0 0
      %3991 = vmatpush2.bf16.msra.mxu0 0
      %3992 = vmatprep.subr.bf16.mxu0 0
      %3993 = vmatpush2.bf16.msra.mxu0 0
      %3994 = vmatprep.subr.bf16.mxu0 0
      %3995 = vmatpush2.bf16.msra.mxu0 0
      %3996 = vmatprep.subr.bf16.mxu0 0
      %3997 = vmatpush2.bf16.msra.mxu0 0
      %3998 = vmatprep.subr.bf16.mxu0 0
      %3999 = vmatpush2.bf16.msra.mxu0 0
      %4000 = vmatprep.subr.bf16.mxu0 0
      %4001 = vmatpush2.bf16.msra.mxu0 0
      %4002 = vmatprep.subr.bf16.mxu0 0
      %4003 = vmatpush2.bf16.msra.mxu0 0
      %4004 = vmatprep.subr.bf16.mxu0 0
      %4005 = vmatpush2.bf16.msra.mxu0 0
      %4006 = vmatprep.mubr.bf16.mxu0 0
      %4007 = vmatmul.mubr.bf16.gmra.mxu0 %v3972
      %v4008 = vpop.f32.mrf.mxu0
      %v4009 = vadd.f32 0.0, %v4008
      %v4010 = vpop.f32.mrf.mxu0
      %v4011 = vpop.f32.mrf.mxu0
      %v4012 = vadd.f32 0.0, %v4011
      %v4013 = vpop.f32.mrf.mxu0
      %4014 = vdwg.mxu0
      %v4015 = vpack.c.bf16 %v4012, %v4009
      %v4016 = vld [vmem:[%s17 + $0x8] sm:$0xf]
      %v4018 = vsel %vm3555, %v4015, 0
      %v4021 = vsel %vm3802, %v4016, 0
      %4023 = vmatprep.subr.bf16.mxu0 0
      %4024 = vmatpush1.bf16.msra.mxu0 0
      %4025 = vmatprep.subr.bf16.mxu0 0
      %4026 = vmatpush1.bf16.msra.mxu0 0
      %4027 = vmatprep.subr.bf16.mxu0 0
      %4028 = vmatpush1.bf16.msra.mxu0 0
      %4029 = vmatprep.subr.bf16.mxu0 0
      %4030 = vmatpush1.bf16.msra.mxu0 0
      %4031 = vmatprep.subr.bf16.mxu0 0
      %4032 = vmatpush1.bf16.msra.mxu0 0
      %4033 = vmatprep.subr.bf16.mxu0 0
      %4034 = vmatpush1.bf16.msra.mxu0 0
      %4035 = vmatprep.subr.bf16.mxu0 0
      %4036 = vmatpush1.bf16.msra.mxu0 0
      %4037 = vmatprep.subr.bf16.mxu0 0
      %4038 = vmatpush1.bf16.msra.mxu0 %v4021
      %4039 = vmatprep.subr.bf16.mxu0 0
      %4040 = vmatpush2.bf16.msra.mxu0 0
      %4041 = vmatprep.subr.bf16.mxu0 0
      %4042 = vmatpush2.bf16.msra.mxu0 0
      %4043 = vmatprep.subr.bf16.mxu0 0
      %4044 = vmatpush2.bf16.msra.mxu0 0
      %4045 = vmatprep.subr.bf16.mxu0 0
      %4046 = vmatpush2.bf16.msra.mxu0 0
      %4047 = vmatprep.subr.bf16.mxu0 0
      %4048 = vmatpush2.bf16.msra.mxu0 0
      %4049 = vmatprep.subr.bf16.mxu0 0
      %4050 = vmatpush2.bf16.msra.mxu0 0
      %4051 = vmatprep.subr.bf16.mxu0 0
      %4052 = vmatpush2.bf16.msra.mxu0 0
      %4053 = vmatprep.subr.bf16.mxu0 0
      %4054 = vmatpush2.bf16.msra.mxu0 0
      %4055 = vmatprep.mubr.bf16.mxu0 0
      %4056 = vmatmul.mubr.bf16.gmra.mxu0 %v4018
      %v4057 = vpop.f32.mrf.mxu0
      %v4058 = vadd.f32 0.0, %v4057
      %v4059 = vpop.f32.mrf.mxu0
      %v4060 = vpop.f32.mrf.mxu0
      %v4061 = vadd.f32 0.0, %v4060
      %v4062 = vpop.f32.mrf.mxu0
      %4063 = vdwg.mxu0
      %v4064 = vadd.f32 %v3888, %v4058
      %v4065 = vadd.f32 %v3891, %v4061
      %4066 = vrot.lane.b32.xlu0 %v3546, 104
      %v4067 = vpop.permute.xlu0 %4066
      %4068 = vrot.lane.b32.xlu0 %v3547, 104
      %v4069 = vpop.permute.xlu0 %4068
      %v4071 = vsel %vm3555, %v4067, 0
      %v4074 = vsel %vm3555, %v4069, 0
      %4076 = vmatprep.subr.bf16.mxu0 0
      %4077 = vmatpush1.bf16.xpose.msra.mxu0 0
      %4078 = vmatprep.subr.bf16.mxu0 0
      %4079 = vmatpush1.bf16.xpose.msra.mxu0 0
      %4080 = vmatprep.subr.bf16.mxu0 0
      %4081 = vmatpush1.bf16.xpose.msra.mxu0 0
      %4082 = vmatprep.subr.bf16.mxu0 0
      %4083 = vmatpush1.bf16.xpose.msra.mxu0 0
      %4084 = vmatprep.subr.bf16.mxu0 0
      %4085 = vmatpush1.bf16.xpose.msra.mxu0 0
      %4086 = vmatprep.subr.bf16.mxu0 0
      %4087 = vmatpush1.bf16.xpose.msra.mxu0 0
      %4088 = vmatprep.subr.bf16.mxu0 0
      %4089 = vmatpush1.bf16.xpose.msra.mxu0 0
      %4090 = vmatprep.subr.bf16.mxu0 0
      %4091 = vmatpush1.bf16.xpose.msra.mxu0 %v4074
      %4092 = vmatprep.subr.bf16.mxu0 0
      %4093 = vmatpush2.bf16.xpose.msra.mxu0 0
      %4094 = vmatprep.subr.bf16.mxu0 0
      %4095 = vmatpush2.bf16.xpose.msra.mxu0 0
      %4096 = vmatprep.subr.bf16.mxu0 0
      %4097 = vmatpush2.bf16.xpose.msra.mxu0 0
      %4098 = vmatprep.subr.bf16.mxu0 0
      %4099 = vmatpush2.bf16.xpose.msra.mxu0 0
      %4100 = vmatprep.subr.bf16.mxu0 0
      %4101 = vmatpush2.bf16.xpose.msra.mxu0 0
      %4102 = vmatprep.subr.bf16.mxu0 0
      %4103 = vmatpush2.bf16.xpose.msra.mxu0 0
      %4104 = vmatprep.subr.bf16.mxu0 0
      %4105 = vmatpush2.bf16.xpose.msra.mxu0 0
      %4106 = vmatprep.subr.bf16.mxu0 0
      %4107 = vmatpush2.bf16.xpose.msra.mxu0 0
      %4108 = vmatprep.mubr.bf16.mxu0 0
      %4109 = vmatmul.mubr.bf16.gmra.mxu0 %v4071
      %v4110 = vpop.f32.mrf.mxu0
      %v4111 = vadd.f32 %v3553, %v4110
      %v4112 = vpop.f32.mrf.mxu0
      %v4113 = vpop.f32.mrf.mxu0
      %v4114 = vadd.f32 %v3553, %v4113
      %v4115 = vpop.f32.mrf.mxu0
      %4116 = vdwg.mxu0
      %v4117 = vsel %vm3603, %v4111, -inf
      %4118 = vmax.xlane.f32.xlu0 %v4117
      %v4119 = vpop.xlane.xlu0 %4118
      %v4120 = vsel %vm3603, %v4114, -inf
      %4121 = vmax.xlane.f32.xlu0 %v4120
      %v4122 = vpop.xlane.xlu0 %4121
      %v4123 = vsub.f32 %v4111, %v4119
      %v4124 = vsub.f32 %v4114, %v4122
      %v4125 = vmul.f32 %v4123, 1.442695
      %v4126 = vpow.pop %v4125
      %v4127 = vmul.f32 %v4124, 1.442695
      %v4128 = vpow.pop %v4127
      %v4129 = vsel %vm3603, %v4126, 0.0
      %4130 = vadd.xlane.f32.xlu0 %v4129
      %v4131 = vpop.xlane.xlu0 %4130
      %v4132 = vsel %vm3603, %v4128, 0.0
      %4133 = vadd.xlane.f32.xlu0 %v4132
      %v4134 = vpop.xlane.xlu0 %4133
      %v4135 = vrcp.pop %v4131
      %v4136 = vrcp.pop %v4134
      %v4137 = vmul.f32 %v4126, %v4135
      %v4138 = vmul.f32 %v4128, %v4136
      %v4139 = vpack.c.bf16 %v4138, %v4137
      %4140 = vrot.lane.b32.xlu0 %v3548, 104
      %v4141 = vpop.permute.xlu0 %4140
      %v4144 = vsel %vm3603, %v4139, 0
      %4146 = vmatprep.subr.bf16.mxu0 0
      %4147 = vmatpush1.bf16.msra.mxu0 0
      %4148 = vmatprep.subr.bf16.mxu0 0
      %4149 = vmatpush1.bf16.msra.mxu0 0
      %4150 = vmatprep.subr.bf16.mxu0 0
      %4151 = vmatpush1.bf16.msra.mxu0 0
      %4152 = vmatprep.subr.bf16.mxu0 0
      %4153 = vmatpush1.bf16.msra.mxu0 0
      %4154 = vmatprep.subr.bf16.mxu0 0
      %4155 = vmatpush1.bf16.msra.mxu0 0
      %4156 = vmatprep.subr.bf16.mxu0 0
      %4157 = vmatpush1.bf16.msra.mxu0 0
      %4158 = vmatprep.subr.bf16.mxu0 0
      %4159 = vmatpush1.bf16.msra.mxu0 0
      %4160 = vmatprep.subr.bf16.mxu0 0
      %4161 = vmatpush1.bf16.msra.mxu0 %v4141
      %4162 = vmatprep.subr.bf16.mxu0 0
      %4163 = vmatpush2.bf16.msra.mxu0 0
      %4164 = vmatprep.subr.bf16.mxu0 0
      %4165 = vmatpush2.bf16.msra.mxu0 0
      %4166 = vmatprep.subr.bf16.mxu0 0
      %4167 = vmatpush2.bf16.msra.mxu0 0
      %4168 = vmatprep.subr.bf16.mxu0 0
      %4169 = vmatpush2.bf16.msra.mxu0 0
      %4170 = vmatprep.subr.bf16.mxu0 0
      %4171 = vmatpush2.bf16.msra.mxu0 0
      %4172 = vmatprep.subr.bf16.mxu0 0
      %4173 = vmatpush2.bf16.msra.mxu0 0
      %4174 = vmatprep.subr.bf16.mxu0 0
      %4175 = vmatpush2.bf16.msra.mxu0 0
      %4176 = vmatprep.subr.bf16.mxu0 0
      %4177 = vmatpush2.bf16.msra.mxu0 0
      %4178 = vmatprep.mubr.bf16.mxu0 0
      %4179 = vmatmul.mubr.bf16.gmra.mxu0 %v4144
      %v4180 = vpop.f32.mrf.mxu0
      %v4181 = vadd.f32 0.0, %v4180
      %v4182 = vpop.f32.mrf.mxu0
      %v4183 = vpop.f32.mrf.mxu0
      %v4184 = vadd.f32 0.0, %v4183
      %v4185 = vpop.f32.mrf.mxu0
      %4186 = vdwg.mxu0
      %v4187 = vpack.c.bf16 %v4184, %v4181
      %v4188 = vld [vmem:[%s17 + $0xc] sm:$0xf]
      %v4190 = vsel %vm3555, %v4187, 0
      %v4193 = vsel %vm3802, %v4188, 0
      %4195 = vmatprep.subr.bf16.mxu0 0
      %4196 = vmatpush1.bf16.msra.mxu0 0
      %4197 = vmatprep.subr.bf16.mxu0 0
      %4198 = vmatpush1.bf16.msra.mxu0 0
      %4199 = vmatprep.subr.bf16.mxu0 0
      %4200 = vmatpush1.bf16.msra.mxu0 0
      %4201 = vmatprep.subr.bf16.mxu0 0
      %4202 = vmatpush1.bf16.msra.mxu0 0
      %4203 = vmatprep.subr.bf16.mxu0 0
      %4204 = vmatpush1.bf16.msra.mxu0 0
      %4205 = vmatprep.subr.bf16.mxu0 0
      %4206 = vmatpush1.bf16.msra.mxu0 0
      %4207 = vmatprep.subr.bf16.mxu0 0
      %4208 = vmatpush1.bf16.msra.mxu0 0
      %4209 = vmatprep.subr.bf16.mxu0 0
      %4210 = vmatpush1.bf16.msra.mxu0 %v4193
      %4211 = vmatprep.subr.bf16.mxu0 0
      %4212 = vmatpush2.bf16.msra.mxu0 0
      %4213 = vmatprep.subr.bf16.mxu0 0
      %4214 = vmatpush2.bf16.msra.mxu0 0
      %4215 = vmatprep.subr.bf16.mxu0 0
      %4216 = vmatpush2.bf16.msra.mxu0 0
      %4217 = vmatprep.subr.bf16.mxu0 0
      %4218 = vmatpush2.bf16.msra.mxu0 0
      %4219 = vmatprep.subr.bf16.mxu0 0
      %4220 = vmatpush2.bf16.msra.mxu0 0
      %4221 = vmatprep.subr.bf16.mxu0 0
      %4222 = vmatpush2.bf16.msra.mxu0 0
      %4223 = vmatprep.subr.bf16.mxu0 0
      %4224 = vmatpush2.bf16.msra.mxu0 0
      %4225 = vmatprep.subr.bf16.mxu0 0
      %4226 = vmatpush2.bf16.msra.mxu0 0
      %4227 = vmatprep.mubr.bf16.mxu0 0
      %4228 = vmatmul.mubr.bf16.gmra.mxu0 %v4190
      %v4229 = vpop.f32.mrf.mxu0
      %v4230 = vadd.f32 0.0, %v4229
      %v4231 = vpop.f32.mrf.mxu0
      %v4232 = vpop.f32.mrf.mxu0
      %v4233 = vadd.f32 0.0, %v4232
      %v4234 = vpop.f32.mrf.mxu0
      %4235 = vdwg.mxu0
      %v4236 = vadd.f32 %v4064, %v4230
      %v4237 = vadd.f32 %v4065, %v4233
      %4238 = vrot.lane.b32.xlu0 %v3546, 96
      %v4239 = vpop.permute.xlu0 %4238
      %4240 = vrot.lane.b32.xlu0 %v3547, 96
      %v4241 = vpop.permute.xlu0 %4240
      %v4243 = vsel %vm3555, %v4239, 0
      %v4246 = vsel %vm3555, %v4241, 0
      %4248 = vmatprep.subr.bf16.mxu0 0
      %4249 = vmatpush1.bf16.xpose.msra.mxu0 0
      %4250 = vmatprep.subr.bf16.mxu0 0
      %4251 = vmatpush1.bf16.xpose.msra.mxu0 0
      %4252 = vmatprep.subr.bf16.mxu0 0
      %4253 = vmatpush1.bf16.xpose.msra.mxu0 0
      %4254 = vmatprep.subr.bf16.mxu0 0
      %4255 = vmatpush1.bf16.xpose.msra.mxu0 0
      %4256 = vmatprep.subr.bf16.mxu0 0
      %4257 = vmatpush1.bf16.xpose.msra.mxu0 0
      %4258 = vmatprep.subr.bf16.mxu0 0
      %4259 = vmatpush1.bf16.xpose.msra.mxu0 0
      %4260 = vmatprep.subr.bf16.mxu0 0
      %4261 = vmatpush1.bf16.xpose.msra.mxu0 0
      %4262 = vmatprep.subr.bf16.mxu0 0
      %4263 = vmatpush1.bf16.xpose.msra.mxu0 %v4246
      %4264 = vmatprep.subr.bf16.mxu0 0
      %4265 = vmatpush2.bf16.xpose.msra.mxu0 0
      %4266 = vmatprep.subr.bf16.mxu0 0
      %4267 = vmatpush2.bf16.xpose.msra.mxu0 0
      %4268 = vmatprep.subr.bf16.mxu0 0
      %4269 = vmatpush2.bf16.xpose.msra.mxu0 0
      %4270 = vmatprep.subr.bf16.mxu0 0
      %4271 = vmatpush2.bf16.xpose.msra.mxu0 0
      %4272 = vmatprep.subr.bf16.mxu0 0
      %4273 = vmatpush2.bf16.xpose.msra.mxu0 0
      %4274 = vmatprep.subr.bf16.mxu0 0
      %4275 = vmatpush2.bf16.xpose.msra.mxu0 0
      %4276 = vmatprep.subr.bf16.mxu0 0
      %4277 = vmatpush2.bf16.xpose.msra.mxu0 0
      %4278 = vmatprep.subr.bf16.mxu0 0
      %4279 = vmatpush2.bf16.xpose.msra.mxu0 0
      %4280 = vmatprep.mubr.bf16.mxu0 0
      %4281 = vmatmul.mubr.bf16.gmra.mxu0 %v4243
      %v4282 = vpop.f32.mrf.mxu0
      %v4283 = vadd.f32 %v3553, %v4282
      %v4284 = vpop.f32.mrf.mxu0
      %v4285 = vpop.f32.mrf.mxu0
      %v4286 = vadd.f32 %v3553, %v4285
      %v4287 = vpop.f32.mrf.mxu0
      %4288 = vdwg.mxu0
      %v4289 = vsel %vm3603, %v4283, -inf
      %4290 = vmax.xlane.f32.xlu0 %v4289
      %v4291 = vpop.xlane.xlu0 %4290
      %v4292 = vsel %vm3603, %v4286, -inf
      %4293 = vmax.xlane.f32.xlu0 %v4292
      %v4294 = vpop.xlane.xlu0 %4293
      %v4295 = vsub.f32 %v4283, %v4291
      %v4296 = vsub.f32 %v4286, %v4294
      %v4297 = vmul.f32 %v4295, 1.442695
      %v4298 = vpow.pop %v4297
      %v4299 = vmul.f32 %v4296, 1.442695
      %v4300 = vpow.pop %v4299
      %v4301 = vsel %vm3603, %v4298, 0.0
      %4302 = vadd.xlane.f32.xlu0 %v4301
      %v4303 = vpop.xlane.xlu0 %4302
      %v4304 = vsel %vm3603, %v4300, 0.0
      %4305 = vadd.xlane.f32.xlu0 %v4304
      %v4306 = vpop.xlane.xlu0 %4305
      %v4307 = vrcp.pop %v4303
      %v4308 = vrcp.pop %v4306
      %v4309 = vmul.f32 %v4298, %v4307
      %v4310 = vmul.f32 %v4300, %v4308
      %v4311 = vpack.c.bf16 %v4310, %v4309
      %4312 = vrot.lane.b32.xlu0 %v3548, 96
      %v4313 = vpop.permute.xlu0 %4312
      %v4316 = vsel %vm3603, %v4311, 0
      %4318 = vmatprep.subr.bf16.mxu0 0
      %4319 = vmatpush1.bf16.msra.mxu0 0
      %4320 = vmatprep.subr.bf16.mxu0 0
      %4321 = vmatpush1.bf16.msra.mxu0 0
      %4322 = vmatprep.subr.bf16.mxu0 0
      %4323 = vmatpush1.bf16.msra.mxu0 0
      %4324 = vmatprep.subr.bf16.mxu0 0
      %4325 = vmatpush1.bf16.msra.mxu0 0
      %4326 = vmatprep.subr.bf16.mxu0 0
      %4327 = vmatpush1.bf16.msra.mxu0 0
      %4328 = vmatprep.subr.bf16.mxu0 0
      %4329 = vmatpush1.bf16.msra.mxu0 0
      %4330 = vmatprep.subr.bf16.mxu0 0
      %4331 = vmatpush1.bf16.msra.mxu0 0
      %4332 = vmatprep.subr.bf16.mxu0 0
      %4333 = vmatpush1.bf16.msra.mxu0 %v4313
      %4334 = vmatprep.subr.bf16.mxu0 0
      %4335 = vmatpush2.bf16.msra.mxu0 0
      %4336 = vmatprep.subr.bf16.mxu0 0
      %4337 = vmatpush2.bf16.msra.mxu0 0
      %4338 = vmatprep.subr.bf16.mxu0 0
      %4339 = vmatpush2.bf16.msra.mxu0 0
      %4340 = vmatprep.subr.bf16.mxu0 0
      %4341 = vmatpush2.bf16.msra.mxu0 0
      %4342 = vmatprep.subr.bf16.mxu0 0
      %4343 = vmatpush2.bf16.msra.mxu0 0
      %4344 = vmatprep.subr.bf16.mxu0 0
      %4345 = vmatpush2.bf16.msra.mxu0 0
      %4346 = vmatprep.subr.bf16.mxu0 0
      %4347 = vmatpush2.bf16.msra.mxu0 0
      %4348 = vmatprep.subr.bf16.mxu0 0
      %4349 = vmatpush2.bf16.msra.mxu0 0
      %4350 = vmatprep.mubr.bf16.mxu0 0
      %4351 = vmatmul.mubr.bf16.gmra.mxu0 %v4316
      %v4352 = vpop.f32.mrf.mxu0
      %v4353 = vadd.f32 0.0, %v4352
      %v4354 = vpop.f32.mrf.mxu0
      %v4355 = vpop.f32.mrf.mxu0
      %v4356 = vadd.f32 0.0, %v4355
      %v4357 = vpop.f32.mrf.mxu0
      %4358 = vdwg.mxu0
      %v4359 = vpack.c.bf16 %v4356, %v4353
      %v4360 = vld [vmem:[%s17 + $0x10] sm:$0xf]
      %v4362 = vsel %vm3555, %v4359, 0
      %v4365 = vsel %vm3802, %v4360, 0
      %4367 = vmatprep.subr.bf16.mxu0 0
      %4368 = vmatpush1.bf16.msra.mxu0 0
      %4369 = vmatprep.subr.bf16.mxu0 0
      %4370 = vmatpush1.bf16.msra.mxu0 0
      %4371 = vmatprep.subr.bf16.mxu0 0
      %4372 = vmatpush1.bf16.msra.mxu0 0
      %4373 = vmatprep.subr.bf16.mxu0 0
      %4374 = vmatpush1.bf16.msra.mxu0 0
      %4375 = vmatprep.subr.bf16.mxu0 0
      %4376 = vmatpush1.bf16.msra.mxu0 0
      %4377 = vmatprep.subr.bf16.mxu0 0
      %4378 = vmatpush1.bf16.msra.mxu0 0
      %4379 = vmatprep.subr.bf16.mxu0 0
      %4380 = vmatpush1.bf16.msra.mxu0 0
      %4381 = vmatprep.subr.bf16.mxu0 0
      %4382 = vmatpush1.bf16.msra.mxu0 %v4365
      %4383 = vmatprep.subr.bf16.mxu0 0
      %4384 = vmatpush2.bf16.msra.mxu0 0
      %4385 = vmatprep.subr.bf16.mxu0 0
      %4386 = vmatpush2.bf16.msra.mxu0 0
      %4387 = vmatprep.subr.bf16.mxu0 0
      %4388 = vmatpush2.bf16.msra.mxu0 0
      %4389 = vmatprep.subr.bf16.mxu0 0
      %4390 = vmatpush2.bf16.msra.mxu0 0
      %4391 = vmatprep.subr.bf16.mxu0 0
      %4392 = vmatpush2.bf16.msra.mxu0 0
      %4393 = vmatprep.subr.bf16.mxu0 0
      %4394 = vmatpush2.bf16.msra.mxu0 0
      %4395 = vmatprep.subr.bf16.mxu0 0
      %4396 = vmatpush2.bf16.msra.mxu0 0
      %4397 = vmatprep.subr.bf16.mxu0 0
      %4398 = vmatpush2.bf16.msra.mxu0 0
      %4399 = vmatprep.mubr.bf16.mxu0 0
      %4400 = vmatmul.mubr.bf16.gmra.mxu0 %v4362
      %v4401 = vpop.f32.mrf.mxu0
      %v4402 = vadd.f32 0.0, %v4401
      %v4403 = vpop.f32.mrf.mxu0
      %v4404 = vpop.f32.mrf.mxu0
      %v4405 = vadd.f32 0.0, %v4404
      %v4406 = vpop.f32.mrf.mxu0
      %4407 = vdwg.mxu0
      %v4408 = vadd.f32 %v4236, %v4402
      %v4409 = vadd.f32 %v4237, %v4405
      %4410 = vrot.lane.b32.xlu0 %v3546, 88
      %v4411 = vpop.permute.xlu0 %4410
      %4412 = vrot.lane.b32.xlu0 %v3547, 88
      %v4413 = vpop.permute.xlu0 %4412
      %v4415 = vsel %vm3555, %v4411, 0
      %v4418 = vsel %vm3555, %v4413, 0
      %4420 = vmatprep.subr.bf16.mxu0 0
      %4421 = vmatpush1.bf16.xpose.msra.mxu0 0
      %4422 = vmatprep.subr.bf16.mxu0 0
      %4423 = vmatpush1.bf16.xpose.msra.mxu0 0
      %4424 = vmatprep.subr.bf16.mxu0 0
      %4425 = vmatpush1.bf16.xpose.msra.mxu0 0
      %4426 = vmatprep.subr.bf16.mxu0 0
      %4427 = vmatpush1.bf16.xpose.msra.mxu0 0
      %4428 = vmatprep.subr.bf16.mxu0 0
      %4429 = vmatpush1.bf16.xpose.msra.mxu0 0
      %4430 = vmatprep.subr.bf16.mxu0 0
      %4431 = vmatpush1.bf16.xpose.msra.mxu0 0
      %4432 = vmatprep.subr.bf16.mxu0 0
      %4433 = vmatpush1.bf16.xpose.msra.mxu0 0
      %4434 = vmatprep.subr.bf16.mxu0 0
      %4435 = vmatpush1.bf16.xpose.msra.mxu0 %v4418
      %4436 = vmatprep.subr.bf16.mxu0 0
      %4437 = vmatpush2.bf16.xpose.msra.mxu0 0
      %4438 = vmatprep.subr.bf16.mxu0 0
      %4439 = vmatpush2.bf16.xpose.msra.mxu0 0
      %4440 = vmatprep.subr.bf16.mxu0 0
      %4441 = vmatpush2.bf16.xpose.msra.mxu0 0
      %4442 = vmatprep.subr.bf16.mxu0 0
      %4443 = vmatpush2.bf16.xpose.msra.mxu0 0
      %4444 = vmatprep.subr.bf16.mxu0 0
      %4445 = vmatpush2.bf16.xpose.msra.mxu0 0
      %4446 = vmatprep.subr.bf16.mxu0 0
      %4447 = vmatpush2.bf16.xpose.msra.mxu0 0
      %4448 = vmatprep.subr.bf16.mxu0 0
      %4449 = vmatpush2.bf16.xpose.msra.mxu0 0
      %4450 = vmatprep.subr.bf16.mxu0 0
      %4451 = vmatpush2.bf16.xpose.msra.mxu0 0
      %4452 = vmatprep.mubr.bf16.mxu0 0
      %4453 = vmatmul.mubr.bf16.gmra.mxu0 %v4415
      %v4454 = vpop.f32.mrf.mxu0
      %v4455 = vadd.f32 %v3553, %v4454
      %v4456 = vpop.f32.mrf.mxu0
      %v4457 = vpop.f32.mrf.mxu0
      %v4458 = vadd.f32 %v3553, %v4457
      %v4459 = vpop.f32.mrf.mxu0
      %4460 = vdwg.mxu0
      %v4461 = vsel %vm3603, %v4455, -inf
      %4462 = vmax.xlane.f32.xlu0 %v4461
      %v4463 = vpop.xlane.xlu0 %4462
      %v4464 = vsel %vm3603, %v4458, -inf
      %4465 = vmax.xlane.f32.xlu0 %v4464
      %v4466 = vpop.xlane.xlu0 %4465
      %v4467 = vsub.f32 %v4455, %v4463
      %v4468 = vsub.f32 %v4458, %v4466
      %v4469 = vmul.f32 %v4467, 1.442695
      %v4470 = vpow.pop %v4469
      %v4471 = vmul.f32 %v4468, 1.442695
      %v4472 = vpow.pop %v4471
      %v4473 = vsel %vm3603, %v4470, 0.0
      %4474 = vadd.xlane.f32.xlu0 %v4473
      %v4475 = vpop.xlane.xlu0 %4474
      %v4476 = vsel %vm3603, %v4472, 0.0
      %4477 = vadd.xlane.f32.xlu0 %v4476
      %v4478 = vpop.xlane.xlu0 %4477
      %v4479 = vrcp.pop %v4475
      %v4480 = vrcp.pop %v4478
      %v4481 = vmul.f32 %v4470, %v4479
      %v4482 = vmul.f32 %v4472, %v4480
      %v4483 = vpack.c.bf16 %v4482, %v4481
      %4484 = vrot.lane.b32.xlu0 %v3548, 88
      %v4485 = vpop.permute.xlu0 %4484
      %v4488 = vsel %vm3603, %v4483, 0
      %4490 = vmatprep.subr.bf16.mxu0 0
      %4491 = vmatpush1.bf16.msra.mxu0 0
      %4492 = vmatprep.subr.bf16.mxu0 0
      %4493 = vmatpush1.bf16.msra.mxu0 0
      %4494 = vmatprep.subr.bf16.mxu0 0
      %4495 = vmatpush1.bf16.msra.mxu0 0
      %4496 = vmatprep.subr.bf16.mxu0 0
      %4497 = vmatpush1.bf16.msra.mxu0 0
      %4498 = vmatprep.subr.bf16.mxu0 0
      %4499 = vmatpush1.bf16.msra.mxu0 0
      %4500 = vmatprep.subr.bf16.mxu0 0
      %4501 = vmatpush1.bf16.msra.mxu0 0
      %4502 = vmatprep.subr.bf16.mxu0 0
      %4503 = vmatpush1.bf16.msra.mxu0 0
      %4504 = vmatprep.subr.bf16.mxu0 0
      %4505 = vmatpush1.bf16.msra.mxu0 %v4485
      %4506 = vmatprep.subr.bf16.mxu0 0
      %4507 = vmatpush2.bf16.msra.mxu0 0
      %4508 = vmatprep.subr.bf16.mxu0 0
      %4509 = vmatpush2.bf16.msra.mxu0 0
      %4510 = vmatprep.subr.bf16.mxu0 0
      %4511 = vmatpush2.bf16.msra.mxu0 0
      %4512 = vmatprep.subr.bf16.mxu0 0
      %4513 = vmatpush2.bf16.msra.mxu0 0
      %4514 = vmatprep.subr.bf16.mxu0 0
      %4515 = vmatpush2.bf16.msra.mxu0 0
      %4516 = vmatprep.subr.bf16.mxu0 0
      %4517 = vmatpush2.bf16.msra.mxu0 0
      %4518 = vmatprep.subr.bf16.mxu0 0
      %4519 = vmatpush2.bf16.msra.mxu0 0
      %4520 = vmatprep.subr.bf16.mxu0 0
      %4521 = vmatpush2.bf16.msra.mxu0 0
      %4522 = vmatprep.mubr.bf16.mxu0 0
      %4523 = vmatmul.mubr.bf16.gmra.mxu0 %v4488
      %v4524 = vpop.f32.mrf.mxu0
      %v4525 = vadd.f32 0.0, %v4524
      %v4526 = vpop.f32.mrf.mxu0
      %v4527 = vpop.f32.mrf.mxu0
      %v4528 = vadd.f32 0.0, %v4527
      %v4529 = vpop.f32.mrf.mxu0
      %4530 = vdwg.mxu0
      %v4531 = vpack.c.bf16 %v4528, %v4525
      %v4532 = vld [vmem:[%s17 + $0x14] sm:$0xf]
      %v4534 = vsel %vm3555, %v4531, 0
      %v4537 = vsel %vm3802, %v4532, 0
      %4539 = vmatprep.subr.bf16.mxu0 0
      %4540 = vmatpush1.bf16.msra.mxu0 0
      %4541 = vmatprep.subr.bf16.mxu0 0
      %4542 = vmatpush1.bf16.msra.mxu0 0
      %4543 = vmatprep.subr.bf16.mxu0 0
      %4544 = vmatpush1.bf16.msra.mxu0 0
      %4545 = vmatprep.subr.bf16.mxu0 0
      %4546 = vmatpush1.bf16.msra.mxu0 0
      %4547 = vmatprep.subr.bf16.mxu0 0
      %4548 = vmatpush1.bf16.msra.mxu0 0
      %4549 = vmatprep.subr.bf16.mxu0 0
      %4550 = vmatpush1.bf16.msra.mxu0 0
      %4551 = vmatprep.subr.bf16.mxu0 0
      %4552 = vmatpush1.bf16.msra.mxu0 0
      %4553 = vmatprep.subr.bf16.mxu0 0
      %4554 = vmatpush1.bf16.msra.mxu0 %v4537
      %4555 = vmatprep.subr.bf16.mxu0 0
      %4556 = vmatpush2.bf16.msra.mxu0 0
      %4557 = vmatprep.subr.bf16.mxu0 0
      %4558 = vmatpush2.bf16.msra.mxu0 0
      %4559 = vmatprep.subr.bf16.mxu0 0
      %4560 = vmatpush2.bf16.msra.mxu0 0
      %4561 = vmatprep.subr.bf16.mxu0 0
      %4562 = vmatpush2.bf16.msra.mxu0 0
      %4563 = vmatprep.subr.bf16.mxu0 0
      %4564 = vmatpush2.bf16.msra.mxu0 0
      %4565 = vmatprep.subr.bf16.mxu0 0
      %4566 = vmatpush2.bf16.msra.mxu0 0
      %4567 = vmatprep.subr.bf16.mxu0 0
      %4568 = vmatpush2.bf16.msra.mxu0 0
      %4569 = vmatprep.subr.bf16.mxu0 0
      %4570 = vmatpush2.bf16.msra.mxu0 0
      %4571 = vmatprep.mubr.bf16.mxu0 0
      %4572 = vmatmul.mubr.bf16.gmra.mxu0 %v4534
      %v4573 = vpop.f32.mrf.mxu0
      %v4574 = vadd.f32 0.0, %v4573
      %v4575 = vpop.f32.mrf.mxu0
      %v4576 = vpop.f32.mrf.mxu0
      %v4577 = vadd.f32 0.0, %v4576
      %v4578 = vpop.f32.mrf.mxu0
      %4579 = vdwg.mxu0
      %v4580 = vadd.f32 %v4408, %v4574
      %v4581 = vadd.f32 %v4409, %v4577
      %4582 = vrot.lane.b32.xlu0 %v3546, 80
      %v4583 = vpop.permute.xlu0 %4582
      %4584 = vrot.lane.b32.xlu0 %v3547, 80
      %v4585 = vpop.permute.xlu0 %4584
      %v4587 = vsel %vm3555, %v4583, 0
      %v4590 = vsel %vm3555, %v4585, 0
      %4592 = vmatprep.subr.bf16.mxu0 0
      %4593 = vmatpush1.bf16.xpose.msra.mxu0 0
      %4594 = vmatprep.subr.bf16.mxu0 0
      %4595 = vmatpush1.bf16.xpose.msra.mxu0 0
      %4596 = vmatprep.subr.bf16.mxu0 0
      %4597 = vmatpush1.bf16.xpose.msra.mxu0 0
      %4598 = vmatprep.subr.bf16.mxu0 0
      %4599 = vmatpush1.bf16.xpose.msra.mxu0 0
      %4600 = vmatprep.subr.bf16.mxu0 0
      %4601 = vmatpush1.bf16.xpose.msra.mxu0 0
      %4602 = vmatprep.subr.bf16.mxu0 0
      %4603 = vmatpush1.bf16.xpose.msra.mxu0 0
      %4604 = vmatprep.subr.bf16.mxu0 0
      %4605 = vmatpush1.bf16.xpose.msra.mxu0 0
      %4606 = vmatprep.subr.bf16.mxu0 0
      %4607 = vmatpush1.bf16.xpose.msra.mxu0 %v4590
      %4608 = vmatprep.subr.bf16.mxu0 0
      %4609 = vmatpush2.bf16.xpose.msra.mxu0 0
      %4610 = vmatprep.subr.bf16.mxu0 0
      %4611 = vmatpush2.bf16.xpose.msra.mxu0 0
      %4612 = vmatprep.subr.bf16.mxu0 0
      %4613 = vmatpush2.bf16.xpose.msra.mxu0 0
      %4614 = vmatprep.subr.bf16.mxu0 0
      %4615 = vmatpush2.bf16.xpose.msra.mxu0 0
      %4616 = vmatprep.subr.bf16.mxu0 0
      %4617 = vmatpush2.bf16.xpose.msra.mxu0 0
      %4618 = vmatprep.subr.bf16.mxu0 0
      %4619 = vmatpush2.bf16.xpose.msra.mxu0 0
      %4620 = vmatprep.subr.bf16.mxu0 0
      %4621 = vmatpush2.bf16.xpose.msra.mxu0 0
      %4622 = vmatprep.subr.bf16.mxu0 0
      %4623 = vmatpush2.bf16.xpose.msra.mxu0 0
      %4624 = vmatprep.mubr.bf16.mxu0 0
      %4625 = vmatmul.mubr.bf16.gmra.mxu0 %v4587
      %v4626 = vpop.f32.mrf.mxu0
      %v4627 = vadd.f32 %v3553, %v4626
      %v4628 = vpop.f32.mrf.mxu0
      %v4629 = vpop.f32.mrf.mxu0
      %v4630 = vadd.f32 %v3553, %v4629
      %v4631 = vpop.f32.mrf.mxu0
      %4632 = vdwg.mxu0
      %v4633 = vsel %vm3603, %v4627, -inf
      %4634 = vmax.xlane.f32.xlu0 %v4633
      %v4635 = vpop.xlane.xlu0 %4634
      %v4636 = vsel %vm3603, %v4630, -inf
      %4637 = vmax.xlane.f32.xlu0 %v4636
      %v4638 = vpop.xlane.xlu0 %4637
      %v4639 = vsub.f32 %v4627, %v4635
      %v4640 = vsub.f32 %v4630, %v4638
      %v4641 = vmul.f32 %v4639, 1.442695
      %v4642 = vpow.pop %v4641
      %v4643 = vmul.f32 %v4640, 1.442695
      %v4644 = vpow.pop %v4643
      %v4645 = vsel %vm3603, %v4642, 0.0
      %4646 = vadd.xlane.f32.xlu0 %v4645
      %v4647 = vpop.xlane.xlu0 %4646
      %v4648 = vsel %vm3603, %v4644, 0.0
      %4649 = vadd.xlane.f32.xlu0 %v4648
      %v4650 = vpop.xlane.xlu0 %4649
      %v4651 = vrcp.pop %v4647
      %v4652 = vrcp.pop %v4650
      %v4653 = vmul.f32 %v4642, %v4651
      %v4654 = vmul.f32 %v4644, %v4652
      %v4655 = vpack.c.bf16 %v4654, %v4653
      %4656 = vrot.lane.b32.xlu0 %v3548, 80
      %v4657 = vpop.permute.xlu0 %4656
      %v4660 = vsel %vm3603, %v4655, 0
      %4662 = vmatprep.subr.bf16.mxu0 0
      %4663 = vmatpush1.bf16.msra.mxu0 0
      %4664 = vmatprep.subr.bf16.mxu0 0
      %4665 = vmatpush1.bf16.msra.mxu0 0
      %4666 = vmatprep.subr.bf16.mxu0 0
      %4667 = vmatpush1.bf16.msra.mxu0 0
      %4668 = vmatprep.subr.bf16.mxu0 0
      %4669 = vmatpush1.bf16.msra.mxu0 0
      %4670 = vmatprep.subr.bf16.mxu0 0
      %4671 = vmatpush1.bf16.msra.mxu0 0
      %4672 = vmatprep.subr.bf16.mxu0 0
      %4673 = vmatpush1.bf16.msra.mxu0 0
      %4674 = vmatprep.subr.bf16.mxu0 0
      %4675 = vmatpush1.bf16.msra.mxu0 0
      %4676 = vmatprep.subr.bf16.mxu0 0
      %4677 = vmatpush1.bf16.msra.mxu0 %v4657
      %4678 = vmatprep.subr.bf16.mxu0 0
      %4679 = vmatpush2.bf16.msra.mxu0 0
      %4680 = vmatprep.subr.bf16.mxu0 0
      %4681 = vmatpush2.bf16.msra.mxu0 0
      %4682 = vmatprep.subr.bf16.mxu0 0
      %4683 = vmatpush2.bf16.msra.mxu0 0
      %4684 = vmatprep.subr.bf16.mxu0 0
      %4685 = vmatpush2.bf16.msra.mxu0 0
      %4686 = vmatprep.subr.bf16.mxu0 0
      %4687 = vmatpush2.bf16.msra.mxu0 0
      %4688 = vmatprep.subr.bf16.mxu0 0
      %4689 = vmatpush2.bf16.msra.mxu0 0
      %4690 = vmatprep.subr.bf16.mxu0 0
      %4691 = vmatpush2.bf16.msra.mxu0 0
      %4692 = vmatprep.subr.bf16.mxu0 0
      %4693 = vmatpush2.bf16.msra.mxu0 0
      %4694 = vmatprep.mubr.bf16.mxu0 0
      %4695 = vmatmul.mubr.bf16.gmra.mxu0 %v4660
      %v4696 = vpop.f32.mrf.mxu0
      %v4697 = vadd.f32 0.0, %v4696
      %v4698 = vpop.f32.mrf.mxu0
      %v4699 = vpop.f32.mrf.mxu0
      %v4700 = vadd.f32 0.0, %v4699
      %v4701 = vpop.f32.mrf.mxu0
      %4702 = vdwg.mxu0
      %v4703 = vpack.c.bf16 %v4700, %v4697
      %v4704 = vld [vmem:[%s17 + $0x18] sm:$0xf]
      %v4706 = vsel %vm3555, %v4703, 0
      %v4709 = vsel %vm3802, %v4704, 0
      %4711 = vmatprep.subr.bf16.mxu0 0
      %4712 = vmatpush1.bf16.msra.mxu0 0
      %4713 = vmatprep.subr.bf16.mxu0 0
      %4714 = vmatpush1.bf16.msra.mxu0 0
      %4715 = vmatprep.subr.bf16.mxu0 0
      %4716 = vmatpush1.bf16.msra.mxu0 0
      %4717 = vmatprep.subr.bf16.mxu0 0
      %4718 = vmatpush1.bf16.msra.mxu0 0
      %4719 = vmatprep.subr.bf16.mxu0 0
      %4720 = vmatpush1.bf16.msra.mxu0 0
      %4721 = vmatprep.subr.bf16.mxu0 0
      %4722 = vmatpush1.bf16.msra.mxu0 0
      %4723 = vmatprep.subr.bf16.mxu0 0
      %4724 = vmatpush1.bf16.msra.mxu0 0
      %4725 = vmatprep.subr.bf16.mxu0 0
      %4726 = vmatpush1.bf16.msra.mxu0 %v4709
      %4727 = vmatprep.subr.bf16.mxu0 0
      %4728 = vmatpush2.bf16.msra.mxu0 0
      %4729 = vmatprep.subr.bf16.mxu0 0
      %4730 = vmatpush2.bf16.msra.mxu0 0
      %4731 = vmatprep.subr.bf16.mxu0 0
      %4732 = vmatpush2.bf16.msra.mxu0 0
      %4733 = vmatprep.subr.bf16.mxu0 0
      %4734 = vmatpush2.bf16.msra.mxu0 0
      %4735 = vmatprep.subr.bf16.mxu0 0
      %4736 = vmatpush2.bf16.msra.mxu0 0
      %4737 = vmatprep.subr.bf16.mxu0 0
      %4738 = vmatpush2.bf16.msra.mxu0 0
      %4739 = vmatprep.subr.bf16.mxu0 0
      %4740 = vmatpush2.bf16.msra.mxu0 0
      %4741 = vmatprep.subr.bf16.mxu0 0
      %4742 = vmatpush2.bf16.msra.mxu0 0
      %4743 = vmatprep.mubr.bf16.mxu0 0
      %4744 = vmatmul.mubr.bf16.gmra.mxu0 %v4706
      %v4745 = vpop.f32.mrf.mxu0
      %v4746 = vadd.f32 0.0, %v4745
      %v4747 = vpop.f32.mrf.mxu0
      %v4748 = vpop.f32.mrf.mxu0
      %v4749 = vadd.f32 0.0, %v4748
      %v4750 = vpop.f32.mrf.mxu0
      %4751 = vdwg.mxu0
      %v4752 = vadd.f32 %v4580, %v4746
      %v4753 = vadd.f32 %v4581, %v4749
      %4754 = vrot.lane.b32.xlu0 %v3546, 72
      %v4755 = vpop.permute.xlu0 %4754
      %4756 = vrot.lane.b32.xlu0 %v3547, 72
      %v4757 = vpop.permute.xlu0 %4756
      %v4759 = vsel %vm3555, %v4755, 0
      %v4762 = vsel %vm3555, %v4757, 0
      %4764 = vmatprep.subr.bf16.mxu0 0
      %4765 = vmatpush1.bf16.xpose.msra.mxu0 0
      %4766 = vmatprep.subr.bf16.mxu0 0
      %4767 = vmatpush1.bf16.xpose.msra.mxu0 0
      %4768 = vmatprep.subr.bf16.mxu0 0
      %4769 = vmatpush1.bf16.xpose.msra.mxu0 0
      %4770 = vmatprep.subr.bf16.mxu0 0
      %4771 = vmatpush1.bf16.xpose.msra.mxu0 0
      %4772 = vmatprep.subr.bf16.mxu0 0
      %4773 = vmatpush1.bf16.xpose.msra.mxu0 0
      %4774 = vmatprep.subr.bf16.mxu0 0
      %4775 = vmatpush1.bf16.xpose.msra.mxu0 0
      %4776 = vmatprep.subr.bf16.mxu0 0
      %4777 = vmatpush1.bf16.xpose.msra.mxu0 0
      %4778 = vmatprep.subr.bf16.mxu0 0
      %4779 = vmatpush1.bf16.xpose.msra.mxu0 %v4762
      %4780 = vmatprep.subr.bf16.mxu0 0
      %4781 = vmatpush2.bf16.xpose.msra.mxu0 0
      %4782 = vmatprep.subr.bf16.mxu0 0
      %4783 = vmatpush2.bf16.xpose.msra.mxu0 0
      %4784 = vmatprep.subr.bf16.mxu0 0
      %4785 = vmatpush2.bf16.xpose.msra.mxu0 0
      %4786 = vmatprep.subr.bf16.mxu0 0
      %4787 = vmatpush2.bf16.xpose.msra.mxu0 0
      %4788 = vmatprep.subr.bf16.mxu0 0
      %4789 = vmatpush2.bf16.xpose.msra.mxu0 0
      %4790 = vmatprep.subr.bf16.mxu0 0
      %4791 = vmatpush2.bf16.xpose.msra.mxu0 0
      %4792 = vmatprep.subr.bf16.mxu0 0
      %4793 = vmatpush2.bf16.xpose.msra.mxu0 0
      %4794 = vmatprep.subr.bf16.mxu0 0
      %4795 = vmatpush2.bf16.xpose.msra.mxu0 0
      %4796 = vmatprep.mubr.bf16.mxu0 0
      %4797 = vmatmul.mubr.bf16.gmra.mxu0 %v4759
      %v4798 = vpop.f32.mrf.mxu0
      %v4799 = vadd.f32 %v3553, %v4798
      %v4800 = vpop.f32.mrf.mxu0
      %v4801 = vpop.f32.mrf.mxu0
      %v4802 = vadd.f32 %v3553, %v4801
      %v4803 = vpop.f32.mrf.mxu0
      %4804 = vdwg.mxu0
      %v4805 = vsel %vm3603, %v4799, -inf
      %4806 = vmax.xlane.f32.xlu0 %v4805
      %v4807 = vpop.xlane.xlu0 %4806
      %v4808 = vsel %vm3603, %v4802, -inf
      %4809 = vmax.xlane.f32.xlu0 %v4808
      %v4810 = vpop.xlane.xlu0 %4809
      %v4811 = vsub.f32 %v4799, %v4807
      %v4812 = vsub.f32 %v4802, %v4810
      %v4813 = vmul.f32 %v4811, 1.442695
      %v4814 = vpow.pop %v4813
      %v4815 = vmul.f32 %v4812, 1.442695
      %v4816 = vpow.pop %v4815
      %v4817 = vsel %vm3603, %v4814, 0.0
      %4818 = vadd.xlane.f32.xlu0 %v4817
      %v4819 = vpop.xlane.xlu0 %4818
      %v4820 = vsel %vm3603, %v4816, 0.0
      %4821 = vadd.xlane.f32.xlu0 %v4820
      %v4822 = vpop.xlane.xlu0 %4821
      %v4823 = vrcp.pop %v4819
      %v4824 = vrcp.pop %v4822
      %v4825 = vmul.f32 %v4814, %v4823
      %v4826 = vmul.f32 %v4816, %v4824
      %v4827 = vpack.c.bf16 %v4826, %v4825
      %4828 = vrot.lane.b32.xlu0 %v3548, 72
      %v4829 = vpop.permute.xlu0 %4828
      %v4832 = vsel %vm3603, %v4827, 0
      %4834 = vmatprep.subr.bf16.mxu0 0
      %4835 = vmatpush1.bf16.msra.mxu0 0
      %4836 = vmatprep.subr.bf16.mxu0 0
      %4837 = vmatpush1.bf16.msra.mxu0 0
      %4838 = vmatprep.subr.bf16.mxu0 0
      %4839 = vmatpush1.bf16.msra.mxu0 0
      %4840 = vmatprep.subr.bf16.mxu0 0
      %4841 = vmatpush1.bf16.msra.mxu0 0
      %4842 = vmatprep.subr.bf16.mxu0 0
      %4843 = vmatpush1.bf16.msra.mxu0 0
      %4844 = vmatprep.subr.bf16.mxu0 0
      %4845 = vmatpush1.bf16.msra.mxu0 0
      %4846 = vmatprep.subr.bf16.mxu0 0
      %4847 = vmatpush1.bf16.msra.mxu0 0
      %4848 = vmatprep.subr.bf16.mxu0 0
      %4849 = vmatpush1.bf16.msra.mxu0 %v4829
      %4850 = vmatprep.subr.bf16.mxu0 0
      %4851 = vmatpush2.bf16.msra.mxu0 0
      %4852 = vmatprep.subr.bf16.mxu0 0
      %4853 = vmatpush2.bf16.msra.mxu0 0
      %4854 = vmatprep.subr.bf16.mxu0 0
      %4855 = vmatpush2.bf16.msra.mxu0 0
      %4856 = vmatprep.subr.bf16.mxu0 0
      %4857 = vmatpush2.bf16.msra.mxu0 0
      %4858 = vmatprep.subr.bf16.mxu0 0
      %4859 = vmatpush2.bf16.msra.mxu0 0
      %4860 = vmatprep.subr.bf16.mxu0 0
      %4861 = vmatpush2.bf16.msra.mxu0 0
      %4862 = vmatprep.subr.bf16.mxu0 0
      %4863 = vmatpush2.bf16.msra.mxu0 0
      %4864 = vmatprep.subr.bf16.mxu0 0
      %4865 = vmatpush2.bf16.msra.mxu0 0
      %4866 = vmatprep.mubr.bf16.mxu0 0
      %4867 = vmatmul.mubr.bf16.gmra.mxu0 %v4832
      %v4868 = vpop.f32.mrf.mxu0
      %v4869 = vadd.f32 0.0, %v4868
      %v4870 = vpop.f32.mrf.mxu0
      %v4871 = vpop.f32.mrf.mxu0
      %v4872 = vadd.f32 0.0, %v4871
      %v4873 = vpop.f32.mrf.mxu0
      %4874 = vdwg.mxu0
      %v4875 = vpack.c.bf16 %v4872, %v4869
      %v4876 = vld [vmem:[%s17 + $0x1c] sm:$0xf]
      %v4878 = vsel %vm3555, %v4875, 0
      %v4881 = vsel %vm3802, %v4876, 0
      %4883 = vmatprep.subr.bf16.mxu0 0
      %4884 = vmatpush1.bf16.msra.mxu0 0
      %4885 = vmatprep.subr.bf16.mxu0 0
      %4886 = vmatpush1.bf16.msra.mxu0 0
      %4887 = vmatprep.subr.bf16.mxu0 0
      %4888 = vmatpush1.bf16.msra.mxu0 0
      %4889 = vmatprep.subr.bf16.mxu0 0
      %4890 = vmatpush1.bf16.msra.mxu0 0
      %4891 = vmatprep.subr.bf16.mxu0 0
      %4892 = vmatpush1.bf16.msra.mxu0 0
      %4893 = vmatprep.subr.bf16.mxu0 0
      %4894 = vmatpush1.bf16.msra.mxu0 0
      %4895 = vmatprep.subr.bf16.mxu0 0
      %4896 = vmatpush1.bf16.msra.mxu0 0
      %4897 = vmatprep.subr.bf16.mxu0 0
      %4898 = vmatpush1.bf16.msra.mxu0 %v4881
      %4899 = vmatprep.subr.bf16.mxu0 0
      %4900 = vmatpush2.bf16.msra.mxu0 0
      %4901 = vmatprep.subr.bf16.mxu0 0
      %4902 = vmatpush2.bf16.msra.mxu0 0
      %4903 = vmatprep.subr.bf16.mxu0 0
      %4904 = vmatpush2.bf16.msra.mxu0 0
      %4905 = vmatprep.subr.bf16.mxu0 0
      %4906 = vmatpush2.bf16.msra.mxu0 0
      %4907 = vmatprep.subr.bf16.mxu0 0
      %4908 = vmatpush2.bf16.msra.mxu0 0
      %4909 = vmatprep.subr.bf16.mxu0 0
      %4910 = vmatpush2.bf16.msra.mxu0 0
      %4911 = vmatprep.subr.bf16.mxu0 0
      %4912 = vmatpush2.bf16.msra.mxu0 0
      %4913 = vmatprep.subr.bf16.mxu0 0
      %4914 = vmatpush2.bf16.msra.mxu0 0
      %4915 = vmatprep.mubr.bf16.mxu0 0
      %4916 = vmatmul.mubr.bf16.gmra.mxu0 %v4878
      %v4917 = vpop.f32.mrf.mxu0
      %v4918 = vadd.f32 0.0, %v4917
      %v4919 = vpop.f32.mrf.mxu0
      %v4920 = vpop.f32.mrf.mxu0
      %v4921 = vadd.f32 0.0, %v4920
      %v4922 = vpop.f32.mrf.mxu0
      %4923 = vdwg.mxu0
      %v4924 = vadd.f32 %v4752, %v4918
      %v4925 = vadd.f32 %v4753, %v4921
      %v4926 = vld [vmem:[%s18 + $0x3] sm:$0x1]
      %v4927 = vlaneseq
      %v4928 = vshrl.u32 %v4927, 7
      %v4929 = vsub.s32 0, %v4928
      %v4930 = vrot.slane %v4926, %v4929
      %v4931 = vadd.f32 %v4924, %v4930
      %v4932 = vadd.f32 %v4925, %v4930
      %v4933 = vadd.f32 %v4931, %v3208
      %v4934 = vadd.f32 %v4932, %v3209
      %4935 = vst.msk [vmem:[%s636] sm:$0xff] %vm3163, %v4933
      %4936 = vst.msk [vmem:[%s636 + $0x8] sm:$0xff] %vm3163, %v4934
      %p4937 = scmp.lt.s32.totalorder %s30, 1
      %s4938 = scalar_select %p4937, %s30, 1
      %s4939 = smul.addr %s4938, 2
      %s4940 = smul.addr %s4939, 8
      %s4941 = scalar_lea.vmem %s19, %s4940
      // Predicated region
      $region97: #{query_generation_forward.1} parent=95 // pred_check
        %p4942 = pneg %p462
      $region98: #{query_generation_forward.1} parent=95 // pred_check_branch
        %4944 = sbr.rel (%p4942) target = $region100
      $region99: #{query_generation_forward.1} parent=95 // pred_region
        _
      $region100: #{query_generation_forward.1} parent=95 // pred_fallthru
        _
    $region96: #{query_generation_forward.1} parent=5 // pred_fallthru
      _
    %p4945 = scmp.le.s32.totalorder 2, %s25
    // Predicated region
    $region101: #{query_generation_forward.1} parent=5 // pred_check
      %p4946 = pneg %p4945
    $region102: #{query_generation_forward.1} parent=5 // pred_check_branch
      %4948 = sbr.rel (%p4946) target = $region104
    $region103: #{query_generation_forward.1} parent=5 // pred_region
      %s4949 = ssub.s32 %s25, 2
      // Predicated region
      $region105: #{query_generation_forward.1} parent=103 // pred_check
        %p4950 = pneg %p468
      $region106: #{query_generation_forward.1} parent=103 // pred_check_branch
        %4952 = sbr.rel (%p4950) target = $region108
      $region107: #{query_generation_forward.1} parent=103 // pred_region
        %p4953 = scmp.lt.s32.totalorder %s31, 1
        %s4954 = scalar_select %p4953, %s31, 1
        %s4955 = smul.addr %s4954, 2
        %s4956 = smul.addr %s4955, 8
        %s4957 = scalar_lea.vmem %s19, %s4956
      $region108: #{query_generation_forward.1} parent=103 // pred_fallthru
        _
    $region104: #{query_generation_forward.1} parent=5 // pred_fallthru
      _
  $region6: #{query_generation_forward.1} parent=0 // loop_footer
    %s29 = sadd.s32 1, %s25
  $region7: #{query_generation_forward.1} parent=0 // loop_footer_branch
    %24 = sbr.rel target = $region3
  $region8: #{query_generation_forward.1} parent=0 // loop_exit
    _

</llo_original>
